<compile_context>
chip_gen: v7x
topology: tpu7x:2x2x1
jax: 0.10.0
libtpu: 0.0.40
codegen_flags: <defaults>
</compile_context>

<pallas_src>
import jax
import jax.numpy as jnp
import numpy as np
from jax.experimental import pallas as pl
from jax.experimental.pallas import tpu as pltpu


# ----------------------------- Pallas kernel -------------------------------

def lstm_mlp_kernel(x2d_ref,                     # (T*B, D)  time-major, flattened
                    wih1T_ref, b1_ref,           # (D, 4H), (1, 4H)
                    whh1T_ref,                   # (H, 4H)
                    wih2T_ref, whh2T_ref, b2_ref,  # (H,4H), (H,4H), (1,4H)
                    h0_ref, c0_ref,              # (2, B, H)
                    wfc1T_ref, bfc1_ref,         # (H, F1), (1, F1)
                    wfc2T_ref, bfc2_ref,         # (F1, 128-padded), (1, 128-padded)
                    out_ref):                    # (B, 128-padded)
    _, B, H = h0_ref.shape
    TB, _ = x2d_ref.shape
    T = TB // B

    # ---- hoisted layer-1 input projection (no time dependency) ----
    xp = jnp.dot(x2d_ref[...], wih1T_ref[...],
                 preferred_element_type=jnp.float32) + b1_ref[...]     # (T*B, 4H)

    whh1T = whh1T_ref[...]
    wih2T = wih2T_ref[...]
    whh2T = whh2T_ref[...]
    b2 = b2_ref[...]

    # state carried in vregs
    h1 = h0_ref[0]
    c1 = c0_ref[0]
    h2 = h0_ref[1]
    c2 = c0_ref[1]

    def gates_to_hc(gates, c):
        # Full-width activations over the whole (B, 4H) vreg, then lane slices.
        # PyTorch gate ordering: i, f, g, o ; biases (b_ih + b_hh) pre-summed.
        sg = jax.nn.sigmoid(gates)
        th = jnp.tanh(gates)
        i = sg[:, 0 * H:1 * H]
        f = sg[:, 1 * H:2 * H]
        g = th[:, 2 * H:3 * H]
        o = sg[:, 3 * H:4 * H]
        c_new = f * c + i * g
        h_new = o * jnp.tanh(c_new)
        return h_new, c_new

    # Fully unrolled recurrent loop (T static & small): entire serial chain in
    # one kernel body, no grid / pipeline overhead.
    for t in range(T):
        # layer 1: only the recurrent matmul remains on the serial chain
        gates1 = xp[t * B:(t + 1) * B, :] + jnp.dot(
            h1, whh1T, preferred_element_type=jnp.float32)
        h1, c1 = gates_to_hc(gates1, c1)

        # layer 2 (input = h1, hidden = h2)
        gates2 = (jnp.dot(h1, wih2T, preferred_element_type=jnp.float32)
                  + jnp.dot(h2, whh2T, preferred_element_type=jnp.float32)
                  + b2)
        h2, c2 = gates_to_hc(gates2, c2)

    # ---- MLP head on last-timestep h2: Linear -> ReLU -> Linear -> sigmoid ----
    z1 = jnp.maximum(
        jnp.dot(h2, wfc1T_ref[...], preferred_element_type=jnp.float32)
        + bfc1_ref[...], 0.0)
    z2 = jnp.dot(z1, wfc2T_ref[...], preferred_element_type=jnp.float32) \
         + bfc2_ref[...]
    out_ref[...] = jax.nn.sigmoid(z2)          # single full-width lane-dense store


# ------------------------------- wrapper ------------------------------------

def lstm_rnn_forward(x_btd, params, h0, c0):
    """x_btd: (B, T, D) float32 (batch_first, as in the PyTorch module)."""
    B, T, D = x_btd.shape
    out_dim = params["wfc2"].shape[0]

    # time-major then flatten (T, B) so the layer-1 input projection is one matmul
    x2d = jnp.transpose(x_btd, (1, 0, 2)).reshape(T * B, D)

    # pre-transposed, lane-dense weights (no in-kernel .T)
    wih1T = params["wih1"].T                     # (D, 4H)
    whh1T = params["whh1"].T                     # (H, 4H)
    wih2T = params["wih2"].T                     # (H, 4H)
    whh2T = params["whh2"].T                     # (H, 4H)
    wfc1T = params["wfc1"].T                     # (H, F1)

    # pad head output to a multiple of 128 lanes -> unmasked store in-kernel
    pad = (-out_dim) % 128
    wfc2T = jnp.pad(params["wfc2"].T, ((0, 0), (0, pad)))   # (F1, out_dim+pad)
    bfc2p = jnp.pad(params["bfc2"], ((0, 0), (0, pad)))     # (1, out_dim+pad)

    vmem = pl.BlockSpec(memory_space=pltpu.MemorySpace.VMEM)

    out_padded = pl.pallas_call(
        lstm_mlp_kernel,
        out_shape=jax.ShapeDtypeStruct((B, out_dim + pad), jnp.float32),
        in_specs=[vmem] * 13,
        out_specs=vmem,
    )(x2d,
      wih1T, params["b1"],
      whh1T,
      wih2T, whh2T, params["b2"],
      h0, c0,
      wfc1T, params["bfc1"], wfc2T, bfc2p)

    return out_padded[:, :out_dim]


# --------------------------- pure-JAX reference ------------------------------

def reference_forward(x_btd, params, h0, c0):
    B, T, D = x_btd.shape
    H = params["whh1"].shape[1]

    def cell(inp, h, c, wih, whh, b):
        gates = inp @ wih.T + h @ whh.T + b
        i = jax.nn.sigmoid(gates[:, 0 * H:1 * H])
        f = jax.nn.sigmoid(gates[:, 1 * H:2 * H])
        g = jnp.tanh(gates[:, 2 * H:3 * H])
        o = jax.nn.sigmoid(gates[:, 3 * H:4 * H])
        c_new = f * c + i * g
        return o * jnp.tanh(c_new), c_new

    h1, c1, h2, c2 = h0[0], c0[0], h0[1], c0[1]
    for t in range(T):
        x_t = x_btd[:, t, :]
        h1, c1 = cell(x_t, h1, c1, params["wih1"], params["whh1"], params["b1"])
        h2, c2 = cell(h1, h2, c2, params["wih2"], params["whh2"], params["b2"])
    z1 = jnp.maximum(h2 @ params["wfc1"].T + params["bfc1"], 0.0)
    z2 = z1 @ params["wfc2"].T + params["bfc2"]
    return jax.nn.sigmoid(z2)


# --------------------------------- main --------------------------------------

if __name__ == "__main__":
    # Module config (num_layers hard-coded to 2 inside the PyTorch module).
    B, T, D, H = 2, 8, 16, 32
    layers_sizes = [H, 64, 4]            # layers_sizes[0] must equal hidden_dim

    key = jax.random.PRNGKey(0)
    keys = jax.random.split(key, 16)
    k = 1.0 / np.sqrt(H)

    def u(kk, shape, bound):
        return jax.random.uniform(kk, shape, jnp.float32, -bound, bound)

    params = {
        # LSTM layer 1: input_size D -> hidden H  (PyTorch init: U(-1/sqrt(H), 1/sqrt(H)))
        "wih1": u(keys[0], (4 * H, D), k),
        "whh1": u(keys[1], (4 * H, H), k),
        "b1":   (u(keys[2], (1, 4 * H), k) + u(keys[3], (1, 4 * H), k)),  # b_ih + b_hh
        # LSTM layer 2: hidden H -> hidden H
        "wih2": u(keys[4], (4 * H, H), k),
        "whh2": u(keys[5], (4 * H, H), k),
        "b2":   (u(keys[6], (1, 4 * H), k) + u(keys[7], (1, 4 * H), k)),
        # Linear stack: H -> 64 -> 4
        "wfc1": u(keys[8], (layers_sizes[1], layers_sizes[0]), 1.0 / np.sqrt(layers_sizes[0])),
        "bfc1": u(keys[9], (1, layers_sizes[1]), 1.0 / np.sqrt(layers_sizes[0])),
        "wfc2": u(keys[10], (layers_sizes[2], layers_sizes[1]), 1.0 / np.sqrt(layers_sizes[1])),
        "bfc2": u(keys[11], (1, layers_sizes[2]), 1.0 / np.sqrt(layers_sizes[1])),
    }

    # TODO(synk): torch.randn(h0, c0) per-forward randomness is replaced by
    # deterministic jax.random inputs passed explicitly to the kernel.
    h0 = jax.random.normal(keys[12], (2, B, H), jnp.float32)
    c0 = jax.random.normal(keys[13], (2, B, H), jnp.float32)

    # Example input, batch_first like PyTorch: (B, T, input_size)
    x = jax.random.normal(keys[14], (B, T, D), jnp.float32)

    out = lstm_rnn_forward(x, params, h0, c0)
    out = jax.block_until_ready(out)

    ref = reference_forward(x, params, h0, c0)
    np.testing.assert_allclose(np.asarray(out), np.asarray(ref),
                               rtol=1e-3, atol=1e-3)

    print("KERNEL_OK")
</pallas_src>

<mosaic_0001>
module attributes {stable_mosaic.version = 11 : i64} {
  func.func @lstm_mlp_kernel(%arg0: memref<16x16xf32, #tpu.memory_space<vmem>>, %arg1: memref<16x128xf32, #tpu.memory_space<vmem>>, %arg2: memref<1x128xf32, #tpu.memory_space<vmem>>, %arg3: memref<32x128xf32, #tpu.memory_space<vmem>>, %arg4: memref<32x128xf32, #tpu.memory_space<vmem>>, %arg5: memref<32x128xf32, #tpu.memory_space<vmem>>, %arg6: memref<1x128xf32, #tpu.memory_space<vmem>>, %arg7: memref<2x2x32xf32, #tpu.memory_space<vmem>>, %arg8: memref<2x2x32xf32, #tpu.memory_space<vmem>>, %arg9: memref<32x64xf32, #tpu.memory_space<vmem>>, %arg10: memref<1x64xf32, #tpu.memory_space<vmem>>, %arg11: memref<64x128xf32, #tpu.memory_space<vmem>>, %arg12: memref<1x128xf32, #tpu.memory_space<vmem>>, %arg13: memref<2x128xf32, #tpu.memory_space<vmem>>) attributes {dimension_semantics = [], scalar_prefetch = 0 : i64, scratch_operands = 0 : i64, tpu.core_type = #tpu.core_type<tc>} {
    %c0 = arith.constant 0 : index
    %c0_0 = arith.constant 0 : index
    %0 = vector.load %arg0[%c0, %c0_0] : memref<16x16xf32, #tpu.memory_space<vmem>>, vector<16x16xf32>
    %c0_1 = arith.constant 0 : index
    %c0_2 = arith.constant 0 : index
    %1 = vector.load %arg1[%c0_1, %c0_2] : memref<16x128xf32, #tpu.memory_space<vmem>>, vector<16x128xf32>
    %cst = arith.constant dense<0.000000e+00> : vector<16x128xf32>
    %2 = tpu.matmul %0, %1, %cst {dimension_numbers = #tpu.dot_dimension_numbers<[1], [0], [0], [1], [0, 0, 1, 1], [], []>} : vector<16x16xf32>, vector<16x128xf32>, vector<16x128xf32> -> vector<16x128xf32>
    %c0_3 = arith.constant 0 : index
    %c0_4 = arith.constant 0 : index
    %3 = vector.load %arg2[%c0_3, %c0_4] : memref<1x128xf32, #tpu.memory_space<vmem>>, vector<1x128xf32>
    %4 = vector.broadcast %3 : vector<1x128xf32> to vector<16x128xf32>
    %5 = arith.addf %2, %4 : vector<16x128xf32>
    %c0_5 = arith.constant 0 : index
    %c0_6 = arith.constant 0 : index
    %6 = vector.load %arg3[%c0_5, %c0_6] : memref<32x128xf32, #tpu.memory_space<vmem>>, vector<32x128xf32>
    %c0_7 = arith.constant 0 : index
    %c0_8 = arith.constant 0 : index
    %7 = vector.load %arg4[%c0_7, %c0_8] : memref<32x128xf32, #tpu.memory_space<vmem>>, vector<32x128xf32>
    %c0_9 = arith.constant 0 : index
    %c0_10 = arith.constant 0 : index
    %8 = vector.load %arg5[%c0_9, %c0_10] : memref<32x128xf32, #tpu.memory_space<vmem>>, vector<32x128xf32>
    %c0_11 = arith.constant 0 : index
    %c0_12 = arith.constant 0 : index
    %9 = vector.load %arg6[%c0_11, %c0_12] : memref<1x128xf32, #tpu.memory_space<vmem>>, vector<1x128xf32>
    %c0_13 = arith.constant 0 : index
    %c0_14 = arith.constant 0 : index
    %c0_15 = arith.constant 0 : index
    %10 = vector.load %arg7[%c0_13, %c0_14, %c0_15] : memref<2x2x32xf32, #tpu.memory_space<vmem>>, vector<1x2x32xf32>
    %11 = vector.shape_cast %10 : vector<1x2x32xf32> to vector<2x32xf32>
    %c0_16 = arith.constant 0 : index
    %c0_17 = arith.constant 0 : index
    %c0_18 = arith.constant 0 : index
    %12 = vector.load %arg8[%c0_16, %c0_17, %c0_18] : memref<2x2x32xf32, #tpu.memory_space<vmem>>, vector<1x2x32xf32>
    %13 = vector.shape_cast %12 : vector<1x2x32xf32> to vector<2x32xf32>
    %c1 = arith.constant 1 : index
    %c0_19 = arith.constant 0 : index
    %c0_20 = arith.constant 0 : index
    %14 = vector.load %arg7[%c1, %c0_19, %c0_20] : memref<2x2x32xf32, #tpu.memory_space<vmem>>, vector<1x2x32xf32>
    %15 = vector.shape_cast %14 : vector<1x2x32xf32> to vector<2x32xf32>
    %c1_21 = arith.constant 1 : index
    %c0_22 = arith.constant 0 : index
    %c0_23 = arith.constant 0 : index
    %16 = vector.load %arg8[%c1_21, %c0_22, %c0_23] : memref<2x2x32xf32, #tpu.memory_space<vmem>>, vector<1x2x32xf32>
    %17 = vector.shape_cast %16 : vector<1x2x32xf32> to vector<2x32xf32>
    %18 = vector.extract_strided_slice %5 {offsets = [0, 0], sizes = [2, 128], strides = [1, 1]} : vector<16x128xf32> to vector<2x128xf32>
    %cst_24 = arith.constant dense<0.000000e+00> : vector<2x128xf32>
    %19 = tpu.matmul %11, %6, %cst_24 {dimension_numbers = #tpu.dot_dimension_numbers<[1], [0], [0], [1], [0, 0, 1, 1], [], []>} : vector<2x32xf32>, vector<32x128xf32>, vector<2x128xf32> -> vector<2x128xf32>
    %20 = arith.addf %18, %19 : vector<2x128xf32>
    %21 = arith.negf %20 : vector<2x128xf32>
    %22 = math.exp %21 : vector<2x128xf32>
    %cst_25 = arith.constant 1.000000e+00 : f32
    %23 = vector.broadcast %cst_25 : f32 to vector<2x128xf32>
    %24 = arith.addf %23, %22 : vector<2x128xf32>
    %25 = arith.divf %23, %24 : vector<2x128xf32>
    %26 = math.tanh %20 : vector<2x128xf32>
    %27 = vector.extract_strided_slice %25 {offsets = [0, 0], sizes = [2, 32], strides = [1, 1]} : vector<2x128xf32> to vector<2x32xf32>
    %28 = vector.extract_strided_slice %25 {offsets = [0, 32], sizes = [2, 32], strides = [1, 1]} : vector<2x128xf32> to vector<2x32xf32>
    %29 = vector.extract_strided_slice %26 {offsets = [0, 64], sizes = [2, 32], strides = [1, 1]} : vector<2x128xf32> to vector<2x32xf32>
    %30 = vector.extract_strided_slice %25 {offsets = [0, 96], sizes = [2, 32], strides = [1, 1]} : vector<2x128xf32> to vector<2x32xf32>
    %31 = arith.mulf %28, %13 : vector<2x32xf32>
    %32 = arith.mulf %27, %29 : vector<2x32xf32>
    %33 = arith.addf %31, %32 : vector<2x32xf32>
    %34 = math.tanh %33 : vector<2x32xf32>
    %35 = arith.mulf %30, %34 : vector<2x32xf32>
    %cst_26 = arith.constant dense<0.000000e+00> : vector<2x128xf32>
    %36 = tpu.matmul %35, %7, %cst_26 {dimension_numbers = #tpu.dot_dimension_numbers<[1], [0], [0], [1], [0, 0, 1, 1], [], []>} : vector<2x32xf32>, vector<32x128xf32>, vector<2x128xf32> -> vector<2x128xf32>
    %cst_27 = arith.constant dense<0.000000e+00> : vector<2x128xf32>
    %37 = tpu.matmul %15, %8, %cst_27 {dimension_numbers = #tpu.dot_dimension_numbers<[1], [0], [0], [1], [0, 0, 1, 1], [], []>} : vector<2x32xf32>, vector<32x128xf32>, vector<2x128xf32> -> vector<2x128xf32>
    %38 = arith.addf %36, %37 : vector<2x128xf32>
    %39 = vector.broadcast %9 : vector<1x128xf32> to vector<2x128xf32>
    %40 = arith.addf %38, %39 : vector<2x128xf32>
    %41 = arith.negf %40 : vector<2x128xf32>
    %42 = math.exp %41 : vector<2x128xf32>
    %cst_28 = arith.constant 1.000000e+00 : f32
    %43 = vector.broadcast %cst_28 : f32 to vector<2x128xf32>
    %44 = arith.addf %43, %42 : vector<2x128xf32>
    %45 = arith.divf %43, %44 : vector<2x128xf32>
    %46 = math.tanh %40 : vector<2x128xf32>
    %47 = vector.extract_strided_slice %45 {offsets = [0, 0], sizes = [2, 32], strides = [1, 1]} : vector<2x128xf32> to vector<2x32xf32>
    %48 = vector.extract_strided_slice %45 {offsets = [0, 32], sizes = [2, 32], strides = [1, 1]} : vector<2x128xf32> to vector<2x32xf32>
    %49 = vector.extract_strided_slice %46 {offsets = [0, 64], sizes = [2, 32], strides = [1, 1]} : vector<2x128xf32> to vector<2x32xf32>
    %50 = vector.extract_strided_slice %45 {offsets = [0, 96], sizes = [2, 32], strides = [1, 1]} : vector<2x128xf32> to vector<2x32xf32>
    %51 = arith.mulf %48, %17 : vector<2x32xf32>
    %52 = arith.mulf %47, %49 : vector<2x32xf32>
    %53 = arith.addf %51, %52 : vector<2x32xf32>
    %54 = math.tanh %53 : vector<2x32xf32>
    %55 = arith.mulf %50, %54 : vector<2x32xf32>
    %56 = vector.extract_strided_slice %5 {offsets = [2, 0], sizes = [2, 128], strides = [1, 1]} : vector<16x128xf32> to vector<2x128xf32>
    %cst_29 = arith.constant dense<0.000000e+00> : vector<2x128xf32>
    %57 = tpu.matmul %35, %6, %cst_29 {dimension_numbers = #tpu.dot_dimension_numbers<[1], [0], [0], [1], [0, 0, 1, 1], [], []>} : vector<2x32xf32>, vector<32x128xf32>, vector<2x128xf32> -> vector<2x128xf32>
    %58 = arith.addf %56, %57 : vector<2x128xf32>
    %59 = arith.negf %58 : vector<2x128xf32>
    %60 = math.exp %59 : vector<2x128xf32>
    %cst_30 = arith.constant 1.000000e+00 : f32
    %61 = vector.broadcast %cst_30 : f32 to vector<2x128xf32>
    %62 = arith.addf %61, %60 : vector<2x128xf32>
    %63 = arith.divf %61, %62 : vector<2x128xf32>
    %64 = math.tanh %58 : vector<2x128xf32>
    %65 = vector.extract_strided_slice %63 {offsets = [0, 0], sizes = [2, 32], strides = [1, 1]} : vector<2x128xf32> to vector<2x32xf32>
    %66 = vector.extract_strided_slice %63 {offsets = [0, 32], sizes = [2, 32], strides = [1, 1]} : vector<2x128xf32> to vector<2x32xf32>
    %67 = vector.extract_strided_slice %64 {offsets = [0, 64], sizes = [2, 32], strides = [1, 1]} : vector<2x128xf32> to vector<2x32xf32>
    %68 = vector.extract_strided_slice %63 {offsets = [0, 96], sizes = [2, 32], strides = [1, 1]} : vector<2x128xf32> to vector<2x32xf32>
    %69 = arith.mulf %66, %33 : vector<2x32xf32>
    %70 = arith.mulf %65, %67 : vector<2x32xf32>
    %71 = arith.addf %69, %70 : vector<2x32xf32>
    %72 = math.tanh %71 : vector<2x32xf32>
    %73 = arith.mulf %68, %72 : vector<2x32xf32>
    %cst_31 = arith.constant dense<0.000000e+00> : vector<2x128xf32>
    %74 = tpu.matmul %73, %7, %cst_31 {dimension_numbers = #tpu.dot_dimension_numbers<[1], [0], [0], [1], [0, 0, 1, 1], [], []>} : vector<2x32xf32>, vector<32x128xf32>, vector<2x128xf32> -> vector<2x128xf32>
    %cst_32 = arith.constant dense<0.000000e+00> : vector<2x128xf32>
    %75 = tpu.matmul %55, %8, %cst_32 {dimension_numbers = #tpu.dot_dimension_numbers<[1], [0], [0], [1], [0, 0, 1, 1], [], []>} : vector<2x32xf32>, vector<32x128xf32>, vector<2x128xf32> -> vector<2x128xf32>
    %76 = arith.addf %74, %75 : vector<2x128xf32>
    %77 = vector.broadcast %9 : vector<1x128xf32> to vector<2x128xf32>
    %78 = arith.addf %76, %77 : vector<2x128xf32>
    %79 = arith.negf %78 : vector<2x128xf32>
    %80 = math.exp %79 : vector<2x128xf32>
    %cst_33 = arith.constant 1.000000e+00 : f32
    %81 = vector.broadcast %cst_33 : f32 to vector<2x128xf32>
    %82 = arith.addf %81, %80 : vector<2x128xf32>
    %83 = arith.divf %81, %82 : vector<2x128xf32>
    %84 = math.tanh %78 : vector<2x128xf32>
    %85 = vector.extract_strided_slice %83 {offsets = [0, 0], sizes = [2, 32], strides = [1, 1]} : vector<2x128xf32> to vector<2x32xf32>
    %86 = vector.extract_strided_slice %83 {offsets = [0, 32], sizes = [2, 32], strides = [1, 1]} : vector<2x128xf32> to vector<2x32xf32>
    %87 = vector.extract_strided_slice %84 {offsets = [0, 64], sizes = [2, 32], strides = [1, 1]} : vector<2x128xf32> to vector<2x32xf32>
    %88 = vector.extract_strided_slice %83 {offsets = [0, 96], sizes = [2, 32], strides = [1, 1]} : vector<2x128xf32> to vector<2x32xf32>
    %89 = arith.mulf %86, %53 : vector<2x32xf32>
    %90 = arith.mulf %85, %87 : vector<2x32xf32>
    %91 = arith.addf %89, %90 : vector<2x32xf32>
    %92 = math.tanh %91 : vector<2x32xf32>
    %93 = arith.mulf %88, %92 : vector<2x32xf32>
    %94 = vector.extract_strided_slice %5 {offsets = [4, 0], sizes = [2, 128], strides = [1, 1]} : vector<16x128xf32> to vector<2x128xf32>
    %cst_34 = arith.constant dense<0.000000e+00> : vector<2x128xf32>
    %95 = tpu.matmul %73, %6, %cst_34 {dimension_numbers = #tpu.dot_dimension_numbers<[1], [0], [0], [1], [0, 0, 1, 1], [], []>} : vector<2x32xf32>, vector<32x128xf32>, vector<2x128xf32> -> vector<2x128xf32>
    %96 = arith.addf %94, %95 : vector<2x128xf32>
    %97 = arith.negf %96 : vector<2x128xf32>
    %98 = math.exp %97 : vector<2x128xf32>
    %cst_35 = arith.constant 1.000000e+00 : f32
    %99 = vector.broadcast %cst_35 : f32 to vector<2x128xf32>
    %100 = arith.addf %99, %98 : vector<2x128xf32>
    %101 = arith.divf %99, %100 : vector<2x128xf32>
    %102 = math.tanh %96 : vector<2x128xf32>
    %103 = vector.extract_strided_slice %101 {offsets = [0, 0], sizes = [2, 32], strides = [1, 1]} : vector<2x128xf32> to vector<2x32xf32>
    %104 = vector.extract_strided_slice %101 {offsets = [0, 32], sizes = [2, 32], strides = [1, 1]} : vector<2x128xf32> to vector<2x32xf32>
    %105 = vector.extract_strided_slice %102 {offsets = [0, 64], sizes = [2, 32], strides = [1, 1]} : vector<2x128xf32> to vector<2x32xf32>
    %106 = vector.extract_strided_slice %101 {offsets = [0, 96], sizes = [2, 32], strides = [1, 1]} : vector<2x128xf32> to vector<2x32xf32>
    %107 = arith.mulf %104, %71 : vector<2x32xf32>
    %108 = arith.mulf %103, %105 : vector<2x32xf32>
    %109 = arith.addf %107, %108 : vector<2x32xf32>
    %110 = math.tanh %109 : vector<2x32xf32>
    %111 = arith.mulf %106, %110 : vector<2x32xf32>
    %cst_36 = arith.constant dense<0.000000e+00> : vector<2x128xf32>
    %112 = tpu.matmul %111, %7, %cst_36 {dimension_numbers = #tpu.dot_dimension_numbers<[1], [0], [0], [1], [0, 0, 1, 1], [], []>} : vector<2x32xf32>, vector<32x128xf32>, vector<2x128xf32> -> vector<2x128xf32>
    %cst_37 = arith.constant dense<0.000000e+00> : vector<2x128xf32>
    %113 = tpu.matmul %93, %8, %cst_37 {dimension_numbers = #tpu.dot_dimension_numbers<[1], [0], [0], [1], [0, 0, 1, 1], [], []>} : vector<2x32xf32>, vector<32x128xf32>, vector<2x128xf32> -> vector<2x128xf32>
    %114 = arith.addf %112, %113 : vector<2x128xf32>
    %115 = vector.broadcast %9 : vector<1x128xf32> to vector<2x128xf32>
    %116 = arith.addf %114, %115 : vector<2x128xf32>
    %117 = arith.negf %116 : vector<2x128xf32>
    %118 = math.exp %117 : vector<2x128xf32>
    %cst_38 = arith.constant 1.000000e+00 : f32
    %119 = vector.broadcast %cst_38 : f32 to vector<2x128xf32>
    %120 = arith.addf %119, %118 : vector<2x128xf32>
    %121 = arith.divf %119, %120 : vector<2x128xf32>
    %122 = math.tanh %116 : vector<2x128xf32>
    %123 = vector.extract_strided_slice %121 {offsets = [0, 0], sizes = [2, 32], strides = [1, 1]} : vector<2x128xf32> to vector<2x32xf32>
    %124 = vector.extract_strided_slice %121 {offsets = [0, 32], sizes = [2, 32], strides = [1, 1]} : vector<2x128xf32> to vector<2x32xf32>
    %125 = vector.extract_strided_slice %122 {offsets = [0, 64], sizes = [2, 32], strides = [1, 1]} : vector<2x128xf32> to vector<2x32xf32>
    %126 = vector.extract_strided_slice %121 {offsets = [0, 96], sizes = [2, 32], strides = [1, 1]} : vector<2x128xf32> to vector<2x32xf32>
    %127 = arith.mulf %124, %91 : vector<2x32xf32>
    %128 = arith.mulf %123, %125 : vector<2x32xf32>
    %129 = arith.addf %127, %128 : vector<2x32xf32>
    %130 = math.tanh %129 : vector<2x32xf32>
    %131 = arith.mulf %126, %130 : vector<2x32xf32>
    %132 = vector.extract_strided_slice %5 {offsets = [6, 0], sizes = [2, 128], strides = [1, 1]} : vector<16x128xf32> to vector<2x128xf32>
    %cst_39 = arith.constant dense<0.000000e+00> : vector<2x128xf32>
    %133 = tpu.matmul %111, %6, %cst_39 {dimension_numbers = #tpu.dot_dimension_numbers<[1], [0], [0], [1], [0, 0, 1, 1], [], []>} : vector<2x32xf32>, vector<32x128xf32>, vector<2x128xf32> -> vector<2x128xf32>
    %134 = arith.addf %132, %133 : vector<2x128xf32>
    %135 = arith.negf %134 : vector<2x128xf32>
    %136 = math.exp %135 : vector<2x128xf32>
    %cst_40 = arith.constant 1.000000e+00 : f32
    %137 = vector.broadcast %cst_40 : f32 to vector<2x128xf32>
    %138 = arith.addf %137, %136 : vector<2x128xf32>
    %139 = arith.divf %137, %138 : vector<2x128xf32>
    %140 = math.tanh %134 : vector<2x128xf32>
    %141 = vector.extract_strided_slice %139 {offsets = [0, 0], sizes = [2, 32], strides = [1, 1]} : vector<2x128xf32> to vector<2x32xf32>
    %142 = vector.extract_strided_slice %139 {offsets = [0, 32], sizes = [2, 32], strides = [1, 1]} : vector<2x128xf32> to vector<2x32xf32>
    %143 = vector.extract_strided_slice %140 {offsets = [0, 64], sizes = [2, 32], strides = [1, 1]} : vector<2x128xf32> to vector<2x32xf32>
    %144 = vector.extract_strided_slice %139 {offsets = [0, 96], sizes = [2, 32], strides = [1, 1]} : vector<2x128xf32> to vector<2x32xf32>
    %145 = arith.mulf %142, %109 : vector<2x32xf32>
    %146 = arith.mulf %141, %143 : vector<2x32xf32>
    %147 = arith.addf %145, %146 : vector<2x32xf32>
    %148 = math.tanh %147 : vector<2x32xf32>
    %149 = arith.mulf %144, %148 : vector<2x32xf32>
    %cst_41 = arith.constant dense<0.000000e+00> : vector<2x128xf32>
    %150 = tpu.matmul %149, %7, %cst_41 {dimension_numbers = #tpu.dot_dimension_numbers<[1], [0], [0], [1], [0, 0, 1, 1], [], []>} : vector<2x32xf32>, vector<32x128xf32>, vector<2x128xf32> -> vector<2x128xf32>
    %cst_42 = arith.constant dense<0.000000e+00> : vector<2x128xf32>
    %151 = tpu.matmul %131, %8, %cst_42 {dimension_numbers = #tpu.dot_dimension_numbers<[1], [0], [0], [1], [0, 0, 1, 1], [], []>} : vector<2x32xf32>, vector<32x128xf32>, vector<2x128xf32> -> vector<2x128xf32>
    %152 = arith.addf %150, %151 : vector<2x128xf32>
    %153 = vector.broadcast %9 : vector<1x128xf32> to vector<2x128xf32>
    %154 = arith.addf %152, %153 : vector<2x128xf32>
    %155 = arith.negf %154 : vector<2x128xf32>
    %156 = math.exp %155 : vector<2x128xf32>
    %cst_43 = arith.constant 1.000000e+00 : f32
    %157 = vector.broadcast %cst_43 : f32 to vector<2x128xf32>
    %158 = arith.addf %157, %156 : vector<2x128xf32>
    %159 = arith.divf %157, %158 : vector<2x128xf32>
    %160 = math.tanh %154 : vector<2x128xf32>
    %161 = vector.extract_strided_slice %159 {offsets = [0, 0], sizes = [2, 32], strides = [1, 1]} : vector<2x128xf32> to vector<2x32xf32>
    %162 = vector.extract_strided_slice %159 {offsets = [0, 32], sizes = [2, 32], strides = [1, 1]} : vector<2x128xf32> to vector<2x32xf32>
    %163 = vector.extract_strided_slice %160 {offsets = [0, 64], sizes = [2, 32], strides = [1, 1]} : vector<2x128xf32> to vector<2x32xf32>
    %164 = vector.extract_strided_slice %159 {offsets = [0, 96], sizes = [2, 32], strides = [1, 1]} : vector<2x128xf32> to vector<2x32xf32>
    %165 = arith.mulf %162, %129 : vector<2x32xf32>
    %166 = arith.mulf %161, %163 : vector<2x32xf32>
    %167 = arith.addf %165, %166 : vector<2x32xf32>
    %168 = math.tanh %167 : vector<2x32xf32>
    %169 = arith.mulf %164, %168 : vector<2x32xf32>
    %170 = vector.extract_strided_slice %5 {offsets = [8, 0], sizes = [2, 128], strides = [1, 1]} : vector<16x128xf32> to vector<2x128xf32>
    %cst_44 = arith.constant dense<0.000000e+00> : vector<2x128xf32>
    %171 = tpu.matmul %149, %6, %cst_44 {dimension_numbers = #tpu.dot_dimension_numbers<[1], [0], [0], [1], [0, 0, 1, 1], [], []>} : vector<2x32xf32>, vector<32x128xf32>, vector<2x128xf32> -> vector<2x128xf32>
    %172 = arith.addf %170, %171 : vector<2x128xf32>
    %173 = arith.negf %172 : vector<2x128xf32>
    %174 = math.exp %173 : vector<2x128xf32>
    %cst_45 = arith.constant 1.000000e+00 : f32
    %175 = vector.broadcast %cst_45 : f32 to vector<2x128xf32>
    %176 = arith.addf %175, %174 : vector<2x128xf32>
    %177 = arith.divf %175, %176 : vector<2x128xf32>
    %178 = math.tanh %172 : vector<2x128xf32>
    %179 = vector.extract_strided_slice %177 {offsets = [0, 0], sizes = [2, 32], strides = [1, 1]} : vector<2x128xf32> to vector<2x32xf32>
    %180 = vector.extract_strided_slice %177 {offsets = [0, 32], sizes = [2, 32], strides = [1, 1]} : vector<2x128xf32> to vector<2x32xf32>
    %181 = vector.extract_strided_slice %178 {offsets = [0, 64], sizes = [2, 32], strides = [1, 1]} : vector<2x128xf32> to vector<2x32xf32>
    %182 = vector.extract_strided_slice %177 {offsets = [0, 96], sizes = [2, 32], strides = [1, 1]} : vector<2x128xf32> to vector<2x32xf32>
    %183 = arith.mulf %180, %147 : vector<2x32xf32>
    %184 = arith.mulf %179, %181 : vector<2x32xf32>
    %185 = arith.addf %183, %184 : vector<2x32xf32>
    %186 = math.tanh %185 : vector<2x32xf32>
    %187 = arith.mulf %182, %186 : vector<2x32xf32>
    %cst_46 = arith.constant dense<0.000000e+00> : vector<2x128xf32>
    %188 = tpu.matmul %187, %7, %cst_46 {dimension_numbers = #tpu.dot_dimension_numbers<[1], [0], [0], [1], [0, 0, 1, 1], [], []>} : vector<2x32xf32>, vector<32x128xf32>, vector<2x128xf32> -> vector<2x128xf32>
    %cst_47 = arith.constant dense<0.000000e+00> : vector<2x128xf32>
    %189 = tpu.matmul %169, %8, %cst_47 {dimension_numbers = #tpu.dot_dimension_numbers<[1], [0], [0], [1], [0, 0, 1, 1], [], []>} : vector<2x32xf32>, vector<32x128xf32>, vector<2x128xf32> -> vector<2x128xf32>
    %190 = arith.addf %188, %189 : vector<2x128xf32>
    %191 = vector.broadcast %9 : vector<1x128xf32> to vector<2x128xf32>
    %192 = arith.addf %190, %191 : vector<2x128xf32>
    %193 = arith.negf %192 : vector<2x128xf32>
    %194 = math.exp %193 : vector<2x128xf32>
    %cst_48 = arith.constant 1.000000e+00 : f32
    %195 = vector.broadcast %cst_48 : f32 to vector<2x128xf32>
    %196 = arith.addf %195, %194 : vector<2x128xf32>
    %197 = arith.divf %195, %196 : vector<2x128xf32>
    %198 = math.tanh %192 : vector<2x128xf32>
    %199 = vector.extract_strided_slice %197 {offsets = [0, 0], sizes = [2, 32], strides = [1, 1]} : vector<2x128xf32> to vector<2x32xf32>
    %200 = vector.extract_strided_slice %197 {offsets = [0, 32], sizes = [2, 32], strides = [1, 1]} : vector<2x128xf32> to vector<2x32xf32>
    %201 = vector.extract_strided_slice %198 {offsets = [0, 64], sizes = [2, 32], strides = [1, 1]} : vector<2x128xf32> to vector<2x32xf32>
    %202 = vector.extract_strided_slice %197 {offsets = [0, 96], sizes = [2, 32], strides = [1, 1]} : vector<2x128xf32> to vector<2x32xf32>
    %203 = arith.mulf %200, %167 : vector<2x32xf32>
    %204 = arith.mulf %199, %201 : vector<2x32xf32>
    %205 = arith.addf %203, %204 : vector<2x32xf32>
    %206 = math.tanh %205 : vector<2x32xf32>
    %207 = arith.mulf %202, %206 : vector<2x32xf32>
    %208 = vector.extract_strided_slice %5 {offsets = [10, 0], sizes = [2, 128], strides = [1, 1]} : vector<16x128xf32> to vector<2x128xf32>
    %cst_49 = arith.constant dense<0.000000e+00> : vector<2x128xf32>
    %209 = tpu.matmul %187, %6, %cst_49 {dimension_numbers = #tpu.dot_dimension_numbers<[1], [0], [0], [1], [0, 0, 1, 1], [], []>} : vector<2x32xf32>, vector<32x128xf32>, vector<2x128xf32> -> vector<2x128xf32>
    %210 = arith.addf %208, %209 : vector<2x128xf32>
    %211 = arith.negf %210 : vector<2x128xf32>
    %212 = math.exp %211 : vector<2x128xf32>
    %cst_50 = arith.constant 1.000000e+00 : f32
    %213 = vector.broadcast %cst_50 : f32 to vector<2x128xf32>
    %214 = arith.addf %213, %212 : vector<2x128xf32>
    %215 = arith.divf %213, %214 : vector<2x128xf32>
    %216 = math.tanh %210 : vector<2x128xf32>
    %217 = vector.extract_strided_slice %215 {offsets = [0, 0], sizes = [2, 32], strides = [1, 1]} : vector<2x128xf32> to vector<2x32xf32>
    %218 = vector.extract_strided_slice %215 {offsets = [0, 32], sizes = [2, 32], strides = [1, 1]} : vector<2x128xf32> to vector<2x32xf32>
    %219 = vector.extract_strided_slice %216 {offsets = [0, 64], sizes = [2, 32], strides = [1, 1]} : vector<2x128xf32> to vector<2x32xf32>
    %220 = vector.extract_strided_slice %215 {offsets = [0, 96], sizes = [2, 32], strides = [1, 1]} : vector<2x128xf32> to vector<2x32xf32>
    %221 = arith.mulf %218, %185 : vector<2x32xf32>
    %222 = arith.mulf %217, %219 : vector<2x32xf32>
    %223 = arith.addf %221, %222 : vector<2x32xf32>
    %224 = math.tanh %223 : vector<2x32xf32>
    %225 = arith.mulf %220, %224 : vector<2x32xf32>
    %cst_51 = arith.constant dense<0.000000e+00> : vector<2x128xf32>
    %226 = tpu.matmul %225, %7, %cst_51 {dimension_numbers = #tpu.dot_dimension_numbers<[1], [0], [0], [1], [0, 0, 1, 1], [], []>} : vector<2x32xf32>, vector<32x128xf32>, vector<2x128xf32> -> vector<2x128xf32>
    %cst_52 = arith.constant dense<0.000000e+00> : vector<2x128xf32>
    %227 = tpu.matmul %207, %8, %cst_52 {dimension_numbers = #tpu.dot_dimension_numbers<[1], [0], [0], [1], [0, 0, 1, 1], [], []>} : vector<2x32xf32>, vector<32x128xf32>, vector<2x128xf32> -> vector<2x128xf32>
    %228 = arith.addf %226, %227 : vector<2x128xf32>
    %229 = vector.broadcast %9 : vector<1x128xf32> to vector<2x128xf32>
    %230 = arith.addf %228, %229 : vector<2x128xf32>
    %231 = arith.negf %230 : vector<2x128xf32>
    %232 = math.exp %231 : vector<2x128xf32>
    %cst_53 = arith.constant 1.000000e+00 : f32
    %233 = vector.broadcast %cst_53 : f32 to vector<2x128xf32>
    %234 = arith.addf %233, %232 : vector<2x128xf32>
    %235 = arith.divf %233, %234 : vector<2x128xf32>
    %236 = math.tanh %230 : vector<2x128xf32>
    %237 = vector.extract_strided_slice %235 {offsets = [0, 0], sizes = [2, 32], strides = [1, 1]} : vector<2x128xf32> to vector<2x32xf32>
    %238 = vector.extract_strided_slice %235 {offsets = [0, 32], sizes = [2, 32], strides = [1, 1]} : vector<2x128xf32> to vector<2x32xf32>
    %239 = vector.extract_strided_slice %236 {offsets = [0, 64], sizes = [2, 32], strides = [1, 1]} : vector<2x128xf32> to vector<2x32xf32>
    %240 = vector.extract_strided_slice %235 {offsets = [0, 96], sizes = [2, 32], strides = [1, 1]} : vector<2x128xf32> to vector<2x32xf32>
    %241 = arith.mulf %238, %205 : vector<2x32xf32>
    %242 = arith.mulf %237, %239 : vector<2x32xf32>
    %243 = arith.addf %241, %242 : vector<2x32xf32>
    %244 = math.tanh %243 : vector<2x32xf32>
    %245 = arith.mulf %240, %244 : vector<2x32xf32>
    %246 = vector.extract_strided_slice %5 {offsets = [12, 0], sizes = [2, 128], strides = [1, 1]} : vector<16x128xf32> to vector<2x128xf32>
    %cst_54 = arith.constant dense<0.000000e+00> : vector<2x128xf32>
    %247 = tpu.matmul %225, %6, %cst_54 {dimension_numbers = #tpu.dot_dimension_numbers<[1], [0], [0], [1], [0, 0, 1, 1], [], []>} : vector<2x32xf32>, vector<32x128xf32>, vector<2x128xf32> -> vector<2x128xf32>
    %248 = arith.addf %246, %247 : vector<2x128xf32>
    %249 = arith.negf %248 : vector<2x128xf32>
    %250 = math.exp %249 : vector<2x128xf32>
    %cst_55 = arith.constant 1.000000e+00 : f32
    %251 = vector.broadcast %cst_55 : f32 to vector<2x128xf32>
    %252 = arith.addf %251, %250 : vector<2x128xf32>
    %253 = arith.divf %251, %252 : vector<2x128xf32>
    %254 = math.tanh %248 : vector<2x128xf32>
    %255 = vector.extract_strided_slice %253 {offsets = [0, 0], sizes = [2, 32], strides = [1, 1]} : vector<2x128xf32> to vector<2x32xf32>
    %256 = vector.extract_strided_slice %253 {offsets = [0, 32], sizes = [2, 32], strides = [1, 1]} : vector<2x128xf32> to vector<2x32xf32>
    %257 = vector.extract_strided_slice %254 {offsets = [0, 64], sizes = [2, 32], strides = [1, 1]} : vector<2x128xf32> to vector<2x32xf32>
    %258 = vector.extract_strided_slice %253 {offsets = [0, 96], sizes = [2, 32], strides = [1, 1]} : vector<2x128xf32> to vector<2x32xf32>
    %259 = arith.mulf %256, %223 : vector<2x32xf32>
    %260 = arith.mulf %255, %257 : vector<2x32xf32>
    %261 = arith.addf %259, %260 : vector<2x32xf32>
    %262 = math.tanh %261 : vector<2x32xf32>
    %263 = arith.mulf %258, %262 : vector<2x32xf32>
    %cst_56 = arith.constant dense<0.000000e+00> : vector<2x128xf32>
    %264 = tpu.matmul %263, %7, %cst_56 {dimension_numbers = #tpu.dot_dimension_numbers<[1], [0], [0], [1], [0, 0, 1, 1], [], []>} : vector<2x32xf32>, vector<32x128xf32>, vector<2x128xf32> -> vector<2x128xf32>
    %cst_57 = arith.constant dense<0.000000e+00> : vector<2x128xf32>
    %265 = tpu.matmul %245, %8, %cst_57 {dimension_numbers = #tpu.dot_dimension_numbers<[1], [0], [0], [1], [0, 0, 1, 1], [], []>} : vector<2x32xf32>, vector<32x128xf32>, vector<2x128xf32> -> vector<2x128xf32>
    %266 = arith.addf %264, %265 : vector<2x128xf32>
    %267 = vector.broadcast %9 : vector<1x128xf32> to vector<2x128xf32>
    %268 = arith.addf %266, %267 : vector<2x128xf32>
    %269 = arith.negf %268 : vector<2x128xf32>
    %270 = math.exp %269 : vector<2x128xf32>
    %cst_58 = arith.constant 1.000000e+00 : f32
    %271 = vector.broadcast %cst_58 : f32 to vector<2x128xf32>
    %272 = arith.addf %271, %270 : vector<2x128xf32>
    %273 = arith.divf %271, %272 : vector<2x128xf32>
    %274 = math.tanh %268 : vector<2x128xf32>
    %275 = vector.extract_strided_slice %273 {offsets = [0, 0], sizes = [2, 32], strides = [1, 1]} : vector<2x128xf32> to vector<2x32xf32>
    %276 = vector.extract_strided_slice %273 {offsets = [0, 32], sizes = [2, 32], strides = [1, 1]} : vector<2x128xf32> to vector<2x32xf32>
    %277 = vector.extract_strided_slice %274 {offsets = [0, 64], sizes = [2, 32], strides = [1, 1]} : vector<2x128xf32> to vector<2x32xf32>
    %278 = vector.extract_strided_slice %273 {offsets = [0, 96], sizes = [2, 32], strides = [1, 1]} : vector<2x128xf32> to vector<2x32xf32>
    %279 = arith.mulf %276, %243 : vector<2x32xf32>
    %280 = arith.mulf %275, %277 : vector<2x32xf32>
    %281 = arith.addf %279, %280 : vector<2x32xf32>
    %282 = math.tanh %281 : vector<2x32xf32>
    %283 = arith.mulf %278, %282 : vector<2x32xf32>
    %284 = vector.extract_strided_slice %5 {offsets = [14, 0], sizes = [2, 128], strides = [1, 1]} : vector<16x128xf32> to vector<2x128xf32>
    %cst_59 = arith.constant dense<0.000000e+00> : vector<2x128xf32>
    %285 = tpu.matmul %263, %6, %cst_59 {dimension_numbers = #tpu.dot_dimension_numbers<[1], [0], [0], [1], [0, 0, 1, 1], [], []>} : vector<2x32xf32>, vector<32x128xf32>, vector<2x128xf32> -> vector<2x128xf32>
    %286 = arith.addf %284, %285 : vector<2x128xf32>
    %287 = arith.negf %286 : vector<2x128xf32>
    %288 = math.exp %287 : vector<2x128xf32>
    %cst_60 = arith.constant 1.000000e+00 : f32
    %289 = vector.broadcast %cst_60 : f32 to vector<2x128xf32>
    %290 = arith.addf %289, %288 : vector<2x128xf32>
    %291 = arith.divf %289, %290 : vector<2x128xf32>
    %292 = math.tanh %286 : vector<2x128xf32>
    %293 = vector.extract_strided_slice %291 {offsets = [0, 0], sizes = [2, 32], strides = [1, 1]} : vector<2x128xf32> to vector<2x32xf32>
    %294 = vector.extract_strided_slice %291 {offsets = [0, 32], sizes = [2, 32], strides = [1, 1]} : vector<2x128xf32> to vector<2x32xf32>
    %295 = vector.extract_strided_slice %292 {offsets = [0, 64], sizes = [2, 32], strides = [1, 1]} : vector<2x128xf32> to vector<2x32xf32>
    %296 = vector.extract_strided_slice %291 {offsets = [0, 96], sizes = [2, 32], strides = [1, 1]} : vector<2x128xf32> to vector<2x32xf32>
    %297 = arith.mulf %294, %261 : vector<2x32xf32>
    %298 = arith.mulf %293, %295 : vector<2x32xf32>
    %299 = arith.addf %297, %298 : vector<2x32xf32>
    %300 = math.tanh %299 : vector<2x32xf32>
    %301 = arith.mulf %296, %300 : vector<2x32xf32>
    %cst_61 = arith.constant dense<0.000000e+00> : vector<2x128xf32>
    %302 = tpu.matmul %301, %7, %cst_61 {dimension_numbers = #tpu.dot_dimension_numbers<[1], [0], [0], [1], [0, 0, 1, 1], [], []>} : vector<2x32xf32>, vector<32x128xf32>, vector<2x128xf32> -> vector<2x128xf32>
    %cst_62 = arith.constant dense<0.000000e+00> : vector<2x128xf32>
    %303 = tpu.matmul %283, %8, %cst_62 {dimension_numbers = #tpu.dot_dimension_numbers<[1], [0], [0], [1], [0, 0, 1, 1], [], []>} : vector<2x32xf32>, vector<32x128xf32>, vector<2x128xf32> -> vector<2x128xf32>
    %304 = arith.addf %302, %303 : vector<2x128xf32>
    %305 = vector.broadcast %9 : vector<1x128xf32> to vector<2x128xf32>
    %306 = arith.addf %304, %305 : vector<2x128xf32>
    %307 = arith.negf %306 : vector<2x128xf32>
    %308 = math.exp %307 : vector<2x128xf32>
    %cst_63 = arith.constant 1.000000e+00 : f32
    %309 = vector.broadcast %cst_63 : f32 to vector<2x128xf32>
    %310 = arith.addf %309, %308 : vector<2x128xf32>
    %311 = arith.divf %309, %310 : vector<2x128xf32>
    %312 = math.tanh %306 : vector<2x128xf32>
    %313 = vector.extract_strided_slice %311 {offsets = [0, 0], sizes = [2, 32], strides = [1, 1]} : vector<2x128xf32> to vector<2x32xf32>
    %314 = vector.extract_strided_slice %311 {offsets = [0, 32], sizes = [2, 32], strides = [1, 1]} : vector<2x128xf32> to vector<2x32xf32>
    %315 = vector.extract_strided_slice %312 {offsets = [0, 64], sizes = [2, 32], strides = [1, 1]} : vector<2x128xf32> to vector<2x32xf32>
    %316 = vector.extract_strided_slice %311 {offsets = [0, 96], sizes = [2, 32], strides = [1, 1]} : vector<2x128xf32> to vector<2x32xf32>
    %317 = arith.mulf %314, %281 : vector<2x32xf32>
    %318 = arith.mulf %313, %315 : vector<2x32xf32>
    %319 = arith.addf %317, %318 : vector<2x32xf32>
    %320 = math.tanh %319 : vector<2x32xf32>
    %321 = arith.mulf %316, %320 : vector<2x32xf32>
    %c0_64 = arith.constant 0 : index
    %c0_65 = arith.constant 0 : index
    %322 = vector.load %arg9[%c0_64, %c0_65] : memref<32x64xf32, #tpu.memory_space<vmem>>, vector<32x64xf32>
    %cst_66 = arith.constant dense<0.000000e+00> : vector<2x64xf32>
    %323 = tpu.matmul %321, %322, %cst_66 {dimension_numbers = #tpu.dot_dimension_numbers<[1], [0], [0], [1], [0, 0, 1, 1], [], []>} : vector<2x32xf32>, vector<32x64xf32>, vector<2x64xf32> -> vector<2x64xf32>
    %c0_67 = arith.constant 0 : index
    %c0_68 = arith.constant 0 : index
    %324 = vector.load %arg10[%c0_67, %c0_68] : memref<1x64xf32, #tpu.memory_space<vmem>>, vector<1x64xf32>
    %325 = vector.broadcast %324 : vector<1x64xf32> to vector<2x64xf32>
    %326 = arith.addf %323, %325 : vector<2x64xf32>
    %cst_69 = arith.constant 0.000000e+00 : f32
    %327 = vector.broadcast %cst_69 : f32 to vector<2x64xf32>
    %328 = arith.maximumf %326, %327 : vector<2x64xf32>
    %c0_70 = arith.constant 0 : index
    %c0_71 = arith.constant 0 : index
    %329 = vector.load %arg11[%c0_70, %c0_71] : memref<64x128xf32, #tpu.memory_space<vmem>>, vector<64x128xf32>
    %cst_72 = arith.constant dense<0.000000e+00> : vector<2x128xf32>
    %330 = tpu.matmul %328, %329, %cst_72 {dimension_numbers = #tpu.dot_dimension_numbers<[1], [0], [0], [1], [0, 0, 1, 1], [], []>} : vector<2x64xf32>, vector<64x128xf32>, vector<2x128xf32> -> vector<2x128xf32>
    %c0_73 = arith.constant 0 : index
    %c0_74 = arith.constant 0 : index
    %331 = vector.load %arg12[%c0_73, %c0_74] : memref<1x128xf32, #tpu.memory_space<vmem>>, vector<1x128xf32>
    %332 = vector.broadcast %331 : vector<1x128xf32> to vector<2x128xf32>
    %333 = arith.addf %330, %332 : vector<2x128xf32>
    %334 = arith.negf %333 : vector<2x128xf32>
    %335 = math.exp %334 : vector<2x128xf32>
    %cst_75 = arith.constant 1.000000e+00 : f32
    %336 = vector.broadcast %cst_75 : f32 to vector<2x128xf32>
    %337 = arith.addf %336, %335 : vector<2x128xf32>
    %338 = arith.divf %336, %337 : vector<2x128xf32>
    %c0_76 = arith.constant 0 : index
    %c0_77 = arith.constant 0 : index
    %339 = vector.load %arg13[%c0_76, %c0_77] : memref<2x128xf32, #tpu.memory_space<vmem>>, vector<2x128xf32>
    tpu.vector_store %arg13[%c0_76, %c0_77], %338 {strides = array<i32>} : memref<2x128xf32, #tpu.memory_space<vmem>>, vector<2x128xf32>,
    return
  }
}

</mosaic_0001>

<llo_original>
// kernel: tpu_custom_call.1
$region0: #{tpu_custom_call.1}
  #allocation0 [shape = 'u32[]', space=smem, size = 0x4, offset = 0x4, fixed_abs, tag = 'smem constant byte address 0x4 - core index']
  #allocation1 [shape = 'u32[144,128]{1,0:T(1,128)}', space=vmem, size = 0x12000, scoped, tag = 'internal scratch']
  %s0 = inlined_call_operand.hbm [shape: f32[16,16], index: 0, kind: input, shape index: {}]
  %s1 = inlined_call_operand.hbm [shape: f32[16,128], index: 1, kind: input, shape index: {}]
  %s2 = inlined_call_operand.vmem [shape: f32[1,128], index: 2, kind: input, shape index: {}]
  %s3 = inlined_call_operand.hbm [shape: f32[32,128], index: 3, kind: input, shape index: {}]
  %s4 = inlined_call_operand.hbm [shape: f32[32,128], index: 4, kind: input, shape index: {}]
  %s5 = inlined_call_operand.hbm [shape: f32[32,128], index: 5, kind: input, shape index: {}]
  %s6 = inlined_call_operand.vmem [shape: f32[1,128], index: 6, kind: input, shape index: {}]
  %s7 = inlined_call_operand.hbm [shape: f32[2,2,32], index: 7, kind: input, shape index: {}]
  %s8 = inlined_call_operand.hbm [shape: f32[2,2,32], index: 8, kind: input, shape index: {}]
  %s9 = inlined_call_operand.vmem [shape: f32[32,64], index: 9, kind: input, shape index: {}]
  %s10 = inlined_call_operand.vmem [shape: f32[1,64], index: 10, kind: input, shape index: {}]
  %s11 = inlined_call_operand.hbm [shape: f32[64,128], index: 11, kind: input, shape index: {}]
  %s12 = inlined_call_operand.vmem [shape: f32[1,128], index: 12, kind: input, shape index: {}]
  %s13 = inlined_call_operand.hbm [shape: f32[2,128], index: 13, kind: output, shape index: {}]
  %s14 = sld [smem:[#allocation0]]
  $region94: #{tpu_custom_call.1} parent=0
    _
  %s16 = ssub.s32 1, %s14
  %s17 = scalar_select 0, %s16, %s14
  $region1: #{tpu_custom_call.1} parent=0
    #allocation2 [shape = 'u8[8192]{0}', space=vmem, size = 0x2000, scoped, tag = 'input window, operand 0, single buffered']
    #allocation3 [shape = 's32[1]{0}', space=sflag, size = 0x4, scoped, tag = 'scoped memory for tpu_custom_call.1']
    #allocation4 [shape = 's32[1]{0}', space=sflag, size = 0x4, scoped, tag = 'scoped memory for tpu_custom_call.1']
    #allocation5 [shape = 'u8[8192]{0}', space=vmem, size = 0x2000, scoped, tag = 'input window, operand 1, single buffered']
    #allocation6 [shape = 's32[1]{0}', space=sflag, size = 0x4, scoped, tag = 'scoped memory for tpu_custom_call.1']
    #allocation7 [shape = 'u8[16384]{0}', space=vmem, size = 0x4000, scoped, tag = 'input window, operand 3, single buffered']
    #allocation8 [shape = 'u8[16384]{0}', space=vmem, size = 0x4000, scoped, tag = 'input window, operand 4, single buffered']
    #allocation9 [shape = 's32[1]{0}', space=sflag, size = 0x4, scoped, tag = 'scoped memory for tpu_custom_call.1']
    #allocation10 [shape = 'u8[16384]{0}', space=vmem, size = 0x4000, scoped, tag = 'input window, operand 5, single buffered']
    #allocation11 [shape = 'u8[2048]{0}', space=vmem, size = 0x800, scoped, tag = 'input window, operand 7, single buffered']
    #allocation12 [shape = 's32[1]{0}', space=sflag, size = 0x4, scoped, tag = 'scoped memory for tpu_custom_call.1']
    #allocation13 [shape = 'u8[2048]{0}', space=vmem, size = 0x800, scoped, tag = 'input window, operand 8, single buffered']
    #allocation14 [shape = 'u8[32768]{0}', space=vmem, size = 0x8000, scoped, tag = 'input window, operand 11, single buffered']
    #allocation15 [shape = 's32[1]{0}', space=sflag, size = 0x4, scoped, tag = 'scoped memory for tpu_custom_call.1']
    #allocation16 [shape = 'u8[1024]{0}', space=vmem, size = 0x400, scoped, tag = 'output window, operand 0, single buffered']
    %18 = vsyncpa [#allocation3], 0
    %19 = vsyncpa [#allocation6], 0
    %20 = vsyncpa [#allocation9], 0
    %21 = vsyncpa [#allocation12], 0
    %22 = vsyncpa [#allocation15], 0
    %23 = vsyncpa [#allocation4], 0
    // Predicated region
    $region2: #{tpu_custom_call.1} parent=1 // pred_check
      _
    $region3: #{tpu_custom_call.1} parent=1 // pred_check_branch
      %25 = sbr.rel (0) target = $region5
    $region4: #{tpu_custom_call.1} parent=1 // pred_region
      %s27 = ssub.s32 256, 256
      %28 = vsyncadd [#allocation3], %s27
      %s29 = sshll.u32 [#allocation2], 4
      %s30 = int_to_ptr.vmem [resolvable:$true] %s29
      %35 = dma.hbm_to_vmem [thread:$0]  %s0, 256, %s30, [#allocation3], 128, 128, 8
    $region5: #{tpu_custom_call.1} parent=1 // pred_fallthru
      _
    // Predicated region
    $region6: #{tpu_custom_call.1} parent=1 // pred_check
      _
    $region7: #{tpu_custom_call.1} parent=1 // pred_check_branch
      %37 = sbr.rel (0) target = $region9
    $region8: #{tpu_custom_call.1} parent=1 // pred_region
      %s39 = ssub.s32 256, 256
      %40 = vsyncadd [#allocation6], %s39
      %s41 = sshll.u32 [#allocation5], 4
      %s42 = int_to_ptr.vmem [resolvable:$true] %s41
      %47 = dma.hbm_to_vmem [thread:$0]  %s1, 256, %s42, [#allocation6], 128, 128, 8
    $region9: #{tpu_custom_call.1} parent=1 // pred_fallthru
      _
    // Predicated region
    $region10: #{tpu_custom_call.1} parent=1 // pred_check
      _
    $region11: #{tpu_custom_call.1} parent=1 // pred_check_branch
      %49 = sbr.rel (0) target = $region13
    $region12: #{tpu_custom_call.1} parent=1 // pred_region
      _
    $region13: #{tpu_custom_call.1} parent=1 // pred_fallthru
      _
    // Predicated region
    $region14: #{tpu_custom_call.1} parent=1 // pred_check
      _
    $region15: #{tpu_custom_call.1} parent=1 // pred_check_branch
      %51 = sbr.rel (0) target = $region17
    $region16: #{tpu_custom_call.1} parent=1 // pred_region
      %s53 = ssub.s32 512, 512
      %54 = vsyncadd [#allocation6], %s53
      %s55 = sshll.u32 [#allocation7], 4
      %s56 = int_to_ptr.vmem [resolvable:$true] %s55
      %61 = dma.hbm_to_vmem [thread:$0]  %s3, 512, %s56, [#allocation6], 128, 128, 8
    $region17: #{tpu_custom_call.1} parent=1 // pred_fallthru
      _
    // Predicated region
    $region18: #{tpu_custom_call.1} parent=1 // pred_check
      _
    $region19: #{tpu_custom_call.1} parent=1 // pred_check_branch
      %63 = sbr.rel (0) target = $region21
    $region20: #{tpu_custom_call.1} parent=1 // pred_region
      %s65 = ssub.s32 512, 512
      %66 = vsyncadd [#allocation9], %s65
      %s67 = sshll.u32 [#allocation8], 4
      %s68 = int_to_ptr.vmem [resolvable:$true] %s67
      %73 = dma.hbm_to_vmem [thread:$0]  %s4, 512, %s68, [#allocation9], 128, 128, 8
    $region21: #{tpu_custom_call.1} parent=1 // pred_fallthru
      _
    // Predicated region
    $region22: #{tpu_custom_call.1} parent=1 // pred_check
      _
    $region23: #{tpu_custom_call.1} parent=1 // pred_check_branch
      %75 = sbr.rel (0) target = $region25
    $region24: #{tpu_custom_call.1} parent=1 // pred_region
      %s77 = ssub.s32 512, 512
      %78 = vsyncadd [#allocation9], %s77
      %s79 = sshll.u32 [#allocation10], 4
      %s80 = int_to_ptr.vmem [resolvable:$true] %s79
      %85 = dma.hbm_to_vmem [thread:$0]  %s5, 512, %s80, [#allocation9], 128, 128, 8
    $region25: #{tpu_custom_call.1} parent=1 // pred_fallthru
      _
    // Predicated region
    $region26: #{tpu_custom_call.1} parent=1 // pred_check
      _
    $region27: #{tpu_custom_call.1} parent=1 // pred_check_branch
      %87 = sbr.rel (0) target = $region29
    $region28: #{tpu_custom_call.1} parent=1 // pred_region
      _
    $region29: #{tpu_custom_call.1} parent=1 // pred_fallthru
      _
    // Predicated region
    $region30: #{tpu_custom_call.1} parent=1 // pred_check
      _
    $region31: #{tpu_custom_call.1} parent=1 // pred_check_branch
      %89 = sbr.rel (0) target = $region33
    $region32: #{tpu_custom_call.1} parent=1 // pred_region
      %s91 = ssub.s32 64, 64
      %92 = vsyncadd [#allocation12], %s91
      %s93 = sshll.u32 [#allocation11], 4
      %s94 = int_to_ptr.vmem [resolvable:$true] %s93
      %99 = dma.hbm_to_vmem [thread:$0]  %s7, 64, %s94, [#allocation12], 32, 32, 2
    $region33: #{tpu_custom_call.1} parent=1 // pred_fallthru
      _
    // Predicated region
    $region34: #{tpu_custom_call.1} parent=1 // pred_check
      _
    $region35: #{tpu_custom_call.1} parent=1 // pred_check_branch
      %101 = sbr.rel (0) target = $region37
    $region36: #{tpu_custom_call.1} parent=1 // pred_region
      %s103 = ssub.s32 64, 64
      %104 = vsyncadd [#allocation12], %s103
      %s105 = sshll.u32 [#allocation13], 4
      %s106 = int_to_ptr.vmem [resolvable:$true] %s105
      %111 = dma.hbm_to_vmem [thread:$0]  %s8, 64, %s106, [#allocation12], 32, 32, 2
    $region37: #{tpu_custom_call.1} parent=1 // pred_fallthru
      _
    // Predicated region
    $region38: #{tpu_custom_call.1} parent=1 // pred_check
      _
    $region39: #{tpu_custom_call.1} parent=1 // pred_check_branch
      %113 = sbr.rel (0) target = $region41
    $region40: #{tpu_custom_call.1} parent=1 // pred_region
      _
    $region41: #{tpu_custom_call.1} parent=1 // pred_fallthru
      _
    // Predicated region
    $region42: #{tpu_custom_call.1} parent=1 // pred_check
      _
    $region43: #{tpu_custom_call.1} parent=1 // pred_check_branch
      %115 = sbr.rel (0) target = $region45
    $region44: #{tpu_custom_call.1} parent=1 // pred_region
      _
    $region45: #{tpu_custom_call.1} parent=1 // pred_fallthru
      _
    // Predicated region
    $region46: #{tpu_custom_call.1} parent=1 // pred_check
      _
    $region47: #{tpu_custom_call.1} parent=1 // pred_check_branch
      %117 = sbr.rel (0) target = $region49
    $region48: #{tpu_custom_call.1} parent=1 // pred_region
      %s119 = ssub.s32 1024, 1024
      %120 = vsyncadd [#allocation15], %s119
      %s121 = sshll.u32 [#allocation14], 4
      %s122 = int_to_ptr.vmem [resolvable:$true] %s121
      %127 = dma.hbm_to_vmem [thread:$0]  %s11, 1024, %s122, [#allocation15], 128, 128, 8
    $region49: #{tpu_custom_call.1} parent=1 // pred_fallthru
      _
    // Predicated region
    $region50: #{tpu_custom_call.1} parent=1 // pred_check
      _
    $region51: #{tpu_custom_call.1} parent=1 // pred_check_branch
      %129 = sbr.rel (0) target = $region53
    $region52: #{tpu_custom_call.1} parent=1 // pred_region
      _
    $region53: #{tpu_custom_call.1} parent=1 // pred_fallthru
      _
    // Predicated region
    $region54: #{tpu_custom_call.1} parent=1 // pred_check
      _
    $region55: #{tpu_custom_call.1} parent=1 // pred_check_branch
      %131 = sbr.rel (0) target = $region57
    $region56: #{tpu_custom_call.1} parent=1 // pred_region
      %132 = dma.done [#allocation3], 256
    $region57: #{tpu_custom_call.1} parent=1 // pred_fallthru
      _
    // Predicated region
    $region58: #{tpu_custom_call.1} parent=1 // pred_check
      _
    $region59: #{tpu_custom_call.1} parent=1 // pred_check_branch
      %134 = sbr.rel (0) target = $region61
    $region60: #{tpu_custom_call.1} parent=1 // pred_region
      %135 = dma.done [#allocation6], 256
    $region61: #{tpu_custom_call.1} parent=1 // pred_fallthru
      _
    // Predicated region
    $region62: #{tpu_custom_call.1} parent=1 // pred_check
      _
    $region63: #{tpu_custom_call.1} parent=1 // pred_check_branch
      %137 = sbr.rel (0) target = $region65
    $region64: #{tpu_custom_call.1} parent=1 // pred_region
      %138 = dma.done [#allocation6], 512
    $region65: #{tpu_custom_call.1} parent=1 // pred_fallthru
      _
    // Predicated region
    $region66: #{tpu_custom_call.1} parent=1 // pred_check
      _
    $region67: #{tpu_custom_call.1} parent=1 // pred_check_branch
      %140 = sbr.rel (0) target = $region69
    $region68: #{tpu_custom_call.1} parent=1 // pred_region
      %141 = dma.done [#allocation9], 512
    $region69: #{tpu_custom_call.1} parent=1 // pred_fallthru
      _
    // Predicated region
    $region70: #{tpu_custom_call.1} parent=1 // pred_check
      _
    $region71: #{tpu_custom_call.1} parent=1 // pred_check_branch
      %143 = sbr.rel (0) target = $region73
    $region72: #{tpu_custom_call.1} parent=1 // pred_region
      %144 = dma.done [#allocation9], 512
    $region73: #{tpu_custom_call.1} parent=1 // pred_fallthru
      _
    // Predicated region
    $region74: #{tpu_custom_call.1} parent=1 // pred_check
      _
    $region75: #{tpu_custom_call.1} parent=1 // pred_check_branch
      %146 = sbr.rel (0) target = $region77
    $region76: #{tpu_custom_call.1} parent=1 // pred_region
      %147 = dma.done [#allocation12], 64
    $region77: #{tpu_custom_call.1} parent=1 // pred_fallthru
      _
    // Predicated region
    $region78: #{tpu_custom_call.1} parent=1 // pred_check
      _
    $region79: #{tpu_custom_call.1} parent=1 // pred_check_branch
      %149 = sbr.rel (0) target = $region81
    $region80: #{tpu_custom_call.1} parent=1 // pred_region
      %150 = dma.done [#allocation12], 64
    $region81: #{tpu_custom_call.1} parent=1 // pred_fallthru
      _
    // Predicated region
    $region82: #{tpu_custom_call.1} parent=1 // pred_check
      _
    $region83: #{tpu_custom_call.1} parent=1 // pred_check_branch
      %152 = sbr.rel (0) target = $region85
    $region84: #{tpu_custom_call.1} parent=1 // pred_region
      %153 = dma.done [#allocation15], 1024
    $region85: #{tpu_custom_call.1} parent=1 // pred_fallthru
      _
    %v154 = vld [vmem:[#allocation2] sm:$0xff]
    %v155 = vld [vmem:[#allocation2 + $0x8] sm:$0xff]
    %v156 = vld [vmem:[#allocation5] sm:$0xff]
    %v157 = vld [vmem:[#allocation5 + $0x8] sm:$0xff]
    %v158 = vld [vmem:[%s2] sm:$0x1]
    %v160 = vlaneseq
    %v161 = vshrl.u32 %v160, 7
    %v162 = vsub.s32 0, %v161
    %v163 = vrot.slane %v158, %v162
    %vm165 = vcmask 130048
    %v167 = vsel %vm165, %v154, 0
    %v170 = vsel %vm165, %v155, 0
    %172 = vmatprep.subr.mxu0 0.0
    %173 = vmatpush1.msra.mxu0 %v156
    %174 = vmatprep.subr.mxu0 0.0
    %175 = vmatpush1.msra.mxu0 %v157
    %176 = vmatprep.subr.mxu0 0.0
    %177 = vmatpush1.msra.mxu0 0.0
    %178 = vmatprep.subr.mxu0 0.0
    %179 = vmatpush1.msra.mxu0 0.0
    %180 = vmatprep.subr.mxu0 0.0
    %181 = vmatpush1.msra.mxu0 0.0
    %182 = vmatprep.subr.mxu0 0.0
    %183 = vmatpush1.msra.mxu0 0.0
    %184 = vmatprep.subr.mxu0 0.0
    %185 = vmatpush1.msra.mxu0 0.0
    %186 = vmatprep.subr.mxu0 0.0
    %187 = vmatpush1.msra.mxu0 0.0
    %188 = vmatprep.subr.mxu0 0.0
    %189 = vmatpush1.msra.mxu0 0.0
    %190 = vmatprep.subr.mxu0 0.0
    %191 = vmatpush1.msra.mxu0 0.0
    %192 = vmatprep.subr.mxu0 0.0
    %193 = vmatpush1.msra.mxu0 0.0
    %194 = vmatprep.subr.mxu0 0.0
    %195 = vmatpush1.msra.mxu0 0.0
    %196 = vmatprep.subr.mxu0 0.0
    %197 = vmatpush1.msra.mxu0 0.0
    %198 = vmatprep.subr.mxu0 0.0
    %199 = vmatpush1.msra.mxu0 0.0
    %200 = vmatprep.subr.mxu0 0.0
    %201 = vmatpush1.msra.mxu0 0.0
    %202 = vmatprep.subr.mxu0 0.0
    %203 = vmatpush1.msra.mxu0 0.0
    %204 = vmatprep.subr.mxu0 0.0
    %205 = vmatpush1.msra.mxu0 0.0
    %206 = vmatprep.subr.mxu0 0.0
    %207 = vmatpush1.msra.mxu0 0.0
    %208 = vmatprep.subr.mxu0 0.0
    %209 = vmatpush1.msra.mxu0 0.0
    %210 = vmatprep.subr.mxu0 0.0
    %211 = vmatpush1.msra.mxu0 0.0
    %212 = vmatprep.subr.mxu0 0.0
    %213 = vmatpush1.msra.mxu0 0.0
    %214 = vmatprep.subr.mxu0 0.0
    %215 = vmatpush1.msra.mxu0 0.0
    %216 = vmatprep.subr.mxu0 0.0
    %217 = vmatpush1.msra.mxu0 0.0
    %218 = vmatprep.subr.mxu0 0.0
    %219 = vmatpush1.msra.mxu0 0.0
    %220 = vmatprep.subr.mxu0 0.0
    %221 = vmatpush1.msra.mxu0 0.0
    %222 = vmatprep.subr.mxu0 0.0
    %223 = vmatpush1.msra.mxu0 0.0
    %224 = vmatprep.subr.mxu0 0.0
    %225 = vmatpush1.msra.mxu0 0.0
    %226 = vmatprep.subr.mxu0 0.0
    %227 = vmatpush1.msra.mxu0 0.0
    %228 = vmatprep.subr.mxu0 0.0
    %229 = vmatpush1.msra.mxu0 0.0
    %230 = vmatprep.subr.mxu0 0.0
    %231 = vmatpush1.msra.mxu0 0.0
    %232 = vmatprep.subr.mxu0 0.0
    %233 = vmatpush1.msra.mxu0 0.0
    %234 = vmatprep.subr.mxu0 0.0
    %235 = vmatpush1.msra.mxu0 0.0
    %236 = vmatprep.mubr.f32.mxu0 0.0
    %237 = vmatmul.mubr.f32.gmra.mrb[0].mxu0 %v167
    %v238 = vpop.f32.mrb[0].mxu0
    %v239 = vadd.f32 %v163, %v238
    %v240 = vpop.f32.mrb[0].mxu0
    %241 = vmatprep.mubr.f32.mxu0 0.0
    %242 = vmatmul.mubr.f32.gmra.mrb[0].mxu0 %v170
    %v243 = vpop.f32.mrb[0].mxu0
    %v244 = vadd.f32 %v163, %v243
    %v245 = vpop.f32.mrb[0].mxu0
    %246 = vdwg.mxu0
    %v247 = vld [vmem:[#allocation7] sm:$0xff]
    %v248 = vld [vmem:[#allocation7 + $0x8] sm:$0xff]
    %v249 = vld [vmem:[#allocation7 + $0x10] sm:$0xff]
    %v250 = vld [vmem:[#allocation7 + $0x18] sm:$0xff]
    %v251 = vld [vmem:[#allocation8] sm:$0xff]
    %v252 = vld [vmem:[#allocation8 + $0x8] sm:$0xff]
    %v253 = vld [vmem:[#allocation8 + $0x10] sm:$0xff]
    %v254 = vld [vmem:[#allocation8 + $0x18] sm:$0xff]
    %v255 = vld [vmem:[#allocation10] sm:$0xff]
    %v256 = vld [vmem:[#allocation10 + $0x8] sm:$0xff]
    %v257 = vld [vmem:[#allocation10 + $0x10] sm:$0xff]
    %v258 = vld [vmem:[#allocation10 + $0x18] sm:$0xff]
    %v259 = vld [vmem:[%s6] sm:$0x1]
    %v260 = vld [vmem:[#allocation11] sm:$0x3]
    %v261 = vld [vmem:[#allocation13] sm:$0x3]
    %s262 = scalar_lea.vmem [#allocation11], 2
    %v263 = vld [vmem:[%s262] sm:$0x3]
    %s264 = scalar_lea.vmem [#allocation13], 2
    %v265 = vld [vmem:[%s264] sm:$0x3]
    %vm266 = vcmask 261120
    %v268 = vsel %vm266, %v260, 0
    %270 = vmatprep.subr.mxu0 0.0
    %271 = vmatpush1.msra.mxu0 %v247
    %272 = vmatprep.subr.mxu0 0.0
    %273 = vmatpush1.msra.mxu0 %v248
    %274 = vmatprep.subr.mxu0 0.0
    %275 = vmatpush1.msra.mxu0 %v249
    %276 = vmatprep.subr.mxu0 0.0
    %277 = vmatpush1.msra.mxu0 %v250
    %278 = vmatprep.subr.mxu0 0.0
    %279 = vmatpush1.msra.mxu0 0.0
    %280 = vmatprep.subr.mxu0 0.0
    %281 = vmatpush1.msra.mxu0 0.0
    %282 = vmatprep.subr.mxu0 0.0
    %283 = vmatpush1.msra.mxu0 0.0
    %284 = vmatprep.subr.mxu0 0.0
    %285 = vmatpush1.msra.mxu0 0.0
    %286 = vmatprep.subr.mxu0 0.0
    %287 = vmatpush1.msra.mxu0 0.0
    %288 = vmatprep.subr.mxu0 0.0
    %289 = vmatpush1.msra.mxu0 0.0
    %290 = vmatprep.subr.mxu0 0.0
    %291 = vmatpush1.msra.mxu0 0.0
    %292 = vmatprep.subr.mxu0 0.0
    %293 = vmatpush1.msra.mxu0 0.0
    %294 = vmatprep.subr.mxu0 0.0
    %295 = vmatpush1.msra.mxu0 0.0
    %296 = vmatprep.subr.mxu0 0.0
    %297 = vmatpush1.msra.mxu0 0.0
    %298 = vmatprep.subr.mxu0 0.0
    %299 = vmatpush1.msra.mxu0 0.0
    %300 = vmatprep.subr.mxu0 0.0
    %301 = vmatpush1.msra.mxu0 0.0
    %302 = vmatprep.subr.mxu0 0.0
    %303 = vmatpush1.msra.mxu0 0.0
    %304 = vmatprep.subr.mxu0 0.0
    %305 = vmatpush1.msra.mxu0 0.0
    %306 = vmatprep.subr.mxu0 0.0
    %307 = vmatpush1.msra.mxu0 0.0
    %308 = vmatprep.subr.mxu0 0.0
    %309 = vmatpush1.msra.mxu0 0.0
    %310 = vmatprep.subr.mxu0 0.0
    %311 = vmatpush1.msra.mxu0 0.0
    %312 = vmatprep.subr.mxu0 0.0
    %313 = vmatpush1.msra.mxu0 0.0
    %314 = vmatprep.subr.mxu0 0.0
    %315 = vmatpush1.msra.mxu0 0.0
    %316 = vmatprep.subr.mxu0 0.0
    %317 = vmatpush1.msra.mxu0 0.0
    %318 = vmatprep.subr.mxu0 0.0
    %319 = vmatpush1.msra.mxu0 0.0
    %320 = vmatprep.subr.mxu0 0.0
    %321 = vmatpush1.msra.mxu0 0.0
    %322 = vmatprep.subr.mxu0 0.0
    %323 = vmatpush1.msra.mxu0 0.0
    %324 = vmatprep.subr.mxu0 0.0
    %325 = vmatpush1.msra.mxu0 0.0
    %326 = vmatprep.subr.mxu0 0.0
    %327 = vmatpush1.msra.mxu0 0.0
    %328 = vmatprep.subr.mxu0 0.0
    %329 = vmatpush1.msra.mxu0 0.0
    %330 = vmatprep.subr.mxu0 0.0
    %331 = vmatpush1.msra.mxu0 0.0
    %332 = vmatprep.subr.mxu0 0.0
    %333 = vmatpush1.msra.mxu0 0.0
    %334 = vmatprep.mubr.f32.mxu0 0.0
    %335 = vmatmul.mubr.f32.gmra.mrb[0].mxu0 %v268
    %v336 = vpop.f32.mrb[0].mxu0
    %v337 = vadd.f32 0.0, %v336
    %v338 = vpop.f32.mrb[0].mxu0
    %339 = vdwg.mxu0
    %v340 = vadd.f32 %v239, %v337
    %v341 = vxor.u32 %v340, 2147483648
    %v342 = vmul.f32 %v341, 1.442695
    %v343 = vpow.pop %v342
    %v344 = vadd.f32 %v343, 1.0
    %v345 = vrcp.pop %v344
    %v346 = vmul.f32 1.0, %v345
    %v347 = vtanh.pop %v340
    %349 = vrot.lane.b32.xlu0 %v261, 32
    %v350 = vpop.permute.xlu0 %349
    %v352 = vmul.f32 %v346, %v350
    %354 = vrot.lane.b32.xlu0 %v347, 64
    %v355 = vpop.permute.xlu0 %354
    %v357 = vmul.f32 %v346, %v355
    %359 = vrot.lane.b32.xlu0 %v357, 32
    %v360 = vpop.permute.xlu0 %359
    %v362 = vadd.f32 %v352, %v360
    %v363 = vtanh.pop %v362
    %365 = vrot.lane.b32.xlu0 %v363, 64
    %v366 = vpop.permute.xlu0 %365
    %v368 = vmul.f32 %v346, %v366
    %v370 = vsel %vm266, %v263, 0
    %372 = vmatprep.subr.mxu0 0.0
    %373 = vmatpush1.msra.mxu0 %v255
    %374 = vmatprep.subr.mxu0 0.0
    %375 = vmatpush1.msra.mxu0 %v256
    %376 = vmatprep.subr.mxu0 0.0
    %377 = vmatpush1.msra.mxu0 %v257
    %378 = vmatprep.subr.mxu0 0.0
    %379 = vmatpush1.msra.mxu0 %v258
    %380 = vmatprep.subr.mxu0 0.0
    %381 = vmatpush1.msra.mxu0 0.0
    %382 = vmatprep.subr.mxu0 0.0
    %383 = vmatpush1.msra.mxu0 0.0
    %384 = vmatprep.subr.mxu0 0.0
    %385 = vmatpush1.msra.mxu0 0.0
    %386 = vmatprep.subr.mxu0 0.0
    %387 = vmatpush1.msra.mxu0 0.0
    %388 = vmatprep.subr.mxu0 0.0
    %389 = vmatpush1.msra.mxu0 0.0
    %390 = vmatprep.subr.mxu0 0.0
    %391 = vmatpush1.msra.mxu0 0.0
    %392 = vmatprep.subr.mxu0 0.0
    %393 = vmatpush1.msra.mxu0 0.0
    %394 = vmatprep.subr.mxu0 0.0
    %395 = vmatpush1.msra.mxu0 0.0
    %396 = vmatprep.subr.mxu0 0.0
    %397 = vmatpush1.msra.mxu0 0.0
    %398 = vmatprep.subr.mxu0 0.0
    %399 = vmatpush1.msra.mxu0 0.0
    %400 = vmatprep.subr.mxu0 0.0
    %401 = vmatpush1.msra.mxu0 0.0
    %402 = vmatprep.subr.mxu0 0.0
    %403 = vmatpush1.msra.mxu0 0.0
    %404 = vmatprep.subr.mxu0 0.0
    %405 = vmatpush1.msra.mxu0 0.0
    %406 = vmatprep.subr.mxu0 0.0
    %407 = vmatpush1.msra.mxu0 0.0
    %408 = vmatprep.subr.mxu0 0.0
    %409 = vmatpush1.msra.mxu0 0.0
    %410 = vmatprep.subr.mxu0 0.0
    %411 = vmatpush1.msra.mxu0 0.0
    %412 = vmatprep.subr.mxu0 0.0
    %413 = vmatpush1.msra.mxu0 0.0
    %414 = vmatprep.subr.mxu0 0.0
    %415 = vmatpush1.msra.mxu0 0.0
    %416 = vmatprep.subr.mxu0 0.0
    %417 = vmatpush1.msra.mxu0 0.0
    %418 = vmatprep.subr.mxu0 0.0
    %419 = vmatpush1.msra.mxu0 0.0
    %420 = vmatprep.subr.mxu0 0.0
    %421 = vmatpush1.msra.mxu0 0.0
    %422 = vmatprep.subr.mxu0 0.0
    %423 = vmatpush1.msra.mxu0 0.0
    %424 = vmatprep.subr.mxu0 0.0
    %425 = vmatpush1.msra.mxu0 0.0
    %426 = vmatprep.subr.mxu0 0.0
    %427 = vmatpush1.msra.mxu0 0.0
    %428 = vmatprep.subr.mxu0 0.0
    %429 = vmatpush1.msra.mxu0 0.0
    %430 = vmatprep.subr.mxu0 0.0
    %431 = vmatpush1.msra.mxu0 0.0
    %432 = vmatprep.subr.mxu0 0.0
    %433 = vmatpush1.msra.mxu0 0.0
    %434 = vmatprep.subr.mxu0 0.0
    %435 = vmatpush1.msra.mxu0 0.0
    %436 = vmatprep.mubr.f32.mxu0 0.0
    %437 = vmatmul.mubr.f32.gmra.mrb[0].mxu0 %v370
    %v438 = vpop.f32.mrb[0].mxu0
    %v439 = vadd.f32 0.0, %v438
    %v440 = vpop.f32.mrb[0].mxu0
    %441 = vdwg.mxu0
    %443 = vrot.lane.b32.xlu0 %v368, 32
    %v444 = vpop.permute.xlu0 %443
    %v445 = vsel %vm266, %v444, 0
    %447 = vmatprep.subr.mxu0 0.0
    %448 = vmatpush1.msra.mxu0 %v251
    %449 = vmatprep.subr.mxu0 0.0
    %450 = vmatpush1.msra.mxu0 %v252
    %451 = vmatprep.subr.mxu0 0.0
    %452 = vmatpush1.msra.mxu0 %v253
    %453 = vmatprep.subr.mxu0 0.0
    %454 = vmatpush1.msra.mxu0 %v254
    %455 = vmatprep.subr.mxu0 0.0
    %456 = vmatpush1.msra.mxu0 0.0
    %457 = vmatprep.subr.mxu0 0.0
    %458 = vmatpush1.msra.mxu0 0.0
    %459 = vmatprep.subr.mxu0 0.0
    %460 = vmatpush1.msra.mxu0 0.0
    %461 = vmatprep.subr.mxu0 0.0
    %462 = vmatpush1.msra.mxu0 0.0
    %463 = vmatprep.subr.mxu0 0.0
    %464 = vmatpush1.msra.mxu0 0.0
    %465 = vmatprep.subr.mxu0 0.0
    %466 = vmatpush1.msra.mxu0 0.0
    %467 = vmatprep.subr.mxu0 0.0
    %468 = vmatpush1.msra.mxu0 0.0
    %469 = vmatprep.subr.mxu0 0.0
    %470 = vmatpush1.msra.mxu0 0.0
    %471 = vmatprep.subr.mxu0 0.0
    %472 = vmatpush1.msra.mxu0 0.0
    %473 = vmatprep.subr.mxu0 0.0
    %474 = vmatpush1.msra.mxu0 0.0
    %475 = vmatprep.subr.mxu0 0.0
    %476 = vmatpush1.msra.mxu0 0.0
    %477 = vmatprep.subr.mxu0 0.0
    %478 = vmatpush1.msra.mxu0 0.0
    %479 = vmatprep.subr.mxu0 0.0
    %480 = vmatpush1.msra.mxu0 0.0
    %481 = vmatprep.subr.mxu0 0.0
    %482 = vmatpush1.msra.mxu0 0.0
    %483 = vmatprep.subr.mxu0 0.0
    %484 = vmatpush1.msra.mxu0 0.0
    %485 = vmatprep.subr.mxu0 0.0
    %486 = vmatpush1.msra.mxu0 0.0
    %487 = vmatprep.subr.mxu0 0.0
    %488 = vmatpush1.msra.mxu0 0.0
    %489 = vmatprep.subr.mxu0 0.0
    %490 = vmatpush1.msra.mxu0 0.0
    %491 = vmatprep.subr.mxu0 0.0
    %492 = vmatpush1.msra.mxu0 0.0
    %493 = vmatprep.subr.mxu0 0.0
    %494 = vmatpush1.msra.mxu0 0.0
    %495 = vmatprep.subr.mxu0 0.0
    %496 = vmatpush1.msra.mxu0 0.0
    %497 = vmatprep.subr.mxu0 0.0
    %498 = vmatpush1.msra.mxu0 0.0
    %499 = vmatprep.subr.mxu0 0.0
    %500 = vmatpush1.msra.mxu0 0.0
    %501 = vmatprep.subr.mxu0 0.0
    %502 = vmatpush1.msra.mxu0 0.0
    %503 = vmatprep.subr.mxu0 0.0
    %504 = vmatpush1.msra.mxu0 0.0
    %505 = vmatprep.subr.mxu0 0.0
    %506 = vmatpush1.msra.mxu0 0.0
    %507 = vmatprep.subr.mxu0 0.0
    %508 = vmatpush1.msra.mxu0 0.0
    %509 = vmatprep.subr.mxu0 0.0
    %510 = vmatpush1.msra.mxu0 0.0
    %511 = vmatprep.mubr.f32.mxu0 0.0
    %512 = vmatmul.mubr.f32.gmra.mrb[0].mxu0 %v445
    %v513 = vpop.f32.mrb[0].mxu0
    %v514 = vadd.f32 %v439, %v513
    %v515 = vpop.f32.mrb[0].mxu0
    %516 = vdwg.mxu0
    %v518 = vlaneseq
    %v519 = vshrl.u32 %v518, 7
    %v520 = vsub.s32 0, %v519
    %v521 = vrot.slane %v259, %v520
    %v523 = vadd.f32 %v514, %v521
    %v524 = vxor.u32 %v523, 2147483648
    %v525 = vmul.f32 %v524, 1.442695
    %v526 = vpow.pop %v525
    %v527 = vadd.f32 %v526, 1.0
    %v528 = vrcp.pop %v527
    %v529 = vmul.f32 1.0, %v528
    %v530 = vtanh.pop %v523
    %532 = vrot.lane.b32.xlu0 %v265, 32
    %v533 = vpop.permute.xlu0 %532
    %v535 = vmul.f32 %v529, %v533
    %537 = vrot.lane.b32.xlu0 %v530, 64
    %v538 = vpop.permute.xlu0 %537
    %v540 = vmul.f32 %v529, %v538
    %542 = vrot.lane.b32.xlu0 %v540, 32
    %v543 = vpop.permute.xlu0 %542
    %v545 = vadd.f32 %v535, %v543
    %v546 = vtanh.pop %v545
    %548 = vrot.lane.b32.xlu0 %v546, 64
    %v549 = vpop.permute.xlu0 %548
    %v551 = vmul.f32 %v529, %v549
    %552 = vmatprep.subr.mxu0 0.0
    %553 = vmatpush1.msra.mxu0 %v247
    %554 = vmatprep.subr.mxu0 0.0
    %555 = vmatpush1.msra.mxu0 %v248
    %556 = vmatprep.subr.mxu0 0.0
    %557 = vmatpush1.msra.mxu0 %v249
    %558 = vmatprep.subr.mxu0 0.0
    %559 = vmatpush1.msra.mxu0 %v250
    %560 = vmatprep.subr.mxu0 0.0
    %561 = vmatpush1.msra.mxu0 0.0
    %562 = vmatprep.subr.mxu0 0.0
    %563 = vmatpush1.msra.mxu0 0.0
    %564 = vmatprep.subr.mxu0 0.0
    %565 = vmatpush1.msra.mxu0 0.0
    %566 = vmatprep.subr.mxu0 0.0
    %567 = vmatpush1.msra.mxu0 0.0
    %568 = vmatprep.subr.mxu0 0.0
    %569 = vmatpush1.msra.mxu0 0.0
    %570 = vmatprep.subr.mxu0 0.0
    %571 = vmatpush1.msra.mxu0 0.0
    %572 = vmatprep.subr.mxu0 0.0
    %573 = vmatpush1.msra.mxu0 0.0
    %574 = vmatprep.subr.mxu0 0.0
    %575 = vmatpush1.msra.mxu0 0.0
    %576 = vmatprep.subr.mxu0 0.0
    %577 = vmatpush1.msra.mxu0 0.0
    %578 = vmatprep.subr.mxu0 0.0
    %579 = vmatpush1.msra.mxu0 0.0
    %580 = vmatprep.subr.mxu0 0.0
    %581 = vmatpush1.msra.mxu0 0.0
    %582 = vmatprep.subr.mxu0 0.0
    %583 = vmatpush1.msra.mxu0 0.0
    %584 = vmatprep.subr.mxu0 0.0
    %585 = vmatpush1.msra.mxu0 0.0
    %586 = vmatprep.subr.mxu0 0.0
    %587 = vmatpush1.msra.mxu0 0.0
    %588 = vmatprep.subr.mxu0 0.0
    %589 = vmatpush1.msra.mxu0 0.0
    %590 = vmatprep.subr.mxu0 0.0
    %591 = vmatpush1.msra.mxu0 0.0
    %592 = vmatprep.subr.mxu0 0.0
    %593 = vmatpush1.msra.mxu0 0.0
    %594 = vmatprep.subr.mxu0 0.0
    %595 = vmatpush1.msra.mxu0 0.0
    %596 = vmatprep.subr.mxu0 0.0
    %597 = vmatpush1.msra.mxu0 0.0
    %598 = vmatprep.subr.mxu0 0.0
    %599 = vmatpush1.msra.mxu0 0.0
    %600 = vmatprep.subr.mxu0 0.0
    %601 = vmatpush1.msra.mxu0 0.0
    %602 = vmatprep.subr.mxu0 0.0
    %603 = vmatpush1.msra.mxu0 0.0
    %604 = vmatprep.subr.mxu0 0.0
    %605 = vmatpush1.msra.mxu0 0.0
    %606 = vmatprep.subr.mxu0 0.0
    %607 = vmatpush1.msra.mxu0 0.0
    %608 = vmatprep.subr.mxu0 0.0
    %609 = vmatpush1.msra.mxu0 0.0
    %610 = vmatprep.subr.mxu0 0.0
    %611 = vmatpush1.msra.mxu0 0.0
    %612 = vmatprep.subr.mxu0 0.0
    %613 = vmatpush1.msra.mxu0 0.0
    %614 = vmatprep.subr.mxu0 0.0
    %615 = vmatpush1.msra.mxu0 0.0
    %616 = vmatprep.mubr.f32.mxu0 0.0
    %617 = vmatmul.mubr.f32.gmra.mrb[0].mxu0 %v445
    %v618 = vpop.f32.mrb[0].mxu0
    %v619 = vadd.f32 0.0, %v618
    %v620 = vpop.f32.mrb[0].mxu0
    %621 = vdwg.mxu0
    %v623 = vrot.slane %v619, 6
    %v625 = vadd.f32 %v239, %v623
    %v626 = vxor.u32 %v625, 2147483648
    %v627 = vmul.f32 %v626, 1.442695
    %v628 = vpow.pop %v627
    %v629 = vadd.f32 %v628, 1.0
    %v630 = vrcp.pop %v629
    %v631 = vmul.f32 1.0, %v630
    %v632 = vtanh.pop %v625
    %v634 = vrot.slane %v362, 6
    %v636 = vmul.f32 %v631, %v634
    %638 = vrot.lane.b32.xlu0 %v632, 64
    %v639 = vpop.permute.xlu0 %638
    %v641 = vmul.f32 %v631, %v639
    %643 = vrot.lane.b32.xlu0 %v641, 32
    %v644 = vpop.permute.xlu0 %643
    %v646 = vadd.f32 %v636, %v644
    %v647 = vtanh.pop %v646
    %649 = vrot.lane.b32.xlu0 %v647, 64
    %v650 = vpop.permute.xlu0 %649
    %v652 = vmul.f32 %v631, %v650
    %654 = vrot.lane.b32.xlu0 %v551, 32
    %v655 = vpop.permute.xlu0 %654
    %v656 = vsel %vm266, %v655, 0
    %658 = vmatprep.subr.mxu0 0.0
    %659 = vmatpush1.msra.mxu0 %v255
    %660 = vmatprep.subr.mxu0 0.0
    %661 = vmatpush1.msra.mxu0 %v256
    %662 = vmatprep.subr.mxu0 0.0
    %663 = vmatpush1.msra.mxu0 %v257
    %664 = vmatprep.subr.mxu0 0.0
    %665 = vmatpush1.msra.mxu0 %v258
    %666 = vmatprep.subr.mxu0 0.0
    %667 = vmatpush1.msra.mxu0 0.0
    %668 = vmatprep.subr.mxu0 0.0
    %669 = vmatpush1.msra.mxu0 0.0
    %670 = vmatprep.subr.mxu0 0.0
    %671 = vmatpush1.msra.mxu0 0.0
    %672 = vmatprep.subr.mxu0 0.0
    %673 = vmatpush1.msra.mxu0 0.0
    %674 = vmatprep.subr.mxu0 0.0
    %675 = vmatpush1.msra.mxu0 0.0
    %676 = vmatprep.subr.mxu0 0.0
    %677 = vmatpush1.msra.mxu0 0.0
    %678 = vmatprep.subr.mxu0 0.0
    %679 = vmatpush1.msra.mxu0 0.0
    %680 = vmatprep.subr.mxu0 0.0
    %681 = vmatpush1.msra.mxu0 0.0
    %682 = vmatprep.subr.mxu0 0.0
    %683 = vmatpush1.msra.mxu0 0.0
    %684 = vmatprep.subr.mxu0 0.0
    %685 = vmatpush1.msra.mxu0 0.0
    %686 = vmatprep.subr.mxu0 0.0
    %687 = vmatpush1.msra.mxu0 0.0
    %688 = vmatprep.subr.mxu0 0.0
    %689 = vmatpush1.msra.mxu0 0.0
    %690 = vmatprep.subr.mxu0 0.0
    %691 = vmatpush1.msra.mxu0 0.0
    %692 = vmatprep.subr.mxu0 0.0
    %693 = vmatpush1.msra.mxu0 0.0
    %694 = vmatprep.subr.mxu0 0.0
    %695 = vmatpush1.msra.mxu0 0.0
    %696 = vmatprep.subr.mxu0 0.0
    %697 = vmatpush1.msra.mxu0 0.0
    %698 = vmatprep.subr.mxu0 0.0
    %699 = vmatpush1.msra.mxu0 0.0
    %700 = vmatprep.subr.mxu0 0.0
    %701 = vmatpush1.msra.mxu0 0.0
    %702 = vmatprep.subr.mxu0 0.0
    %703 = vmatpush1.msra.mxu0 0.0
    %704 = vmatprep.subr.mxu0 0.0
    %705 = vmatpush1.msra.mxu0 0.0
    %706 = vmatprep.subr.mxu0 0.0
    %707 = vmatpush1.msra.mxu0 0.0
    %708 = vmatprep.subr.mxu0 0.0
    %709 = vmatpush1.msra.mxu0 0.0
    %710 = vmatprep.subr.mxu0 0.0
    %711 = vmatpush1.msra.mxu0 0.0
    %712 = vmatprep.subr.mxu0 0.0
    %713 = vmatpush1.msra.mxu0 0.0
    %714 = vmatprep.subr.mxu0 0.0
    %715 = vmatpush1.msra.mxu0 0.0
    %716 = vmatprep.subr.mxu0 0.0
    %717 = vmatpush1.msra.mxu0 0.0
    %718 = vmatprep.subr.mxu0 0.0
    %719 = vmatpush1.msra.mxu0 0.0
    %720 = vmatprep.subr.mxu0 0.0
    %721 = vmatpush1.msra.mxu0 0.0
    %722 = vmatprep.mubr.f32.mxu0 0.0
    %723 = vmatmul.mubr.f32.gmra.mrb[0].mxu0 %v656
    %v724 = vpop.f32.mrb[0].mxu0
    %v725 = vadd.f32 0.0, %v724
    %v726 = vpop.f32.mrb[0].mxu0
    %727 = vdwg.mxu0
    %v729 = vrot.slane %v652, 2
    %730 = vrot.lane.b32.xlu0 %v729, 32
    %v731 = vpop.permute.xlu0 %730
    %v732 = vsel %vm266, %v731, 0
    %734 = vmatprep.subr.mxu0 0.0
    %735 = vmatpush1.msra.mxu0 %v251
    %736 = vmatprep.subr.mxu0 0.0
    %737 = vmatpush1.msra.mxu0 %v252
    %738 = vmatprep.subr.mxu0 0.0
    %739 = vmatpush1.msra.mxu0 %v253
    %740 = vmatprep.subr.mxu0 0.0
    %741 = vmatpush1.msra.mxu0 %v254
    %742 = vmatprep.subr.mxu0 0.0
    %743 = vmatpush1.msra.mxu0 0.0
    %744 = vmatprep.subr.mxu0 0.0
    %745 = vmatpush1.msra.mxu0 0.0
    %746 = vmatprep.subr.mxu0 0.0
    %747 = vmatpush1.msra.mxu0 0.0
    %748 = vmatprep.subr.mxu0 0.0
    %749 = vmatpush1.msra.mxu0 0.0
    %750 = vmatprep.subr.mxu0 0.0
    %751 = vmatpush1.msra.mxu0 0.0
    %752 = vmatprep.subr.mxu0 0.0
    %753 = vmatpush1.msra.mxu0 0.0
    %754 = vmatprep.subr.mxu0 0.0
    %755 = vmatpush1.msra.mxu0 0.0
    %756 = vmatprep.subr.mxu0 0.0
    %757 = vmatpush1.msra.mxu0 0.0
    %758 = vmatprep.subr.mxu0 0.0
    %759 = vmatpush1.msra.mxu0 0.0
    %760 = vmatprep.subr.mxu0 0.0
    %761 = vmatpush1.msra.mxu0 0.0
    %762 = vmatprep.subr.mxu0 0.0
    %763 = vmatpush1.msra.mxu0 0.0
    %764 = vmatprep.subr.mxu0 0.0
    %765 = vmatpush1.msra.mxu0 0.0
    %766 = vmatprep.subr.mxu0 0.0
    %767 = vmatpush1.msra.mxu0 0.0
    %768 = vmatprep.subr.mxu0 0.0
    %769 = vmatpush1.msra.mxu0 0.0
    %770 = vmatprep.subr.mxu0 0.0
    %771 = vmatpush1.msra.mxu0 0.0
    %772 = vmatprep.subr.mxu0 0.0
    %773 = vmatpush1.msra.mxu0 0.0
    %774 = vmatprep.subr.mxu0 0.0
    %775 = vmatpush1.msra.mxu0 0.0
    %776 = vmatprep.subr.mxu0 0.0
    %777 = vmatpush1.msra.mxu0 0.0
    %778 = vmatprep.subr.mxu0 0.0
    %779 = vmatpush1.msra.mxu0 0.0
    %780 = vmatprep.subr.mxu0 0.0
    %781 = vmatpush1.msra.mxu0 0.0
    %782 = vmatprep.subr.mxu0 0.0
    %783 = vmatpush1.msra.mxu0 0.0
    %784 = vmatprep.subr.mxu0 0.0
    %785 = vmatpush1.msra.mxu0 0.0
    %786 = vmatprep.subr.mxu0 0.0
    %787 = vmatpush1.msra.mxu0 0.0
    %788 = vmatprep.subr.mxu0 0.0
    %789 = vmatpush1.msra.mxu0 0.0
    %790 = vmatprep.subr.mxu0 0.0
    %791 = vmatpush1.msra.mxu0 0.0
    %792 = vmatprep.subr.mxu0 0.0
    %793 = vmatpush1.msra.mxu0 0.0
    %794 = vmatprep.subr.mxu0 0.0
    %795 = vmatpush1.msra.mxu0 0.0
    %796 = vmatprep.subr.mxu0 0.0
    %797 = vmatpush1.msra.mxu0 0.0
    %798 = vmatprep.mubr.f32.mxu0 0.0
    %799 = vmatmul.mubr.f32.gmra.mrb[0].mxu0 %v732
    %v800 = vpop.f32.mrb[0].mxu0
    %v801 = vadd.f32 %v725, %v800
    %v802 = vpop.f32.mrb[0].mxu0
    %803 = vdwg.mxu0
    %v804 = vadd.f32 %v801, %v521
    %v805 = vxor.u32 %v804, 2147483648
    %v806 = vmul.f32 %v805, 1.442695
    %v807 = vpow.pop %v806
    %v808 = vadd.f32 %v807, 1.0
    %v809 = vrcp.pop %v808
    %v810 = vmul.f32 1.0, %v809
    %v811 = vtanh.pop %v804
    %v812 = vmul.f32 %v810, %v545
    %814 = vrot.lane.b32.xlu0 %v811, 64
    %v815 = vpop.permute.xlu0 %814
    %v817 = vmul.f32 %v810, %v815
    %819 = vrot.lane.b32.xlu0 %v817, 32
    %v820 = vpop.permute.xlu0 %819
    %v822 = vadd.f32 %v812, %v820
    %v823 = vtanh.pop %v822
    %825 = vrot.lane.b32.xlu0 %v823, 64
    %v826 = vpop.permute.xlu0 %825
    %v828 = vmul.f32 %v810, %v826
    %829 = vmatprep.subr.mxu0 0.0
    %830 = vmatpush1.msra.mxu0 %v247
    %831 = vmatprep.subr.mxu0 0.0
    %832 = vmatpush1.msra.mxu0 %v248
    %833 = vmatprep.subr.mxu0 0.0
    %834 = vmatpush1.msra.mxu0 %v249
    %835 = vmatprep.subr.mxu0 0.0
    %836 = vmatpush1.msra.mxu0 %v250
    %837 = vmatprep.subr.mxu0 0.0
    %838 = vmatpush1.msra.mxu0 0.0
    %839 = vmatprep.subr.mxu0 0.0
    %840 = vmatpush1.msra.mxu0 0.0
    %841 = vmatprep.subr.mxu0 0.0
    %842 = vmatpush1.msra.mxu0 0.0
    %843 = vmatprep.subr.mxu0 0.0
    %844 = vmatpush1.msra.mxu0 0.0
    %845 = vmatprep.subr.mxu0 0.0
    %846 = vmatpush1.msra.mxu0 0.0
    %847 = vmatprep.subr.mxu0 0.0
    %848 = vmatpush1.msra.mxu0 0.0
    %849 = vmatprep.subr.mxu0 0.0
    %850 = vmatpush1.msra.mxu0 0.0
    %851 = vmatprep.subr.mxu0 0.0
    %852 = vmatpush1.msra.mxu0 0.0
    %853 = vmatprep.subr.mxu0 0.0
    %854 = vmatpush1.msra.mxu0 0.0
    %855 = vmatprep.subr.mxu0 0.0
    %856 = vmatpush1.msra.mxu0 0.0
    %857 = vmatprep.subr.mxu0 0.0
    %858 = vmatpush1.msra.mxu0 0.0
    %859 = vmatprep.subr.mxu0 0.0
    %860 = vmatpush1.msra.mxu0 0.0
    %861 = vmatprep.subr.mxu0 0.0
    %862 = vmatpush1.msra.mxu0 0.0
    %863 = vmatprep.subr.mxu0 0.0
    %864 = vmatpush1.msra.mxu0 0.0
    %865 = vmatprep.subr.mxu0 0.0
    %866 = vmatpush1.msra.mxu0 0.0
    %867 = vmatprep.subr.mxu0 0.0
    %868 = vmatpush1.msra.mxu0 0.0
    %869 = vmatprep.subr.mxu0 0.0
    %870 = vmatpush1.msra.mxu0 0.0
    %871 = vmatprep.subr.mxu0 0.0
    %872 = vmatpush1.msra.mxu0 0.0
    %873 = vmatprep.subr.mxu0 0.0
    %874 = vmatpush1.msra.mxu0 0.0
    %875 = vmatprep.subr.mxu0 0.0
    %876 = vmatpush1.msra.mxu0 0.0
    %877 = vmatprep.subr.mxu0 0.0
    %878 = vmatpush1.msra.mxu0 0.0
    %879 = vmatprep.subr.mxu0 0.0
    %880 = vmatpush1.msra.mxu0 0.0
    %881 = vmatprep.subr.mxu0 0.0
    %882 = vmatpush1.msra.mxu0 0.0
    %883 = vmatprep.subr.mxu0 0.0
    %884 = vmatpush1.msra.mxu0 0.0
    %885 = vmatprep.subr.mxu0 0.0
    %886 = vmatpush1.msra.mxu0 0.0
    %887 = vmatprep.subr.mxu0 0.0
    %888 = vmatpush1.msra.mxu0 0.0
    %889 = vmatprep.subr.mxu0 0.0
    %890 = vmatpush1.msra.mxu0 0.0
    %891 = vmatprep.subr.mxu0 0.0
    %892 = vmatpush1.msra.mxu0 0.0
    %893 = vmatprep.mubr.f32.mxu0 0.0
    %894 = vmatmul.mubr.f32.gmra.mrb[0].mxu0 %v732
    %v895 = vpop.f32.mrb[0].mxu0
    %v896 = vadd.f32 0.0, %v895
    %v897 = vpop.f32.mrb[0].mxu0
    %898 = vdwg.mxu0
    %v900 = vrot.slane %v896, 4
    %v902 = vadd.f32 %v239, %v900
    %v903 = vxor.u32 %v902, 2147483648
    %v904 = vmul.f32 %v903, 1.442695
    %v905 = vpow.pop %v904
    %v906 = vadd.f32 %v905, 1.0
    %v907 = vrcp.pop %v906
    %v908 = vmul.f32 1.0, %v907
    %v909 = vtanh.pop %v902
    %v911 = vrot.slane %v646, 6
    %v913 = vmul.f32 %v908, %v911
    %915 = vrot.lane.b32.xlu0 %v909, 64
    %v916 = vpop.permute.xlu0 %915
    %v918 = vmul.f32 %v908, %v916
    %920 = vrot.lane.b32.xlu0 %v918, 32
    %v921 = vpop.permute.xlu0 %920
    %v923 = vadd.f32 %v913, %v921
    %v924 = vtanh.pop %v923
    %926 = vrot.lane.b32.xlu0 %v924, 64
    %v927 = vpop.permute.xlu0 %926
    %v929 = vmul.f32 %v908, %v927
    %931 = vrot.lane.b32.xlu0 %v828, 32
    %v932 = vpop.permute.xlu0 %931
    %v933 = vsel %vm266, %v932, 0
    %935 = vmatprep.subr.mxu0 0.0
    %936 = vmatpush1.msra.mxu0 %v255
    %937 = vmatprep.subr.mxu0 0.0
    %938 = vmatpush1.msra.mxu0 %v256
    %939 = vmatprep.subr.mxu0 0.0
    %940 = vmatpush1.msra.mxu0 %v257
    %941 = vmatprep.subr.mxu0 0.0
    %942 = vmatpush1.msra.mxu0 %v258
    %943 = vmatprep.subr.mxu0 0.0
    %944 = vmatpush1.msra.mxu0 0.0
    %945 = vmatprep.subr.mxu0 0.0
    %946 = vmatpush1.msra.mxu0 0.0
    %947 = vmatprep.subr.mxu0 0.0
    %948 = vmatpush1.msra.mxu0 0.0
    %949 = vmatprep.subr.mxu0 0.0
    %950 = vmatpush1.msra.mxu0 0.0
    %951 = vmatprep.subr.mxu0 0.0
    %952 = vmatpush1.msra.mxu0 0.0
    %953 = vmatprep.subr.mxu0 0.0
    %954 = vmatpush1.msra.mxu0 0.0
    %955 = vmatprep.subr.mxu0 0.0
    %956 = vmatpush1.msra.mxu0 0.0
    %957 = vmatprep.subr.mxu0 0.0
    %958 = vmatpush1.msra.mxu0 0.0
    %959 = vmatprep.subr.mxu0 0.0
    %960 = vmatpush1.msra.mxu0 0.0
    %961 = vmatprep.subr.mxu0 0.0
    %962 = vmatpush1.msra.mxu0 0.0
    %963 = vmatprep.subr.mxu0 0.0
    %964 = vmatpush1.msra.mxu0 0.0
    %965 = vmatprep.subr.mxu0 0.0
    %966 = vmatpush1.msra.mxu0 0.0
    %967 = vmatprep.subr.mxu0 0.0
    %968 = vmatpush1.msra.mxu0 0.0
    %969 = vmatprep.subr.mxu0 0.0
    %970 = vmatpush1.msra.mxu0 0.0
    %971 = vmatprep.subr.mxu0 0.0
    %972 = vmatpush1.msra.mxu0 0.0
    %973 = vmatprep.subr.mxu0 0.0
    %974 = vmatpush1.msra.mxu0 0.0
    %975 = vmatprep.subr.mxu0 0.0
    %976 = vmatpush1.msra.mxu0 0.0
    %977 = vmatprep.subr.mxu0 0.0
    %978 = vmatpush1.msra.mxu0 0.0
    %979 = vmatprep.subr.mxu0 0.0
    %980 = vmatpush1.msra.mxu0 0.0
    %981 = vmatprep.subr.mxu0 0.0
    %982 = vmatpush1.msra.mxu0 0.0
    %983 = vmatprep.subr.mxu0 0.0
    %984 = vmatpush1.msra.mxu0 0.0
    %985 = vmatprep.subr.mxu0 0.0
    %986 = vmatpush1.msra.mxu0 0.0
    %987 = vmatprep.subr.mxu0 0.0
    %988 = vmatpush1.msra.mxu0 0.0
    %989 = vmatprep.subr.mxu0 0.0
    %990 = vmatpush1.msra.mxu0 0.0
    %991 = vmatprep.subr.mxu0 0.0
    %992 = vmatpush1.msra.mxu0 0.0
    %993 = vmatprep.subr.mxu0 0.0
    %994 = vmatpush1.msra.mxu0 0.0
    %995 = vmatprep.subr.mxu0 0.0
    %996 = vmatpush1.msra.mxu0 0.0
    %997 = vmatprep.subr.mxu0 0.0
    %998 = vmatpush1.msra.mxu0 0.0
    %999 = vmatprep.mubr.f32.mxu0 0.0
    %1000 = vmatmul.mubr.f32.gmra.mrb[0].mxu0 %v933
    %v1001 = vpop.f32.mrb[0].mxu0
    %v1002 = vadd.f32 0.0, %v1001
    %v1003 = vpop.f32.mrb[0].mxu0
    %1004 = vdwg.mxu0
    %v1006 = vrot.slane %v929, 4
    %1007 = vrot.lane.b32.xlu0 %v1006, 32
    %v1008 = vpop.permute.xlu0 %1007
    %v1009 = vsel %vm266, %v1008, 0
    %1011 = vmatprep.subr.mxu0 0.0
    %1012 = vmatpush1.msra.mxu0 %v251
    %1013 = vmatprep.subr.mxu0 0.0
    %1014 = vmatpush1.msra.mxu0 %v252
    %1015 = vmatprep.subr.mxu0 0.0
    %1016 = vmatpush1.msra.mxu0 %v253
    %1017 = vmatprep.subr.mxu0 0.0
    %1018 = vmatpush1.msra.mxu0 %v254
    %1019 = vmatprep.subr.mxu0 0.0
    %1020 = vmatpush1.msra.mxu0 0.0
    %1021 = vmatprep.subr.mxu0 0.0
    %1022 = vmatpush1.msra.mxu0 0.0
    %1023 = vmatprep.subr.mxu0 0.0
    %1024 = vmatpush1.msra.mxu0 0.0
    %1025 = vmatprep.subr.mxu0 0.0
    %1026 = vmatpush1.msra.mxu0 0.0
    %1027 = vmatprep.subr.mxu0 0.0
    %1028 = vmatpush1.msra.mxu0 0.0
    %1029 = vmatprep.subr.mxu0 0.0
    %1030 = vmatpush1.msra.mxu0 0.0
    %1031 = vmatprep.subr.mxu0 0.0
    %1032 = vmatpush1.msra.mxu0 0.0
    %1033 = vmatprep.subr.mxu0 0.0
    %1034 = vmatpush1.msra.mxu0 0.0
    %1035 = vmatprep.subr.mxu0 0.0
    %1036 = vmatpush1.msra.mxu0 0.0
    %1037 = vmatprep.subr.mxu0 0.0
    %1038 = vmatpush1.msra.mxu0 0.0
    %1039 = vmatprep.subr.mxu0 0.0
    %1040 = vmatpush1.msra.mxu0 0.0
    %1041 = vmatprep.subr.mxu0 0.0
    %1042 = vmatpush1.msra.mxu0 0.0
    %1043 = vmatprep.subr.mxu0 0.0
    %1044 = vmatpush1.msra.mxu0 0.0
    %1045 = vmatprep.subr.mxu0 0.0
    %1046 = vmatpush1.msra.mxu0 0.0
    %1047 = vmatprep.subr.mxu0 0.0
    %1048 = vmatpush1.msra.mxu0 0.0
    %1049 = vmatprep.subr.mxu0 0.0
    %1050 = vmatpush1.msra.mxu0 0.0
    %1051 = vmatprep.subr.mxu0 0.0
    %1052 = vmatpush1.msra.mxu0 0.0
    %1053 = vmatprep.subr.mxu0 0.0
    %1054 = vmatpush1.msra.mxu0 0.0
    %1055 = vmatprep.subr.mxu0 0.0
    %1056 = vmatpush1.msra.mxu0 0.0
    %1057 = vmatprep.subr.mxu0 0.0
    %1058 = vmatpush1.msra.mxu0 0.0
    %1059 = vmatprep.subr.mxu0 0.0
    %1060 = vmatpush1.msra.mxu0 0.0
    %1061 = vmatprep.subr.mxu0 0.0
    %1062 = vmatpush1.msra.mxu0 0.0
    %1063 = vmatprep.subr.mxu0 0.0
    %1064 = vmatpush1.msra.mxu0 0.0
    %1065 = vmatprep.subr.mxu0 0.0
    %1066 = vmatpush1.msra.mxu0 0.0
    %1067 = vmatprep.subr.mxu0 0.0
    %1068 = vmatpush1.msra.mxu0 0.0
    %1069 = vmatprep.subr.mxu0 0.0
    %1070 = vmatpush1.msra.mxu0 0.0
    %1071 = vmatprep.subr.mxu0 0.0
    %1072 = vmatpush1.msra.mxu0 0.0
    %1073 = vmatprep.subr.mxu0 0.0
    %1074 = vmatpush1.msra.mxu0 0.0
    %1075 = vmatprep.mubr.f32.mxu0 0.0
    %1076 = vmatmul.mubr.f32.gmra.mrb[0].mxu0 %v1009
    %v1077 = vpop.f32.mrb[0].mxu0
    %v1078 = vadd.f32 %v1002, %v1077
    %v1079 = vpop.f32.mrb[0].mxu0
    %1080 = vdwg.mxu0
    %v1081 = vadd.f32 %v1078, %v521
    %v1082 = vxor.u32 %v1081, 2147483648
    %v1083 = vmul.f32 %v1082, 1.442695
    %v1084 = vpow.pop %v1083
    %v1085 = vadd.f32 %v1084, 1.0
    %v1086 = vrcp.pop %v1085
    %v1087 = vmul.f32 1.0, %v1086
    %v1088 = vtanh.pop %v1081
    %v1089 = vmul.f32 %v1087, %v822
    %1091 = vrot.lane.b32.xlu0 %v1088, 64
    %v1092 = vpop.permute.xlu0 %1091
    %v1094 = vmul.f32 %v1087, %v1092
    %1096 = vrot.lane.b32.xlu0 %v1094, 32
    %v1097 = vpop.permute.xlu0 %1096
    %v1099 = vadd.f32 %v1089, %v1097
    %v1100 = vtanh.pop %v1099
    %1102 = vrot.lane.b32.xlu0 %v1100, 64
    %v1103 = vpop.permute.xlu0 %1102
    %v1105 = vmul.f32 %v1087, %v1103
    %1106 = vmatprep.subr.mxu0 0.0
    %1107 = vmatpush1.msra.mxu0 %v247
    %1108 = vmatprep.subr.mxu0 0.0
    %1109 = vmatpush1.msra.mxu0 %v248
    %1110 = vmatprep.subr.mxu0 0.0
    %1111 = vmatpush1.msra.mxu0 %v249
    %1112 = vmatprep.subr.mxu0 0.0
    %1113 = vmatpush1.msra.mxu0 %v250
    %1114 = vmatprep.subr.mxu0 0.0
    %1115 = vmatpush1.msra.mxu0 0.0
    %1116 = vmatprep.subr.mxu0 0.0
    %1117 = vmatpush1.msra.mxu0 0.0
    %1118 = vmatprep.subr.mxu0 0.0
    %1119 = vmatpush1.msra.mxu0 0.0
    %1120 = vmatprep.subr.mxu0 0.0
    %1121 = vmatpush1.msra.mxu0 0.0
    %1122 = vmatprep.subr.mxu0 0.0
    %1123 = vmatpush1.msra.mxu0 0.0
    %1124 = vmatprep.subr.mxu0 0.0
    %1125 = vmatpush1.msra.mxu0 0.0
    %1126 = vmatprep.subr.mxu0 0.0
    %1127 = vmatpush1.msra.mxu0 0.0
    %1128 = vmatprep.subr.mxu0 0.0
    %1129 = vmatpush1.msra.mxu0 0.0
    %1130 = vmatprep.subr.mxu0 0.0
    %1131 = vmatpush1.msra.mxu0 0.0
    %1132 = vmatprep.subr.mxu0 0.0
    %1133 = vmatpush1.msra.mxu0 0.0
    %1134 = vmatprep.subr.mxu0 0.0
    %1135 = vmatpush1.msra.mxu0 0.0
    %1136 = vmatprep.subr.mxu0 0.0
    %1137 = vmatpush1.msra.mxu0 0.0
    %1138 = vmatprep.subr.mxu0 0.0
    %1139 = vmatpush1.msra.mxu0 0.0
    %1140 = vmatprep.subr.mxu0 0.0
    %1141 = vmatpush1.msra.mxu0 0.0
    %1142 = vmatprep.subr.mxu0 0.0
    %1143 = vmatpush1.msra.mxu0 0.0
    %1144 = vmatprep.subr.mxu0 0.0
    %1145 = vmatpush1.msra.mxu0 0.0
    %1146 = vmatprep.subr.mxu0 0.0
    %1147 = vmatpush1.msra.mxu0 0.0
    %1148 = vmatprep.subr.mxu0 0.0
    %1149 = vmatpush1.msra.mxu0 0.0
    %1150 = vmatprep.subr.mxu0 0.0
    %1151 = vmatpush1.msra.mxu0 0.0
    %1152 = vmatprep.subr.mxu0 0.0
    %1153 = vmatpush1.msra.mxu0 0.0
    %1154 = vmatprep.subr.mxu0 0.0
    %1155 = vmatpush1.msra.mxu0 0.0
    %1156 = vmatprep.subr.mxu0 0.0
    %1157 = vmatpush1.msra.mxu0 0.0
    %1158 = vmatprep.subr.mxu0 0.0
    %1159 = vmatpush1.msra.mxu0 0.0
    %1160 = vmatprep.subr.mxu0 0.0
    %1161 = vmatpush1.msra.mxu0 0.0
    %1162 = vmatprep.subr.mxu0 0.0
    %1163 = vmatpush1.msra.mxu0 0.0
    %1164 = vmatprep.subr.mxu0 0.0
    %1165 = vmatpush1.msra.mxu0 0.0
    %1166 = vmatprep.subr.mxu0 0.0
    %1167 = vmatpush1.msra.mxu0 0.0
    %1168 = vmatprep.subr.mxu0 0.0
    %1169 = vmatpush1.msra.mxu0 0.0
    %1170 = vmatprep.mubr.f32.mxu0 0.0
    %1171 = vmatmul.mubr.f32.gmra.mrb[0].mxu0 %v1009
    %v1172 = vpop.f32.mrb[0].mxu0
    %v1173 = vadd.f32 0.0, %v1172
    %v1174 = vpop.f32.mrb[0].mxu0
    %1175 = vdwg.mxu0
    %v1177 = vrot.slane %v1173, 2
    %v1179 = vadd.f32 %v239, %v1177
    %v1180 = vxor.u32 %v1179, 2147483648
    %v1181 = vmul.f32 %v1180, 1.442695
    %v1182 = vpow.pop %v1181
    %v1183 = vadd.f32 %v1182, 1.0
    %v1184 = vrcp.pop %v1183
    %v1185 = vmul.f32 1.0, %v1184
    %v1186 = vtanh.pop %v1179
    %v1188 = vrot.slane %v923, 6
    %v1190 = vmul.f32 %v1185, %v1188
    %1192 = vrot.lane.b32.xlu0 %v1186, 64
    %v1193 = vpop.permute.xlu0 %1192
    %v1195 = vmul.f32 %v1185, %v1193
    %1197 = vrot.lane.b32.xlu0 %v1195, 32
    %v1198 = vpop.permute.xlu0 %1197
    %v1200 = vadd.f32 %v1190, %v1198
    %v1201 = vtanh.pop %v1200
    %1203 = vrot.lane.b32.xlu0 %v1201, 64
    %v1204 = vpop.permute.xlu0 %1203
    %v1206 = vmul.f32 %v1185, %v1204
    %1208 = vrot.lane.b32.xlu0 %v1105, 32
    %v1209 = vpop.permute.xlu0 %1208
    %v1210 = vsel %vm266, %v1209, 0
    %1212 = vmatprep.subr.mxu0 0.0
    %1213 = vmatpush1.msra.mxu0 %v255
    %1214 = vmatprep.subr.mxu0 0.0
    %1215 = vmatpush1.msra.mxu0 %v256
    %1216 = vmatprep.subr.mxu0 0.0
    %1217 = vmatpush1.msra.mxu0 %v257
    %1218 = vmatprep.subr.mxu0 0.0
    %1219 = vmatpush1.msra.mxu0 %v258
    %1220 = vmatprep.subr.mxu0 0.0
    %1221 = vmatpush1.msra.mxu0 0.0
    %1222 = vmatprep.subr.mxu0 0.0
    %1223 = vmatpush1.msra.mxu0 0.0
    %1224 = vmatprep.subr.mxu0 0.0
    %1225 = vmatpush1.msra.mxu0 0.0
    %1226 = vmatprep.subr.mxu0 0.0
    %1227 = vmatpush1.msra.mxu0 0.0
    %1228 = vmatprep.subr.mxu0 0.0
    %1229 = vmatpush1.msra.mxu0 0.0
    %1230 = vmatprep.subr.mxu0 0.0
    %1231 = vmatpush1.msra.mxu0 0.0
    %1232 = vmatprep.subr.mxu0 0.0
    %1233 = vmatpush1.msra.mxu0 0.0
    %1234 = vmatprep.subr.mxu0 0.0
    %1235 = vmatpush1.msra.mxu0 0.0
    %1236 = vmatprep.subr.mxu0 0.0
    %1237 = vmatpush1.msra.mxu0 0.0
    %1238 = vmatprep.subr.mxu0 0.0
    %1239 = vmatpush1.msra.mxu0 0.0
    %1240 = vmatprep.subr.mxu0 0.0
    %1241 = vmatpush1.msra.mxu0 0.0
    %1242 = vmatprep.subr.mxu0 0.0
    %1243 = vmatpush1.msra.mxu0 0.0
    %1244 = vmatprep.subr.mxu0 0.0
    %1245 = vmatpush1.msra.mxu0 0.0
    %1246 = vmatprep.subr.mxu0 0.0
    %1247 = vmatpush1.msra.mxu0 0.0
    %1248 = vmatprep.subr.mxu0 0.0
    %1249 = vmatpush1.msra.mxu0 0.0
    %1250 = vmatprep.subr.mxu0 0.0
    %1251 = vmatpush1.msra.mxu0 0.0
    %1252 = vmatprep.subr.mxu0 0.0
    %1253 = vmatpush1.msra.mxu0 0.0
    %1254 = vmatprep.subr.mxu0 0.0
    %1255 = vmatpush1.msra.mxu0 0.0
    %1256 = vmatprep.subr.mxu0 0.0
    %1257 = vmatpush1.msra.mxu0 0.0
    %1258 = vmatprep.subr.mxu0 0.0
    %1259 = vmatpush1.msra.mxu0 0.0
    %1260 = vmatprep.subr.mxu0 0.0
    %1261 = vmatpush1.msra.mxu0 0.0
    %1262 = vmatprep.subr.mxu0 0.0
    %1263 = vmatpush1.msra.mxu0 0.0
    %1264 = vmatprep.subr.mxu0 0.0
    %1265 = vmatpush1.msra.mxu0 0.0
    %1266 = vmatprep.subr.mxu0 0.0
    %1267 = vmatpush1.msra.mxu0 0.0
    %1268 = vmatprep.subr.mxu0 0.0
    %1269 = vmatpush1.msra.mxu0 0.0
    %1270 = vmatprep.subr.mxu0 0.0
    %1271 = vmatpush1.msra.mxu0 0.0
    %1272 = vmatprep.subr.mxu0 0.0
    %1273 = vmatpush1.msra.mxu0 0.0
    %1274 = vmatprep.subr.mxu0 0.0
    %1275 = vmatpush1.msra.mxu0 0.0
    %1276 = vmatprep.mubr.f32.mxu0 0.0
    %1277 = vmatmul.mubr.f32.gmra.mrb[0].mxu0 %v1210
    %v1278 = vpop.f32.mrb[0].mxu0
    %v1279 = vadd.f32 0.0, %v1278
    %v1280 = vpop.f32.mrb[0].mxu0
    %1281 = vdwg.mxu0
    %v1283 = vrot.slane %v1206, 6
    %1284 = vrot.lane.b32.xlu0 %v1283, 32
    %v1285 = vpop.permute.xlu0 %1284
    %v1286 = vsel %vm266, %v1285, 0
    %1288 = vmatprep.subr.mxu0 0.0
    %1289 = vmatpush1.msra.mxu0 %v251
    %1290 = vmatprep.subr.mxu0 0.0
    %1291 = vmatpush1.msra.mxu0 %v252
    %1292 = vmatprep.subr.mxu0 0.0
    %1293 = vmatpush1.msra.mxu0 %v253
    %1294 = vmatprep.subr.mxu0 0.0
    %1295 = vmatpush1.msra.mxu0 %v254
    %1296 = vmatprep.subr.mxu0 0.0
    %1297 = vmatpush1.msra.mxu0 0.0
    %1298 = vmatprep.subr.mxu0 0.0
    %1299 = vmatpush1.msra.mxu0 0.0
    %1300 = vmatprep.subr.mxu0 0.0
    %1301 = vmatpush1.msra.mxu0 0.0
    %1302 = vmatprep.subr.mxu0 0.0
    %1303 = vmatpush1.msra.mxu0 0.0
    %1304 = vmatprep.subr.mxu0 0.0
    %1305 = vmatpush1.msra.mxu0 0.0
    %1306 = vmatprep.subr.mxu0 0.0
    %1307 = vmatpush1.msra.mxu0 0.0
    %1308 = vmatprep.subr.mxu0 0.0
    %1309 = vmatpush1.msra.mxu0 0.0
    %1310 = vmatprep.subr.mxu0 0.0
    %1311 = vmatpush1.msra.mxu0 0.0
    %1312 = vmatprep.subr.mxu0 0.0
    %1313 = vmatpush1.msra.mxu0 0.0
    %1314 = vmatprep.subr.mxu0 0.0
    %1315 = vmatpush1.msra.mxu0 0.0
    %1316 = vmatprep.subr.mxu0 0.0
    %1317 = vmatpush1.msra.mxu0 0.0
    %1318 = vmatprep.subr.mxu0 0.0
    %1319 = vmatpush1.msra.mxu0 0.0
    %1320 = vmatprep.subr.mxu0 0.0
    %1321 = vmatpush1.msra.mxu0 0.0
    %1322 = vmatprep.subr.mxu0 0.0
    %1323 = vmatpush1.msra.mxu0 0.0
    %1324 = vmatprep.subr.mxu0 0.0
    %1325 = vmatpush1.msra.mxu0 0.0
    %1326 = vmatprep.subr.mxu0 0.0
    %1327 = vmatpush1.msra.mxu0 0.0
    %1328 = vmatprep.subr.mxu0 0.0
    %1329 = vmatpush1.msra.mxu0 0.0
    %1330 = vmatprep.subr.mxu0 0.0
    %1331 = vmatpush1.msra.mxu0 0.0
    %1332 = vmatprep.subr.mxu0 0.0
    %1333 = vmatpush1.msra.mxu0 0.0
    %1334 = vmatprep.subr.mxu0 0.0
    %1335 = vmatpush1.msra.mxu0 0.0
    %1336 = vmatprep.subr.mxu0 0.0
    %1337 = vmatpush1.msra.mxu0 0.0
    %1338 = vmatprep.subr.mxu0 0.0
    %1339 = vmatpush1.msra.mxu0 0.0
    %1340 = vmatprep.subr.mxu0 0.0
    %1341 = vmatpush1.msra.mxu0 0.0
    %1342 = vmatprep.subr.mxu0 0.0
    %1343 = vmatpush1.msra.mxu0 0.0
    %1344 = vmatprep.subr.mxu0 0.0
    %1345 = vmatpush1.msra.mxu0 0.0
    %1346 = vmatprep.subr.mxu0 0.0
    %1347 = vmatpush1.msra.mxu0 0.0
    %1348 = vmatprep.subr.mxu0 0.0
    %1349 = vmatpush1.msra.mxu0 0.0
    %1350 = vmatprep.subr.mxu0 0.0
    %1351 = vmatpush1.msra.mxu0 0.0
    %1352 = vmatprep.mubr.f32.mxu0 0.0
    %1353 = vmatmul.mubr.f32.gmra.mrb[0].mxu0 %v1286
    %v1354 = vpop.f32.mrb[0].mxu0
    %v1355 = vadd.f32 %v1279, %v1354
    %v1356 = vpop.f32.mrb[0].mxu0
    %1357 = vdwg.mxu0
    %v1358 = vadd.f32 %v1355, %v521
    %v1359 = vxor.u32 %v1358, 2147483648
    %v1360 = vmul.f32 %v1359, 1.442695
    %v1361 = vpow.pop %v1360
    %v1362 = vadd.f32 %v1361, 1.0
    %v1363 = vrcp.pop %v1362
    %v1364 = vmul.f32 1.0, %v1363
    %v1365 = vtanh.pop %v1358
    %v1366 = vmul.f32 %v1364, %v1099
    %1368 = vrot.lane.b32.xlu0 %v1365, 64
    %v1369 = vpop.permute.xlu0 %1368
    %v1371 = vmul.f32 %v1364, %v1369
    %1373 = vrot.lane.b32.xlu0 %v1371, 32
    %v1374 = vpop.permute.xlu0 %1373
    %v1376 = vadd.f32 %v1366, %v1374
    %v1377 = vtanh.pop %v1376
    %1379 = vrot.lane.b32.xlu0 %v1377, 64
    %v1380 = vpop.permute.xlu0 %1379
    %v1382 = vmul.f32 %v1364, %v1380
    %1383 = vmatprep.subr.mxu0 0.0
    %1384 = vmatpush1.msra.mxu0 %v247
    %1385 = vmatprep.subr.mxu0 0.0
    %1386 = vmatpush1.msra.mxu0 %v248
    %1387 = vmatprep.subr.mxu0 0.0
    %1388 = vmatpush1.msra.mxu0 %v249
    %1389 = vmatprep.subr.mxu0 0.0
    %1390 = vmatpush1.msra.mxu0 %v250
    %1391 = vmatprep.subr.mxu0 0.0
    %1392 = vmatpush1.msra.mxu0 0.0
    %1393 = vmatprep.subr.mxu0 0.0
    %1394 = vmatpush1.msra.mxu0 0.0
    %1395 = vmatprep.subr.mxu0 0.0
    %1396 = vmatpush1.msra.mxu0 0.0
    %1397 = vmatprep.subr.mxu0 0.0
    %1398 = vmatpush1.msra.mxu0 0.0
    %1399 = vmatprep.subr.mxu0 0.0
    %1400 = vmatpush1.msra.mxu0 0.0
    %1401 = vmatprep.subr.mxu0 0.0
    %1402 = vmatpush1.msra.mxu0 0.0
    %1403 = vmatprep.subr.mxu0 0.0
    %1404 = vmatpush1.msra.mxu0 0.0
    %1405 = vmatprep.subr.mxu0 0.0
    %1406 = vmatpush1.msra.mxu0 0.0
    %1407 = vmatprep.subr.mxu0 0.0
    %1408 = vmatpush1.msra.mxu0 0.0
    %1409 = vmatprep.subr.mxu0 0.0
    %1410 = vmatpush1.msra.mxu0 0.0
    %1411 = vmatprep.subr.mxu0 0.0
    %1412 = vmatpush1.msra.mxu0 0.0
    %1413 = vmatprep.subr.mxu0 0.0
    %1414 = vmatpush1.msra.mxu0 0.0
    %1415 = vmatprep.subr.mxu0 0.0
    %1416 = vmatpush1.msra.mxu0 0.0
    %1417 = vmatprep.subr.mxu0 0.0
    %1418 = vmatpush1.msra.mxu0 0.0
    %1419 = vmatprep.subr.mxu0 0.0
    %1420 = vmatpush1.msra.mxu0 0.0
    %1421 = vmatprep.subr.mxu0 0.0
    %1422 = vmatpush1.msra.mxu0 0.0
    %1423 = vmatprep.subr.mxu0 0.0
    %1424 = vmatpush1.msra.mxu0 0.0
    %1425 = vmatprep.subr.mxu0 0.0
    %1426 = vmatpush1.msra.mxu0 0.0
    %1427 = vmatprep.subr.mxu0 0.0
    %1428 = vmatpush1.msra.mxu0 0.0
    %1429 = vmatprep.subr.mxu0 0.0
    %1430 = vmatpush1.msra.mxu0 0.0
    %1431 = vmatprep.subr.mxu0 0.0
    %1432 = vmatpush1.msra.mxu0 0.0
    %1433 = vmatprep.subr.mxu0 0.0
    %1434 = vmatpush1.msra.mxu0 0.0
    %1435 = vmatprep.subr.mxu0 0.0
    %1436 = vmatpush1.msra.mxu0 0.0
    %1437 = vmatprep.subr.mxu0 0.0
    %1438 = vmatpush1.msra.mxu0 0.0
    %1439 = vmatprep.subr.mxu0 0.0
    %1440 = vmatpush1.msra.mxu0 0.0
    %1441 = vmatprep.subr.mxu0 0.0
    %1442 = vmatpush1.msra.mxu0 0.0
    %1443 = vmatprep.subr.mxu0 0.0
    %1444 = vmatpush1.msra.mxu0 0.0
    %1445 = vmatprep.subr.mxu0 0.0
    %1446 = vmatpush1.msra.mxu0 0.0
    %1447 = vmatprep.mubr.f32.mxu0 0.0
    %1448 = vmatmul.mubr.f32.gmra.mrb[0].mxu0 %v1286
    %v1449 = vpop.f32.mrb[0].mxu0
    %v1450 = vadd.f32 0.0, %v1449
    %v1451 = vpop.f32.mrb[0].mxu0
    %1452 = vdwg.mxu0
    %v1453 = vadd.f32 %v244, %v1450
    %v1454 = vxor.u32 %v1453, 2147483648
    %v1455 = vmul.f32 %v1454, 1.442695
    %v1456 = vpow.pop %v1455
    %v1457 = vadd.f32 %v1456, 1.0
    %v1458 = vrcp.pop %v1457
    %v1459 = vmul.f32 1.0, %v1458
    %v1460 = vtanh.pop %v1453
    %v1462 = vrot.slane %v1200, 6
    %v1464 = vmul.f32 %v1459, %v1462
    %1466 = vrot.lane.b32.xlu0 %v1460, 64
    %v1467 = vpop.permute.xlu0 %1466
    %v1469 = vmul.f32 %v1459, %v1467
    %1471 = vrot.lane.b32.xlu0 %v1469, 32
    %v1472 = vpop.permute.xlu0 %1471
    %v1474 = vadd.f32 %v1464, %v1472
    %v1475 = vtanh.pop %v1474
    %1477 = vrot.lane.b32.xlu0 %v1475, 64
    %v1478 = vpop.permute.xlu0 %1477
    %v1480 = vmul.f32 %v1459, %v1478
    %1482 = vrot.lane.b32.xlu0 %v1382, 32
    %v1483 = vpop.permute.xlu0 %1482
    %v1484 = vsel %vm266, %v1483, 0
    %1486 = vmatprep.subr.mxu0 0.0
    %1487 = vmatpush1.msra.mxu0 %v255
    %1488 = vmatprep.subr.mxu0 0.0
    %1489 = vmatpush1.msra.mxu0 %v256
    %1490 = vmatprep.subr.mxu0 0.0
    %1491 = vmatpush1.msra.mxu0 %v257
    %1492 = vmatprep.subr.mxu0 0.0
    %1493 = vmatpush1.msra.mxu0 %v258
    %1494 = vmatprep.subr.mxu0 0.0
    %1495 = vmatpush1.msra.mxu0 0.0
    %1496 = vmatprep.subr.mxu0 0.0
    %1497 = vmatpush1.msra.mxu0 0.0
    %1498 = vmatprep.subr.mxu0 0.0
    %1499 = vmatpush1.msra.mxu0 0.0
    %1500 = vmatprep.subr.mxu0 0.0
    %1501 = vmatpush1.msra.mxu0 0.0
    %1502 = vmatprep.subr.mxu0 0.0
    %1503 = vmatpush1.msra.mxu0 0.0
    %1504 = vmatprep.subr.mxu0 0.0
    %1505 = vmatpush1.msra.mxu0 0.0
    %1506 = vmatprep.subr.mxu0 0.0
    %1507 = vmatpush1.msra.mxu0 0.0
    %1508 = vmatprep.subr.mxu0 0.0
    %1509 = vmatpush1.msra.mxu0 0.0
    %1510 = vmatprep.subr.mxu0 0.0
    %1511 = vmatpush1.msra.mxu0 0.0
    %1512 = vmatprep.subr.mxu0 0.0
    %1513 = vmatpush1.msra.mxu0 0.0
    %1514 = vmatprep.subr.mxu0 0.0
    %1515 = vmatpush1.msra.mxu0 0.0
    %1516 = vmatprep.subr.mxu0 0.0
    %1517 = vmatpush1.msra.mxu0 0.0
    %1518 = vmatprep.subr.mxu0 0.0
    %1519 = vmatpush1.msra.mxu0 0.0
    %1520 = vmatprep.subr.mxu0 0.0
    %1521 = vmatpush1.msra.mxu0 0.0
    %1522 = vmatprep.subr.mxu0 0.0
    %1523 = vmatpush1.msra.mxu0 0.0
    %1524 = vmatprep.subr.mxu0 0.0
    %1525 = vmatpush1.msra.mxu0 0.0
    %1526 = vmatprep.subr.mxu0 0.0
    %1527 = vmatpush1.msra.mxu0 0.0
    %1528 = vmatprep.subr.mxu0 0.0
    %1529 = vmatpush1.msra.mxu0 0.0
    %1530 = vmatprep.subr.mxu0 0.0
    %1531 = vmatpush1.msra.mxu0 0.0
    %1532 = vmatprep.subr.mxu0 0.0
    %1533 = vmatpush1.msra.mxu0 0.0
    %1534 = vmatprep.subr.mxu0 0.0
    %1535 = vmatpush1.msra.mxu0 0.0
    %1536 = vmatprep.subr.mxu0 0.0
    %1537 = vmatpush1.msra.mxu0 0.0
    %1538 = vmatprep.subr.mxu0 0.0
    %1539 = vmatpush1.msra.mxu0 0.0
    %1540 = vmatprep.subr.mxu0 0.0
    %1541 = vmatpush1.msra.mxu0 0.0
    %1542 = vmatprep.subr.mxu0 0.0
    %1543 = vmatpush1.msra.mxu0 0.0
    %1544 = vmatprep.subr.mxu0 0.0
    %1545 = vmatpush1.msra.mxu0 0.0
    %1546 = vmatprep.subr.mxu0 0.0
    %1547 = vmatpush1.msra.mxu0 0.0
    %1548 = vmatprep.subr.mxu0 0.0
    %1549 = vmatpush1.msra.mxu0 0.0
    %1550 = vmatprep.mubr.f32.mxu0 0.0
    %1551 = vmatmul.mubr.f32.gmra.mrb[0].mxu0 %v1484
    %v1552 = vpop.f32.mrb[0].mxu0
    %v1553 = vadd.f32 0.0, %v1552
    %v1554 = vpop.f32.mrb[0].mxu0
    %1555 = vdwg.mxu0
    %1557 = vrot.lane.b32.xlu0 %v1480, 32
    %v1558 = vpop.permute.xlu0 %1557
    %v1559 = vsel %vm266, %v1558, 0
    %1561 = vmatprep.subr.mxu0 0.0
    %1562 = vmatpush1.msra.mxu0 %v251
    %1563 = vmatprep.subr.mxu0 0.0
    %1564 = vmatpush1.msra.mxu0 %v252
    %1565 = vmatprep.subr.mxu0 0.0
    %1566 = vmatpush1.msra.mxu0 %v253
    %1567 = vmatprep.subr.mxu0 0.0
    %1568 = vmatpush1.msra.mxu0 %v254
    %1569 = vmatprep.subr.mxu0 0.0
    %1570 = vmatpush1.msra.mxu0 0.0
    %1571 = vmatprep.subr.mxu0 0.0
    %1572 = vmatpush1.msra.mxu0 0.0
    %1573 = vmatprep.subr.mxu0 0.0
    %1574 = vmatpush1.msra.mxu0 0.0
    %1575 = vmatprep.subr.mxu0 0.0
    %1576 = vmatpush1.msra.mxu0 0.0
    %1577 = vmatprep.subr.mxu0 0.0
    %1578 = vmatpush1.msra.mxu0 0.0
    %1579 = vmatprep.subr.mxu0 0.0
    %1580 = vmatpush1.msra.mxu0 0.0
    %1581 = vmatprep.subr.mxu0 0.0
    %1582 = vmatpush1.msra.mxu0 0.0
    %1583 = vmatprep.subr.mxu0 0.0
    %1584 = vmatpush1.msra.mxu0 0.0
    %1585 = vmatprep.subr.mxu0 0.0
    %1586 = vmatpush1.msra.mxu0 0.0
    %1587 = vmatprep.subr.mxu0 0.0
    %1588 = vmatpush1.msra.mxu0 0.0
    %1589 = vmatprep.subr.mxu0 0.0
    %1590 = vmatpush1.msra.mxu0 0.0
    %1591 = vmatprep.subr.mxu0 0.0
    %1592 = vmatpush1.msra.mxu0 0.0
    %1593 = vmatprep.subr.mxu0 0.0
    %1594 = vmatpush1.msra.mxu0 0.0
    %1595 = vmatprep.subr.mxu0 0.0
    %1596 = vmatpush1.msra.mxu0 0.0
    %1597 = vmatprep.subr.mxu0 0.0
    %1598 = vmatpush1.msra.mxu0 0.0
    %1599 = vmatprep.subr.mxu0 0.0
    %1600 = vmatpush1.msra.mxu0 0.0
    %1601 = vmatprep.subr.mxu0 0.0
    %1602 = vmatpush1.msra.mxu0 0.0
    %1603 = vmatprep.subr.mxu0 0.0
    %1604 = vmatpush1.msra.mxu0 0.0
    %1605 = vmatprep.subr.mxu0 0.0
    %1606 = vmatpush1.msra.mxu0 0.0
    %1607 = vmatprep.subr.mxu0 0.0
    %1608 = vmatpush1.msra.mxu0 0.0
    %1609 = vmatprep.subr.mxu0 0.0
    %1610 = vmatpush1.msra.mxu0 0.0
    %1611 = vmatprep.subr.mxu0 0.0
    %1612 = vmatpush1.msra.mxu0 0.0
    %1613 = vmatprep.subr.mxu0 0.0
    %1614 = vmatpush1.msra.mxu0 0.0
    %1615 = vmatprep.subr.mxu0 0.0
    %1616 = vmatpush1.msra.mxu0 0.0
    %1617 = vmatprep.subr.mxu0 0.0
    %1618 = vmatpush1.msra.mxu0 0.0
    %1619 = vmatprep.subr.mxu0 0.0
    %1620 = vmatpush1.msra.mxu0 0.0
    %1621 = vmatprep.subr.mxu0 0.0
    %1622 = vmatpush1.msra.mxu0 0.0
    %1623 = vmatprep.subr.mxu0 0.0
    %1624 = vmatpush1.msra.mxu0 0.0
    %1625 = vmatprep.mubr.f32.mxu0 0.0
    %1626 = vmatmul.mubr.f32.gmra.mrb[0].mxu0 %v1559
    %v1627 = vpop.f32.mrb[0].mxu0
    %v1628 = vadd.f32 %v1553, %v1627
    %v1629 = vpop.f32.mrb[0].mxu0
    %1630 = vdwg.mxu0
    %v1631 = vadd.f32 %v1628, %v521
    %v1632 = vxor.u32 %v1631, 2147483648
    %v1633 = vmul.f32 %v1632, 1.442695
    %v1634 = vpow.pop %v1633
    %v1635 = vadd.f32 %v1634, 1.0
    %v1636 = vrcp.pop %v1635
    %v1637 = vmul.f32 1.0, %v1636
    %v1638 = vtanh.pop %v1631
    %v1639 = vmul.f32 %v1637, %v1376
    %1641 = vrot.lane.b32.xlu0 %v1638, 64
    %v1642 = vpop.permute.xlu0 %1641
    %v1644 = vmul.f32 %v1637, %v1642
    %1646 = vrot.lane.b32.xlu0 %v1644, 32
    %v1647 = vpop.permute.xlu0 %1646
    %v1649 = vadd.f32 %v1639, %v1647
    %v1650 = vtanh.pop %v1649
    %1652 = vrot.lane.b32.xlu0 %v1650, 64
    %v1653 = vpop.permute.xlu0 %1652
    %v1655 = vmul.f32 %v1637, %v1653
    %1656 = vmatprep.subr.mxu0 0.0
    %1657 = vmatpush1.msra.mxu0 %v247
    %1658 = vmatprep.subr.mxu0 0.0
    %1659 = vmatpush1.msra.mxu0 %v248
    %1660 = vmatprep.subr.mxu0 0.0
    %1661 = vmatpush1.msra.mxu0 %v249
    %1662 = vmatprep.subr.mxu0 0.0
    %1663 = vmatpush1.msra.mxu0 %v250
    %1664 = vmatprep.subr.mxu0 0.0
    %1665 = vmatpush1.msra.mxu0 0.0
    %1666 = vmatprep.subr.mxu0 0.0
    %1667 = vmatpush1.msra.mxu0 0.0
    %1668 = vmatprep.subr.mxu0 0.0
    %1669 = vmatpush1.msra.mxu0 0.0
    %1670 = vmatprep.subr.mxu0 0.0
    %1671 = vmatpush1.msra.mxu0 0.0
    %1672 = vmatprep.subr.mxu0 0.0
    %1673 = vmatpush1.msra.mxu0 0.0
    %1674 = vmatprep.subr.mxu0 0.0
    %1675 = vmatpush1.msra.mxu0 0.0
    %1676 = vmatprep.subr.mxu0 0.0
    %1677 = vmatpush1.msra.mxu0 0.0
    %1678 = vmatprep.subr.mxu0 0.0
    %1679 = vmatpush1.msra.mxu0 0.0
    %1680 = vmatprep.subr.mxu0 0.0
    %1681 = vmatpush1.msra.mxu0 0.0
    %1682 = vmatprep.subr.mxu0 0.0
    %1683 = vmatpush1.msra.mxu0 0.0
    %1684 = vmatprep.subr.mxu0 0.0
    %1685 = vmatpush1.msra.mxu0 0.0
    %1686 = vmatprep.subr.mxu0 0.0
    %1687 = vmatpush1.msra.mxu0 0.0
    %1688 = vmatprep.subr.mxu0 0.0
    %1689 = vmatpush1.msra.mxu0 0.0
    %1690 = vmatprep.subr.mxu0 0.0
    %1691 = vmatpush1.msra.mxu0 0.0
    %1692 = vmatprep.subr.mxu0 0.0
    %1693 = vmatpush1.msra.mxu0 0.0
    %1694 = vmatprep.subr.mxu0 0.0
    %1695 = vmatpush1.msra.mxu0 0.0
    %1696 = vmatprep.subr.mxu0 0.0
    %1697 = vmatpush1.msra.mxu0 0.0
    %1698 = vmatprep.subr.mxu0 0.0
    %1699 = vmatpush1.msra.mxu0 0.0
    %1700 = vmatprep.subr.mxu0 0.0
    %1701 = vmatpush1.msra.mxu0 0.0
    %1702 = vmatprep.subr.mxu0 0.0
    %1703 = vmatpush1.msra.mxu0 0.0
    %1704 = vmatprep.subr.mxu0 0.0
    %1705 = vmatpush1.msra.mxu0 0.0
    %1706 = vmatprep.subr.mxu0 0.0
    %1707 = vmatpush1.msra.mxu0 0.0
    %1708 = vmatprep.subr.mxu0 0.0
    %1709 = vmatpush1.msra.mxu0 0.0
    %1710 = vmatprep.subr.mxu0 0.0
    %1711 = vmatpush1.msra.mxu0 0.0
    %1712 = vmatprep.subr.mxu0 0.0
    %1713 = vmatpush1.msra.mxu0 0.0
    %1714 = vmatprep.subr.mxu0 0.0
    %1715 = vmatpush1.msra.mxu0 0.0
    %1716 = vmatprep.subr.mxu0 0.0
    %1717 = vmatpush1.msra.mxu0 0.0
    %1718 = vmatprep.subr.mxu0 0.0
    %1719 = vmatpush1.msra.mxu0 0.0
    %1720 = vmatprep.mubr.f32.mxu0 0.0
    %1721 = vmatmul.mubr.f32.gmra.mrb[0].mxu0 %v1559
    %v1722 = vpop.f32.mrb[0].mxu0
    %v1723 = vadd.f32 0.0, %v1722
    %v1724 = vpop.f32.mrb[0].mxu0
    %1725 = vdwg.mxu0
    %v1727 = vrot.slane %v1723, 6
    %v1729 = vadd.f32 %v244, %v1727
    %v1730 = vxor.u32 %v1729, 2147483648
    %v1731 = vmul.f32 %v1730, 1.442695
    %v1732 = vpow.pop %v1731
    %v1733 = vadd.f32 %v1732, 1.0
    %v1734 = vrcp.pop %v1733
    %v1735 = vmul.f32 1.0, %v1734
    %v1736 = vtanh.pop %v1729
    %v1738 = vrot.slane %v1474, 6
    %v1740 = vmul.f32 %v1735, %v1738
    %1742 = vrot.lane.b32.xlu0 %v1736, 64
    %v1743 = vpop.permute.xlu0 %1742
    %v1745 = vmul.f32 %v1735, %v1743
    %1747 = vrot.lane.b32.xlu0 %v1745, 32
    %v1748 = vpop.permute.xlu0 %1747
    %v1750 = vadd.f32 %v1740, %v1748
    %v1751 = vtanh.pop %v1750
    %1753 = vrot.lane.b32.xlu0 %v1751, 64
    %v1754 = vpop.permute.xlu0 %1753
    %v1756 = vmul.f32 %v1735, %v1754
    %1758 = vrot.lane.b32.xlu0 %v1655, 32
    %v1759 = vpop.permute.xlu0 %1758
    %v1760 = vsel %vm266, %v1759, 0
    %1762 = vmatprep.subr.mxu0 0.0
    %1763 = vmatpush1.msra.mxu0 %v255
    %1764 = vmatprep.subr.mxu0 0.0
    %1765 = vmatpush1.msra.mxu0 %v256
    %1766 = vmatprep.subr.mxu0 0.0
    %1767 = vmatpush1.msra.mxu0 %v257
    %1768 = vmatprep.subr.mxu0 0.0
    %1769 = vmatpush1.msra.mxu0 %v258
    %1770 = vmatprep.subr.mxu0 0.0
    %1771 = vmatpush1.msra.mxu0 0.0
    %1772 = vmatprep.subr.mxu0 0.0
    %1773 = vmatpush1.msra.mxu0 0.0
    %1774 = vmatprep.subr.mxu0 0.0
    %1775 = vmatpush1.msra.mxu0 0.0
    %1776 = vmatprep.subr.mxu0 0.0
    %1777 = vmatpush1.msra.mxu0 0.0
    %1778 = vmatprep.subr.mxu0 0.0
    %1779 = vmatpush1.msra.mxu0 0.0
    %1780 = vmatprep.subr.mxu0 0.0
    %1781 = vmatpush1.msra.mxu0 0.0
    %1782 = vmatprep.subr.mxu0 0.0
    %1783 = vmatpush1.msra.mxu0 0.0
    %1784 = vmatprep.subr.mxu0 0.0
    %1785 = vmatpush1.msra.mxu0 0.0
    %1786 = vmatprep.subr.mxu0 0.0
    %1787 = vmatpush1.msra.mxu0 0.0
    %1788 = vmatprep.subr.mxu0 0.0
    %1789 = vmatpush1.msra.mxu0 0.0
    %1790 = vmatprep.subr.mxu0 0.0
    %1791 = vmatpush1.msra.mxu0 0.0
    %1792 = vmatprep.subr.mxu0 0.0
    %1793 = vmatpush1.msra.mxu0 0.0
    %1794 = vmatprep.subr.mxu0 0.0
    %1795 = vmatpush1.msra.mxu0 0.0
    %1796 = vmatprep.subr.mxu0 0.0
    %1797 = vmatpush1.msra.mxu0 0.0
    %1798 = vmatprep.subr.mxu0 0.0
    %1799 = vmatpush1.msra.mxu0 0.0
    %1800 = vmatprep.subr.mxu0 0.0
    %1801 = vmatpush1.msra.mxu0 0.0
    %1802 = vmatprep.subr.mxu0 0.0
    %1803 = vmatpush1.msra.mxu0 0.0
    %1804 = vmatprep.subr.mxu0 0.0
    %1805 = vmatpush1.msra.mxu0 0.0
    %1806 = vmatprep.subr.mxu0 0.0
    %1807 = vmatpush1.msra.mxu0 0.0
    %1808 = vmatprep.subr.mxu0 0.0
    %1809 = vmatpush1.msra.mxu0 0.0
    %1810 = vmatprep.subr.mxu0 0.0
    %1811 = vmatpush1.msra.mxu0 0.0
    %1812 = vmatprep.subr.mxu0 0.0
    %1813 = vmatpush1.msra.mxu0 0.0
    %1814 = vmatprep.subr.mxu0 0.0
    %1815 = vmatpush1.msra.mxu0 0.0
    %1816 = vmatprep.subr.mxu0 0.0
    %1817 = vmatpush1.msra.mxu0 0.0
    %1818 = vmatprep.subr.mxu0 0.0
    %1819 = vmatpush1.msra.mxu0 0.0
    %1820 = vmatprep.subr.mxu0 0.0
    %1821 = vmatpush1.msra.mxu0 0.0
    %1822 = vmatprep.subr.mxu0 0.0
    %1823 = vmatpush1.msra.mxu0 0.0
    %1824 = vmatprep.subr.mxu0 0.0
    %1825 = vmatpush1.msra.mxu0 0.0
    %1826 = vmatprep.mubr.f32.mxu0 0.0
    %1827 = vmatmul.mubr.f32.gmra.mrb[0].mxu0 %v1760
    %v1828 = vpop.f32.mrb[0].mxu0
    %v1829 = vadd.f32 0.0, %v1828
    %v1830 = vpop.f32.mrb[0].mxu0
    %1831 = vdwg.mxu0
    %v1833 = vrot.slane %v1756, 2
    %1834 = vrot.lane.b32.xlu0 %v1833, 32
    %v1835 = vpop.permute.xlu0 %1834
    %v1836 = vsel %vm266, %v1835, 0
    %1838 = vmatprep.subr.mxu0 0.0
    %1839 = vmatpush1.msra.mxu0 %v251
    %1840 = vmatprep.subr.mxu0 0.0
    %1841 = vmatpush1.msra.mxu0 %v252
    %1842 = vmatprep.subr.mxu0 0.0
    %1843 = vmatpush1.msra.mxu0 %v253
    %1844 = vmatprep.subr.mxu0 0.0
    %1845 = vmatpush1.msra.mxu0 %v254
    %1846 = vmatprep.subr.mxu0 0.0
    %1847 = vmatpush1.msra.mxu0 0.0
    %1848 = vmatprep.subr.mxu0 0.0
    %1849 = vmatpush1.msra.mxu0 0.0
    %1850 = vmatprep.subr.mxu0 0.0
    %1851 = vmatpush1.msra.mxu0 0.0
    %1852 = vmatprep.subr.mxu0 0.0
    %1853 = vmatpush1.msra.mxu0 0.0
    %1854 = vmatprep.subr.mxu0 0.0
    %1855 = vmatpush1.msra.mxu0 0.0
    %1856 = vmatprep.subr.mxu0 0.0
    %1857 = vmatpush1.msra.mxu0 0.0
    %1858 = vmatprep.subr.mxu0 0.0
    %1859 = vmatpush1.msra.mxu0 0.0
    %1860 = vmatprep.subr.mxu0 0.0
    %1861 = vmatpush1.msra.mxu0 0.0
    %1862 = vmatprep.subr.mxu0 0.0
    %1863 = vmatpush1.msra.mxu0 0.0
    %1864 = vmatprep.subr.mxu0 0.0
    %1865 = vmatpush1.msra.mxu0 0.0
    %1866 = vmatprep.subr.mxu0 0.0
    %1867 = vmatpush1.msra.mxu0 0.0
    %1868 = vmatprep.subr.mxu0 0.0
    %1869 = vmatpush1.msra.mxu0 0.0
    %1870 = vmatprep.subr.mxu0 0.0
    %1871 = vmatpush1.msra.mxu0 0.0
    %1872 = vmatprep.subr.mxu0 0.0
    %1873 = vmatpush1.msra.mxu0 0.0
    %1874 = vmatprep.subr.mxu0 0.0
    %1875 = vmatpush1.msra.mxu0 0.0
    %1876 = vmatprep.subr.mxu0 0.0
    %1877 = vmatpush1.msra.mxu0 0.0
    %1878 = vmatprep.subr.mxu0 0.0
    %1879 = vmatpush1.msra.mxu0 0.0
    %1880 = vmatprep.subr.mxu0 0.0
    %1881 = vmatpush1.msra.mxu0 0.0
    %1882 = vmatprep.subr.mxu0 0.0
    %1883 = vmatpush1.msra.mxu0 0.0
    %1884 = vmatprep.subr.mxu0 0.0
    %1885 = vmatpush1.msra.mxu0 0.0
    %1886 = vmatprep.subr.mxu0 0.0
    %1887 = vmatpush1.msra.mxu0 0.0
    %1888 = vmatprep.subr.mxu0 0.0
    %1889 = vmatpush1.msra.mxu0 0.0
    %1890 = vmatprep.subr.mxu0 0.0
    %1891 = vmatpush1.msra.mxu0 0.0
    %1892 = vmatprep.subr.mxu0 0.0
    %1893 = vmatpush1.msra.mxu0 0.0
    %1894 = vmatprep.subr.mxu0 0.0
    %1895 = vmatpush1.msra.mxu0 0.0
    %1896 = vmatprep.subr.mxu0 0.0
    %1897 = vmatpush1.msra.mxu0 0.0
    %1898 = vmatprep.subr.mxu0 0.0
    %1899 = vmatpush1.msra.mxu0 0.0
    %1900 = vmatprep.subr.mxu0 0.0
    %1901 = vmatpush1.msra.mxu0 0.0
    %1902 = vmatprep.mubr.f32.mxu0 0.0
    %1903 = vmatmul.mubr.f32.gmra.mrb[0].mxu0 %v1836
    %v1904 = vpop.f32.mrb[0].mxu0
    %v1905 = vadd.f32 %v1829, %v1904
    %v1906 = vpop.f32.mrb[0].mxu0
    %1907 = vdwg.mxu0
    %v1908 = vadd.f32 %v1905, %v521
    %v1909 = vxor.u32 %v1908, 2147483648
    %v1910 = vmul.f32 %v1909, 1.442695
    %v1911 = vpow.pop %v1910
    %v1912 = vadd.f32 %v1911, 1.0
    %v1913 = vrcp.pop %v1912
    %v1914 = vmul.f32 1.0, %v1913
    %v1915 = vtanh.pop %v1908
    %v1916 = vmul.f32 %v1914, %v1649
    %1918 = vrot.lane.b32.xlu0 %v1915, 64
    %v1919 = vpop.permute.xlu0 %1918
    %v1921 = vmul.f32 %v1914, %v1919
    %1923 = vrot.lane.b32.xlu0 %v1921, 32
    %v1924 = vpop.permute.xlu0 %1923
    %v1926 = vadd.f32 %v1916, %v1924
    %v1927 = vtanh.pop %v1926
    %1929 = vrot.lane.b32.xlu0 %v1927, 64
    %v1930 = vpop.permute.xlu0 %1929
    %v1932 = vmul.f32 %v1914, %v1930
    %1933 = vmatprep.subr.mxu0 0.0
    %1934 = vmatpush1.msra.mxu0 %v247
    %1935 = vmatprep.subr.mxu0 0.0
    %1936 = vmatpush1.msra.mxu0 %v248
    %1937 = vmatprep.subr.mxu0 0.0
    %1938 = vmatpush1.msra.mxu0 %v249
    %1939 = vmatprep.subr.mxu0 0.0
    %1940 = vmatpush1.msra.mxu0 %v250
    %1941 = vmatprep.subr.mxu0 0.0
    %1942 = vmatpush1.msra.mxu0 0.0
    %1943 = vmatprep.subr.mxu0 0.0
    %1944 = vmatpush1.msra.mxu0 0.0
    %1945 = vmatprep.subr.mxu0 0.0
    %1946 = vmatpush1.msra.mxu0 0.0
    %1947 = vmatprep.subr.mxu0 0.0
    %1948 = vmatpush1.msra.mxu0 0.0
    %1949 = vmatprep.subr.mxu0 0.0
    %1950 = vmatpush1.msra.mxu0 0.0
    %1951 = vmatprep.subr.mxu0 0.0
    %1952 = vmatpush1.msra.mxu0 0.0
    %1953 = vmatprep.subr.mxu0 0.0
    %1954 = vmatpush1.msra.mxu0 0.0
    %1955 = vmatprep.subr.mxu0 0.0
    %1956 = vmatpush1.msra.mxu0 0.0
    %1957 = vmatprep.subr.mxu0 0.0
    %1958 = vmatpush1.msra.mxu0 0.0
    %1959 = vmatprep.subr.mxu0 0.0
    %1960 = vmatpush1.msra.mxu0 0.0
    %1961 = vmatprep.subr.mxu0 0.0
    %1962 = vmatpush1.msra.mxu0 0.0
    %1963 = vmatprep.subr.mxu0 0.0
    %1964 = vmatpush1.msra.mxu0 0.0
    %1965 = vmatprep.subr.mxu0 0.0
    %1966 = vmatpush1.msra.mxu0 0.0
    %1967 = vmatprep.subr.mxu0 0.0
    %1968 = vmatpush1.msra.mxu0 0.0
    %1969 = vmatprep.subr.mxu0 0.0
    %1970 = vmatpush1.msra.mxu0 0.0
    %1971 = vmatprep.subr.mxu0 0.0
    %1972 = vmatpush1.msra.mxu0 0.0
    %1973 = vmatprep.subr.mxu0 0.0
    %1974 = vmatpush1.msra.mxu0 0.0
    %1975 = vmatprep.subr.mxu0 0.0
    %1976 = vmatpush1.msra.mxu0 0.0
    %1977 = vmatprep.subr.mxu0 0.0
    %1978 = vmatpush1.msra.mxu0 0.0
    %1979 = vmatprep.subr.mxu0 0.0
    %1980 = vmatpush1.msra.mxu0 0.0
    %1981 = vmatprep.subr.mxu0 0.0
    %1982 = vmatpush1.msra.mxu0 0.0
    %1983 = vmatprep.subr.mxu0 0.0
    %1984 = vmatpush1.msra.mxu0 0.0
    %1985 = vmatprep.subr.mxu0 0.0
    %1986 = vmatpush1.msra.mxu0 0.0
    %1987 = vmatprep.subr.mxu0 0.0
    %1988 = vmatpush1.msra.mxu0 0.0
    %1989 = vmatprep.subr.mxu0 0.0
    %1990 = vmatpush1.msra.mxu0 0.0
    %1991 = vmatprep.subr.mxu0 0.0
    %1992 = vmatpush1.msra.mxu0 0.0
    %1993 = vmatprep.subr.mxu0 0.0
    %1994 = vmatpush1.msra.mxu0 0.0
    %1995 = vmatprep.subr.mxu0 0.0
    %1996 = vmatpush1.msra.mxu0 0.0
    %1997 = vmatprep.mubr.f32.mxu0 0.0
    %1998 = vmatmul.mubr.f32.gmra.mrb[0].mxu0 %v1836
    %v1999 = vpop.f32.mrb[0].mxu0
    %v2000 = vadd.f32 0.0, %v1999
    %v2001 = vpop.f32.mrb[0].mxu0
    %2002 = vdwg.mxu0
    %v2004 = vrot.slane %v2000, 4
    %v2006 = vadd.f32 %v244, %v2004
    %v2007 = vxor.u32 %v2006, 2147483648
    %v2008 = vmul.f32 %v2007, 1.442695
    %v2009 = vpow.pop %v2008
    %v2010 = vadd.f32 %v2009, 1.0
    %v2011 = vrcp.pop %v2010
    %v2012 = vmul.f32 1.0, %v2011
    %v2013 = vtanh.pop %v2006
    %v2015 = vrot.slane %v1750, 6
    %v2017 = vmul.f32 %v2012, %v2015
    %2019 = vrot.lane.b32.xlu0 %v2013, 64
    %v2020 = vpop.permute.xlu0 %2019
    %v2022 = vmul.f32 %v2012, %v2020
    %2024 = vrot.lane.b32.xlu0 %v2022, 32
    %v2025 = vpop.permute.xlu0 %2024
    %v2027 = vadd.f32 %v2017, %v2025
    %v2028 = vtanh.pop %v2027
    %2030 = vrot.lane.b32.xlu0 %v2028, 64
    %v2031 = vpop.permute.xlu0 %2030
    %v2033 = vmul.f32 %v2012, %v2031
    %2035 = vrot.lane.b32.xlu0 %v1932, 32
    %v2036 = vpop.permute.xlu0 %2035
    %v2037 = vsel %vm266, %v2036, 0
    %2039 = vmatprep.subr.mxu0 0.0
    %2040 = vmatpush1.msra.mxu0 %v255
    %2041 = vmatprep.subr.mxu0 0.0
    %2042 = vmatpush1.msra.mxu0 %v256
    %2043 = vmatprep.subr.mxu0 0.0
    %2044 = vmatpush1.msra.mxu0 %v257
    %2045 = vmatprep.subr.mxu0 0.0
    %2046 = vmatpush1.msra.mxu0 %v258
    %2047 = vmatprep.subr.mxu0 0.0
    %2048 = vmatpush1.msra.mxu0 0.0
    %2049 = vmatprep.subr.mxu0 0.0
    %2050 = vmatpush1.msra.mxu0 0.0
    %2051 = vmatprep.subr.mxu0 0.0
    %2052 = vmatpush1.msra.mxu0 0.0
    %2053 = vmatprep.subr.mxu0 0.0
    %2054 = vmatpush1.msra.mxu0 0.0
    %2055 = vmatprep.subr.mxu0 0.0
    %2056 = vmatpush1.msra.mxu0 0.0
    %2057 = vmatprep.subr.mxu0 0.0
    %2058 = vmatpush1.msra.mxu0 0.0
    %2059 = vmatprep.subr.mxu0 0.0
    %2060 = vmatpush1.msra.mxu0 0.0
    %2061 = vmatprep.subr.mxu0 0.0
    %2062 = vmatpush1.msra.mxu0 0.0
    %2063 = vmatprep.subr.mxu0 0.0
    %2064 = vmatpush1.msra.mxu0 0.0
    %2065 = vmatprep.subr.mxu0 0.0
    %2066 = vmatpush1.msra.mxu0 0.0
    %2067 = vmatprep.subr.mxu0 0.0
    %2068 = vmatpush1.msra.mxu0 0.0
    %2069 = vmatprep.subr.mxu0 0.0
    %2070 = vmatpush1.msra.mxu0 0.0
    %2071 = vmatprep.subr.mxu0 0.0
    %2072 = vmatpush1.msra.mxu0 0.0
    %2073 = vmatprep.subr.mxu0 0.0
    %2074 = vmatpush1.msra.mxu0 0.0
    %2075 = vmatprep.subr.mxu0 0.0
    %2076 = vmatpush1.msra.mxu0 0.0
    %2077 = vmatprep.subr.mxu0 0.0
    %2078 = vmatpush1.msra.mxu0 0.0
    %2079 = vmatprep.subr.mxu0 0.0
    %2080 = vmatpush1.msra.mxu0 0.0
    %2081 = vmatprep.subr.mxu0 0.0
    %2082 = vmatpush1.msra.mxu0 0.0
    %2083 = vmatprep.subr.mxu0 0.0
    %2084 = vmatpush1.msra.mxu0 0.0
    %2085 = vmatprep.subr.mxu0 0.0
    %2086 = vmatpush1.msra.mxu0 0.0
    %2087 = vmatprep.subr.mxu0 0.0
    %2088 = vmatpush1.msra.mxu0 0.0
    %2089 = vmatprep.subr.mxu0 0.0
    %2090 = vmatpush1.msra.mxu0 0.0
    %2091 = vmatprep.subr.mxu0 0.0
    %2092 = vmatpush1.msra.mxu0 0.0
    %2093 = vmatprep.subr.mxu0 0.0
    %2094 = vmatpush1.msra.mxu0 0.0
    %2095 = vmatprep.subr.mxu0 0.0
    %2096 = vmatpush1.msra.mxu0 0.0
    %2097 = vmatprep.subr.mxu0 0.0
    %2098 = vmatpush1.msra.mxu0 0.0
    %2099 = vmatprep.subr.mxu0 0.0
    %2100 = vmatpush1.msra.mxu0 0.0
    %2101 = vmatprep.subr.mxu0 0.0
    %2102 = vmatpush1.msra.mxu0 0.0
    %2103 = vmatprep.mubr.f32.mxu0 0.0
    %2104 = vmatmul.mubr.f32.gmra.mrb[0].mxu0 %v2037
    %v2105 = vpop.f32.mrb[0].mxu0
    %v2106 = vadd.f32 0.0, %v2105
    %v2107 = vpop.f32.mrb[0].mxu0
    %2108 = vdwg.mxu0
    %v2110 = vrot.slane %v2033, 4
    %2111 = vrot.lane.b32.xlu0 %v2110, 32
    %v2112 = vpop.permute.xlu0 %2111
    %v2113 = vsel %vm266, %v2112, 0
    %2115 = vmatprep.subr.mxu0 0.0
    %2116 = vmatpush1.msra.mxu0 %v251
    %2117 = vmatprep.subr.mxu0 0.0
    %2118 = vmatpush1.msra.mxu0 %v252
    %2119 = vmatprep.subr.mxu0 0.0
    %2120 = vmatpush1.msra.mxu0 %v253
    %2121 = vmatprep.subr.mxu0 0.0
    %2122 = vmatpush1.msra.mxu0 %v254
    %2123 = vmatprep.subr.mxu0 0.0
    %2124 = vmatpush1.msra.mxu0 0.0
    %2125 = vmatprep.subr.mxu0 0.0
    %2126 = vmatpush1.msra.mxu0 0.0
    %2127 = vmatprep.subr.mxu0 0.0
    %2128 = vmatpush1.msra.mxu0 0.0
    %2129 = vmatprep.subr.mxu0 0.0
    %2130 = vmatpush1.msra.mxu0 0.0
    %2131 = vmatprep.subr.mxu0 0.0
    %2132 = vmatpush1.msra.mxu0 0.0
    %2133 = vmatprep.subr.mxu0 0.0
    %2134 = vmatpush1.msra.mxu0 0.0
    %2135 = vmatprep.subr.mxu0 0.0
    %2136 = vmatpush1.msra.mxu0 0.0
    %2137 = vmatprep.subr.mxu0 0.0
    %2138 = vmatpush1.msra.mxu0 0.0
    %2139 = vmatprep.subr.mxu0 0.0
    %2140 = vmatpush1.msra.mxu0 0.0
    %2141 = vmatprep.subr.mxu0 0.0
    %2142 = vmatpush1.msra.mxu0 0.0
    %2143 = vmatprep.subr.mxu0 0.0
    %2144 = vmatpush1.msra.mxu0 0.0
    %2145 = vmatprep.subr.mxu0 0.0
    %2146 = vmatpush1.msra.mxu0 0.0
    %2147 = vmatprep.subr.mxu0 0.0
    %2148 = vmatpush1.msra.mxu0 0.0
    %2149 = vmatprep.subr.mxu0 0.0
    %2150 = vmatpush1.msra.mxu0 0.0
    %2151 = vmatprep.subr.mxu0 0.0
    %2152 = vmatpush1.msra.mxu0 0.0
    %2153 = vmatprep.subr.mxu0 0.0
    %2154 = vmatpush1.msra.mxu0 0.0
    %2155 = vmatprep.subr.mxu0 0.0
    %2156 = vmatpush1.msra.mxu0 0.0
    %2157 = vmatprep.subr.mxu0 0.0
    %2158 = vmatpush1.msra.mxu0 0.0
    %2159 = vmatprep.subr.mxu0 0.0
    %2160 = vmatpush1.msra.mxu0 0.0
    %2161 = vmatprep.subr.mxu0 0.0
    %2162 = vmatpush1.msra.mxu0 0.0
    %2163 = vmatprep.subr.mxu0 0.0
    %2164 = vmatpush1.msra.mxu0 0.0
    %2165 = vmatprep.subr.mxu0 0.0
    %2166 = vmatpush1.msra.mxu0 0.0
    %2167 = vmatprep.subr.mxu0 0.0
    %2168 = vmatpush1.msra.mxu0 0.0
    %2169 = vmatprep.subr.mxu0 0.0
    %2170 = vmatpush1.msra.mxu0 0.0
    %2171 = vmatprep.subr.mxu0 0.0
    %2172 = vmatpush1.msra.mxu0 0.0
    %2173 = vmatprep.subr.mxu0 0.0
    %2174 = vmatpush1.msra.mxu0 0.0
    %2175 = vmatprep.subr.mxu0 0.0
    %2176 = vmatpush1.msra.mxu0 0.0
    %2177 = vmatprep.subr.mxu0 0.0
    %2178 = vmatpush1.msra.mxu0 0.0
    %2179 = vmatprep.mubr.f32.mxu0 0.0
    %2180 = vmatmul.mubr.f32.gmra.mrb[0].mxu0 %v2113
    %v2181 = vpop.f32.mrb[0].mxu0
    %v2182 = vadd.f32 %v2106, %v2181
    %v2183 = vpop.f32.mrb[0].mxu0
    %2184 = vdwg.mxu0
    %v2185 = vadd.f32 %v2182, %v521
    %v2186 = vxor.u32 %v2185, 2147483648
    %v2187 = vmul.f32 %v2186, 1.442695
    %v2188 = vpow.pop %v2187
    %v2189 = vadd.f32 %v2188, 1.0
    %v2190 = vrcp.pop %v2189
    %v2191 = vmul.f32 1.0, %v2190
    %v2192 = vtanh.pop %v2185
    %v2193 = vmul.f32 %v2191, %v1926
    %2195 = vrot.lane.b32.xlu0 %v2192, 64
    %v2196 = vpop.permute.xlu0 %2195
    %v2198 = vmul.f32 %v2191, %v2196
    %2200 = vrot.lane.b32.xlu0 %v2198, 32
    %v2201 = vpop.permute.xlu0 %2200
    %v2203 = vadd.f32 %v2193, %v2201
    %v2204 = vtanh.pop %v2203
    %2206 = vrot.lane.b32.xlu0 %v2204, 64
    %v2207 = vpop.permute.xlu0 %2206
    %v2209 = vmul.f32 %v2191, %v2207
    %2210 = vmatprep.subr.mxu0 0.0
    %2211 = vmatpush1.msra.mxu0 %v247
    %2212 = vmatprep.subr.mxu0 0.0
    %2213 = vmatpush1.msra.mxu0 %v248
    %2214 = vmatprep.subr.mxu0 0.0
    %2215 = vmatpush1.msra.mxu0 %v249
    %2216 = vmatprep.subr.mxu0 0.0
    %2217 = vmatpush1.msra.mxu0 %v250
    %2218 = vmatprep.subr.mxu0 0.0
    %2219 = vmatpush1.msra.mxu0 0.0
    %2220 = vmatprep.subr.mxu0 0.0
    %2221 = vmatpush1.msra.mxu0 0.0
    %2222 = vmatprep.subr.mxu0 0.0
    %2223 = vmatpush1.msra.mxu0 0.0
    %2224 = vmatprep.subr.mxu0 0.0
    %2225 = vmatpush1.msra.mxu0 0.0
    %2226 = vmatprep.subr.mxu0 0.0
    %2227 = vmatpush1.msra.mxu0 0.0
    %2228 = vmatprep.subr.mxu0 0.0
    %2229 = vmatpush1.msra.mxu0 0.0
    %2230 = vmatprep.subr.mxu0 0.0
    %2231 = vmatpush1.msra.mxu0 0.0
    %2232 = vmatprep.subr.mxu0 0.0
    %2233 = vmatpush1.msra.mxu0 0.0
    %2234 = vmatprep.subr.mxu0 0.0
    %2235 = vmatpush1.msra.mxu0 0.0
    %2236 = vmatprep.subr.mxu0 0.0
    %2237 = vmatpush1.msra.mxu0 0.0
    %2238 = vmatprep.subr.mxu0 0.0
    %2239 = vmatpush1.msra.mxu0 0.0
    %2240 = vmatprep.subr.mxu0 0.0
    %2241 = vmatpush1.msra.mxu0 0.0
    %2242 = vmatprep.subr.mxu0 0.0
    %2243 = vmatpush1.msra.mxu0 0.0
    %2244 = vmatprep.subr.mxu0 0.0
    %2245 = vmatpush1.msra.mxu0 0.0
    %2246 = vmatprep.subr.mxu0 0.0
    %2247 = vmatpush1.msra.mxu0 0.0
    %2248 = vmatprep.subr.mxu0 0.0
    %2249 = vmatpush1.msra.mxu0 0.0
    %2250 = vmatprep.subr.mxu0 0.0
    %2251 = vmatpush1.msra.mxu0 0.0
    %2252 = vmatprep.subr.mxu0 0.0
    %2253 = vmatpush1.msra.mxu0 0.0
    %2254 = vmatprep.subr.mxu0 0.0
    %2255 = vmatpush1.msra.mxu0 0.0
    %2256 = vmatprep.subr.mxu0 0.0
    %2257 = vmatpush1.msra.mxu0 0.0
    %2258 = vmatprep.subr.mxu0 0.0
    %2259 = vmatpush1.msra.mxu0 0.0
    %2260 = vmatprep.subr.mxu0 0.0
    %2261 = vmatpush1.msra.mxu0 0.0
    %2262 = vmatprep.subr.mxu0 0.0
    %2263 = vmatpush1.msra.mxu0 0.0
    %2264 = vmatprep.subr.mxu0 0.0
    %2265 = vmatpush1.msra.mxu0 0.0
    %2266 = vmatprep.subr.mxu0 0.0
    %2267 = vmatpush1.msra.mxu0 0.0
    %2268 = vmatprep.subr.mxu0 0.0
    %2269 = vmatpush1.msra.mxu0 0.0
    %2270 = vmatprep.subr.mxu0 0.0
    %2271 = vmatpush1.msra.mxu0 0.0
    %2272 = vmatprep.subr.mxu0 0.0
    %2273 = vmatpush1.msra.mxu0 0.0
    %2274 = vmatprep.mubr.f32.mxu0 0.0
    %2275 = vmatmul.mubr.f32.gmra.mrb[0].mxu0 %v2113
    %v2276 = vpop.f32.mrb[0].mxu0
    %v2277 = vadd.f32 0.0, %v2276
    %v2278 = vpop.f32.mrb[0].mxu0
    %2279 = vdwg.mxu0
    %v2281 = vrot.slane %v2277, 2
    %v2283 = vadd.f32 %v244, %v2281
    %v2284 = vxor.u32 %v2283, 2147483648
    %v2285 = vmul.f32 %v2284, 1.442695
    %v2286 = vpow.pop %v2285
    %v2287 = vadd.f32 %v2286, 1.0
    %v2288 = vrcp.pop %v2287
    %v2289 = vmul.f32 1.0, %v2288
    %v2290 = vtanh.pop %v2283
    %v2292 = vrot.slane %v2027, 6
    %v2294 = vmul.f32 %v2289, %v2292
    %2296 = vrot.lane.b32.xlu0 %v2290, 64
    %v2297 = vpop.permute.xlu0 %2296
    %v2299 = vmul.f32 %v2289, %v2297
    %2301 = vrot.lane.b32.xlu0 %v2299, 32
    %v2302 = vpop.permute.xlu0 %2301
    %v2304 = vadd.f32 %v2294, %v2302
    %v2305 = vtanh.pop %v2304
    %2307 = vrot.lane.b32.xlu0 %v2305, 64
    %v2308 = vpop.permute.xlu0 %2307
    %v2310 = vmul.f32 %v2289, %v2308
    %2312 = vrot.lane.b32.xlu0 %v2209, 32
    %v2313 = vpop.permute.xlu0 %2312
    %v2314 = vsel %vm266, %v2313, 0
    %2316 = vmatprep.subr.mxu0 0.0
    %2317 = vmatpush1.msra.mxu0 %v255
    %2318 = vmatprep.subr.mxu0 0.0
    %2319 = vmatpush1.msra.mxu0 %v256
    %2320 = vmatprep.subr.mxu0 0.0
    %2321 = vmatpush1.msra.mxu0 %v257
    %2322 = vmatprep.subr.mxu0 0.0
    %2323 = vmatpush1.msra.mxu0 %v258
    %2324 = vmatprep.subr.mxu0 0.0
    %2325 = vmatpush1.msra.mxu0 0.0
    %2326 = vmatprep.subr.mxu0 0.0
    %2327 = vmatpush1.msra.mxu0 0.0
    %2328 = vmatprep.subr.mxu0 0.0
    %2329 = vmatpush1.msra.mxu0 0.0
    %2330 = vmatprep.subr.mxu0 0.0
    %2331 = vmatpush1.msra.mxu0 0.0
    %2332 = vmatprep.subr.mxu0 0.0
    %2333 = vmatpush1.msra.mxu0 0.0
    %2334 = vmatprep.subr.mxu0 0.0
    %2335 = vmatpush1.msra.mxu0 0.0
    %2336 = vmatprep.subr.mxu0 0.0
    %2337 = vmatpush1.msra.mxu0 0.0
    %2338 = vmatprep.subr.mxu0 0.0
    %2339 = vmatpush1.msra.mxu0 0.0
    %2340 = vmatprep.subr.mxu0 0.0
    %2341 = vmatpush1.msra.mxu0 0.0
    %2342 = vmatprep.subr.mxu0 0.0
    %2343 = vmatpush1.msra.mxu0 0.0
    %2344 = vmatprep.subr.mxu0 0.0
    %2345 = vmatpush1.msra.mxu0 0.0
    %2346 = vmatprep.subr.mxu0 0.0
    %2347 = vmatpush1.msra.mxu0 0.0
    %2348 = vmatprep.subr.mxu0 0.0
    %2349 = vmatpush1.msra.mxu0 0.0
    %2350 = vmatprep.subr.mxu0 0.0
    %2351 = vmatpush1.msra.mxu0 0.0
    %2352 = vmatprep.subr.mxu0 0.0
    %2353 = vmatpush1.msra.mxu0 0.0
    %2354 = vmatprep.subr.mxu0 0.0
    %2355 = vmatpush1.msra.mxu0 0.0
    %2356 = vmatprep.subr.mxu0 0.0
    %2357 = vmatpush1.msra.mxu0 0.0
    %2358 = vmatprep.subr.mxu0 0.0
    %2359 = vmatpush1.msra.mxu0 0.0
    %2360 = vmatprep.subr.mxu0 0.0
    %2361 = vmatpush1.msra.mxu0 0.0
    %2362 = vmatprep.subr.mxu0 0.0
    %2363 = vmatpush1.msra.mxu0 0.0
    %2364 = vmatprep.subr.mxu0 0.0
    %2365 = vmatpush1.msra.mxu0 0.0
    %2366 = vmatprep.subr.mxu0 0.0
    %2367 = vmatpush1.msra.mxu0 0.0
    %2368 = vmatprep.subr.mxu0 0.0
    %2369 = vmatpush1.msra.mxu0 0.0
    %2370 = vmatprep.subr.mxu0 0.0
    %2371 = vmatpush1.msra.mxu0 0.0
    %2372 = vmatprep.subr.mxu0 0.0
    %2373 = vmatpush1.msra.mxu0 0.0
    %2374 = vmatprep.subr.mxu0 0.0
    %2375 = vmatpush1.msra.mxu0 0.0
    %2376 = vmatprep.subr.mxu0 0.0
    %2377 = vmatpush1.msra.mxu0 0.0
    %2378 = vmatprep.subr.mxu0 0.0
    %2379 = vmatpush1.msra.mxu0 0.0
    %2380 = vmatprep.mubr.f32.mxu0 0.0
    %2381 = vmatmul.mubr.f32.gmra.mrb[0].mxu0 %v2314
    %v2382 = vpop.f32.mrb[0].mxu0
    %v2383 = vadd.f32 0.0, %v2382
    %v2384 = vpop.f32.mrb[0].mxu0
    %2385 = vdwg.mxu0
    %v2387 = vrot.slane %v2310, 6
    %2388 = vrot.lane.b32.xlu0 %v2387, 32
    %v2389 = vpop.permute.xlu0 %2388
    %v2390 = vsel %vm266, %v2389, 0
    %2392 = vmatprep.subr.mxu0 0.0
    %2393 = vmatpush1.msra.mxu0 %v251
    %2394 = vmatprep.subr.mxu0 0.0
    %2395 = vmatpush1.msra.mxu0 %v252
    %2396 = vmatprep.subr.mxu0 0.0
    %2397 = vmatpush1.msra.mxu0 %v253
    %2398 = vmatprep.subr.mxu0 0.0
    %2399 = vmatpush1.msra.mxu0 %v254
    %2400 = vmatprep.subr.mxu0 0.0
    %2401 = vmatpush1.msra.mxu0 0.0
    %2402 = vmatprep.subr.mxu0 0.0
    %2403 = vmatpush1.msra.mxu0 0.0
    %2404 = vmatprep.subr.mxu0 0.0
    %2405 = vmatpush1.msra.mxu0 0.0
    %2406 = vmatprep.subr.mxu0 0.0
    %2407 = vmatpush1.msra.mxu0 0.0
    %2408 = vmatprep.subr.mxu0 0.0
    %2409 = vmatpush1.msra.mxu0 0.0
    %2410 = vmatprep.subr.mxu0 0.0
    %2411 = vmatpush1.msra.mxu0 0.0
    %2412 = vmatprep.subr.mxu0 0.0
    %2413 = vmatpush1.msra.mxu0 0.0
    %2414 = vmatprep.subr.mxu0 0.0
    %2415 = vmatpush1.msra.mxu0 0.0
    %2416 = vmatprep.subr.mxu0 0.0
    %2417 = vmatpush1.msra.mxu0 0.0
    %2418 = vmatprep.subr.mxu0 0.0
    %2419 = vmatpush1.msra.mxu0 0.0
    %2420 = vmatprep.subr.mxu0 0.0
    %2421 = vmatpush1.msra.mxu0 0.0
    %2422 = vmatprep.subr.mxu0 0.0
    %2423 = vmatpush1.msra.mxu0 0.0
    %2424 = vmatprep.subr.mxu0 0.0
    %2425 = vmatpush1.msra.mxu0 0.0
    %2426 = vmatprep.subr.mxu0 0.0
    %2427 = vmatpush1.msra.mxu0 0.0
    %2428 = vmatprep.subr.mxu0 0.0
    %2429 = vmatpush1.msra.mxu0 0.0
    %2430 = vmatprep.subr.mxu0 0.0
    %2431 = vmatpush1.msra.mxu0 0.0
    %2432 = vmatprep.subr.mxu0 0.0
    %2433 = vmatpush1.msra.mxu0 0.0
    %2434 = vmatprep.subr.mxu0 0.0
    %2435 = vmatpush1.msra.mxu0 0.0
    %2436 = vmatprep.subr.mxu0 0.0
    %2437 = vmatpush1.msra.mxu0 0.0
    %2438 = vmatprep.subr.mxu0 0.0
    %2439 = vmatpush1.msra.mxu0 0.0
    %2440 = vmatprep.subr.mxu0 0.0
    %2441 = vmatpush1.msra.mxu0 0.0
    %2442 = vmatprep.subr.mxu0 0.0
    %2443 = vmatpush1.msra.mxu0 0.0
    %2444 = vmatprep.subr.mxu0 0.0
    %2445 = vmatpush1.msra.mxu0 0.0
    %2446 = vmatprep.subr.mxu0 0.0
    %2447 = vmatpush1.msra.mxu0 0.0
    %2448 = vmatprep.subr.mxu0 0.0
    %2449 = vmatpush1.msra.mxu0 0.0
    %2450 = vmatprep.subr.mxu0 0.0
    %2451 = vmatpush1.msra.mxu0 0.0
    %2452 = vmatprep.subr.mxu0 0.0
    %2453 = vmatpush1.msra.mxu0 0.0
    %2454 = vmatprep.subr.mxu0 0.0
    %2455 = vmatpush1.msra.mxu0 0.0
    %2456 = vmatprep.mubr.f32.mxu0 0.0
    %2457 = vmatmul.mubr.f32.gmra.mrb[0].mxu0 %v2390
    %v2458 = vpop.f32.mrb[0].mxu0
    %v2459 = vadd.f32 %v2383, %v2458
    %v2460 = vpop.f32.mrb[0].mxu0
    %2461 = vdwg.mxu0
    %v2462 = vadd.f32 %v2459, %v521
    %v2463 = vxor.u32 %v2462, 2147483648
    %v2464 = vmul.f32 %v2463, 1.442695
    %v2465 = vpow.pop %v2464
    %v2466 = vadd.f32 %v2465, 1.0
    %v2467 = vrcp.pop %v2466
    %v2468 = vmul.f32 1.0, %v2467
    %v2469 = vtanh.pop %v2462
    %v2470 = vmul.f32 %v2468, %v2203
    %2472 = vrot.lane.b32.xlu0 %v2469, 64
    %v2473 = vpop.permute.xlu0 %2472
    %v2475 = vmul.f32 %v2468, %v2473
    %2477 = vrot.lane.b32.xlu0 %v2475, 32
    %v2478 = vpop.permute.xlu0 %2477
    %v2480 = vadd.f32 %v2470, %v2478
    %v2481 = vtanh.pop %v2480
    %2483 = vrot.lane.b32.xlu0 %v2481, 64
    %v2484 = vpop.permute.xlu0 %2483
    %v2486 = vmul.f32 %v2468, %v2484
    %v2487 = vld [vmem:[%s9] sm:$0xff]
    %v2488 = vld [vmem:[%s9 + $0x8] sm:$0xff]
    %v2489 = vld [vmem:[%s9 + $0x10] sm:$0xff]
    %v2490 = vld [vmem:[%s9 + $0x18] sm:$0xff]
    %v2491 = vld [vmem:[%s10] sm:$0x1]
    %v2493 = vlaneseq
    %v2494 = vshrl.u32 %v2493, 7
    %v2495 = vsub.s32 0, %v2494
    %v2496 = vrot.slane %v2491, %v2495
    %2499 = vrot.lane.b32.xlu0 %v2486, 32
    %v2500 = vpop.permute.xlu0 %2499
    %v2501 = vsel %vm266, %v2500, 0
    %2503 = vmatprep.subr.mxu0 0.0
    %2504 = vmatpush1.msra.mxu0 %v2487
    %2505 = vmatprep.subr.mxu0 0.0
    %2506 = vmatpush1.msra.mxu0 %v2488
    %2507 = vmatprep.subr.mxu0 0.0
    %2508 = vmatpush1.msra.mxu0 %v2489
    %2509 = vmatprep.subr.mxu0 0.0
    %2510 = vmatpush1.msra.mxu0 %v2490
    %2511 = vmatprep.subr.mxu0 0.0
    %2512 = vmatpush1.msra.mxu0 0.0
    %2513 = vmatprep.subr.mxu0 0.0
    %2514 = vmatpush1.msra.mxu0 0.0
    %2515 = vmatprep.subr.mxu0 0.0
    %2516 = vmatpush1.msra.mxu0 0.0
    %2517 = vmatprep.subr.mxu0 0.0
    %2518 = vmatpush1.msra.mxu0 0.0
    %2519 = vmatprep.subr.mxu0 0.0
    %2520 = vmatpush1.msra.mxu0 0.0
    %2521 = vmatprep.subr.mxu0 0.0
    %2522 = vmatpush1.msra.mxu0 0.0
    %2523 = vmatprep.subr.mxu0 0.0
    %2524 = vmatpush1.msra.mxu0 0.0
    %2525 = vmatprep.subr.mxu0 0.0
    %2526 = vmatpush1.msra.mxu0 0.0
    %2527 = vmatprep.subr.mxu0 0.0
    %2528 = vmatpush1.msra.mxu0 0.0
    %2529 = vmatprep.subr.mxu0 0.0
    %2530 = vmatpush1.msra.mxu0 0.0
    %2531 = vmatprep.subr.mxu0 0.0
    %2532 = vmatpush1.msra.mxu0 0.0
    %2533 = vmatprep.subr.mxu0 0.0
    %2534 = vmatpush1.msra.mxu0 0.0
    %2535 = vmatprep.subr.mxu0 0.0
    %2536 = vmatpush1.msra.mxu0 0.0
    %2537 = vmatprep.subr.mxu0 0.0
    %2538 = vmatpush1.msra.mxu0 0.0
    %2539 = vmatprep.subr.mxu0 0.0
    %2540 = vmatpush1.msra.mxu0 0.0
    %2541 = vmatprep.subr.mxu0 0.0
    %2542 = vmatpush1.msra.mxu0 0.0
    %2543 = vmatprep.subr.mxu0 0.0
    %2544 = vmatpush1.msra.mxu0 0.0
    %2545 = vmatprep.subr.mxu0 0.0
    %2546 = vmatpush1.msra.mxu0 0.0
    %2547 = vmatprep.subr.mxu0 0.0
    %2548 = vmatpush1.msra.mxu0 0.0
    %2549 = vmatprep.subr.mxu0 0.0
    %2550 = vmatpush1.msra.mxu0 0.0
    %2551 = vmatprep.subr.mxu0 0.0
    %2552 = vmatpush1.msra.mxu0 0.0
    %2553 = vmatprep.subr.mxu0 0.0
    %2554 = vmatpush1.msra.mxu0 0.0
    %2555 = vmatprep.subr.mxu0 0.0
    %2556 = vmatpush1.msra.mxu0 0.0
    %2557 = vmatprep.subr.mxu0 0.0
    %2558 = vmatpush1.msra.mxu0 0.0
    %2559 = vmatprep.subr.mxu0 0.0
    %2560 = vmatpush1.msra.mxu0 0.0
    %2561 = vmatprep.subr.mxu0 0.0
    %2562 = vmatpush1.msra.mxu0 0.0
    %2563 = vmatprep.subr.mxu0 0.0
    %2564 = vmatpush1.msra.mxu0 0.0
    %2565 = vmatprep.subr.mxu0 0.0
    %2566 = vmatpush1.msra.mxu0 0.0
    %2567 = vmatprep.mubr.f32.mxu0 0.0
    %2568 = vmatmul.mubr.f32.gmra.mrb[0].mxu0 %v2501
    %v2569 = vpop.f32.mrb[0].mxu0
    %v2570 = vadd.f32 %v2496, %v2569
    %v2571 = vpop.f32.mrb[0].mxu0
    %2572 = vdwg.mxu0
    %v2573 = vmax.f32 %v2570, 0.0
    %v2574 = vld [vmem:[#allocation14] sm:$0xff]
    %v2575 = vld [vmem:[#allocation14 + $0x8] sm:$0xff]
    %v2576 = vld [vmem:[#allocation14 + $0x10] sm:$0xff]
    %v2577 = vld [vmem:[#allocation14 + $0x18] sm:$0xff]
    %v2578 = vld [vmem:[#allocation14 + $0x20] sm:$0xff]
    %v2579 = vld [vmem:[#allocation14 + $0x28] sm:$0xff]
    %v2580 = vld [vmem:[#allocation14 + $0x30] sm:$0xff]
    %v2581 = vld [vmem:[#allocation14 + $0x38] sm:$0xff]
    %v2582 = vld [vmem:[%s12] sm:$0x1]
    %v2584 = vlaneseq
    %v2585 = vshrl.u32 %v2584, 7
    %v2586 = vsub.s32 0, %v2585
    %v2587 = vrot.slane %v2582, %v2586
    %vm2589 = vcmask 523264
    %v2591 = vsel %vm2589, %v2573, 0
    %2593 = vmatprep.subr.mxu0 0.0
    %2594 = vmatpush1.msra.mxu0 %v2574
    %2595 = vmatprep.subr.mxu0 0.0
    %2596 = vmatpush1.msra.mxu0 %v2575
    %2597 = vmatprep.subr.mxu0 0.0
    %2598 = vmatpush1.msra.mxu0 %v2576
    %2599 = vmatprep.subr.mxu0 0.0
    %2600 = vmatpush1.msra.mxu0 %v2577
    %2601 = vmatprep.subr.mxu0 0.0
    %2602 = vmatpush1.msra.mxu0 %v2578
    %2603 = vmatprep.subr.mxu0 0.0
    %2604 = vmatpush1.msra.mxu0 %v2579
    %2605 = vmatprep.subr.mxu0 0.0
    %2606 = vmatpush1.msra.mxu0 %v2580
    %2607 = vmatprep.subr.mxu0 0.0
    %2608 = vmatpush1.msra.mxu0 %v2581
    %2609 = vmatprep.subr.mxu0 0.0
    %2610 = vmatpush1.msra.mxu0 0.0
    %2611 = vmatprep.subr.mxu0 0.0
    %2612 = vmatpush1.msra.mxu0 0.0
    %2613 = vmatprep.subr.mxu0 0.0
    %2614 = vmatpush1.msra.mxu0 0.0
    %2615 = vmatprep.subr.mxu0 0.0
    %2616 = vmatpush1.msra.mxu0 0.0
    %2617 = vmatprep.subr.mxu0 0.0
    %2618 = vmatpush1.msra.mxu0 0.0
    %2619 = vmatprep.subr.mxu0 0.0
    %2620 = vmatpush1.msra.mxu0 0.0
    %2621 = vmatprep.subr.mxu0 0.0
    %2622 = vmatpush1.msra.mxu0 0.0
    %2623 = vmatprep.subr.mxu0 0.0
    %2624 = vmatpush1.msra.mxu0 0.0
    %2625 = vmatprep.subr.mxu0 0.0
    %2626 = vmatpush1.msra.mxu0 0.0
    %2627 = vmatprep.subr.mxu0 0.0
    %2628 = vmatpush1.msra.mxu0 0.0
    %2629 = vmatprep.subr.mxu0 0.0
    %2630 = vmatpush1.msra.mxu0 0.0
    %2631 = vmatprep.subr.mxu0 0.0
    %2632 = vmatpush1.msra.mxu0 0.0
    %2633 = vmatprep.subr.mxu0 0.0
    %2634 = vmatpush1.msra.mxu0 0.0
    %2635 = vmatprep.subr.mxu0 0.0
    %2636 = vmatpush1.msra.mxu0 0.0
    %2637 = vmatprep.subr.mxu0 0.0
    %2638 = vmatpush1.msra.mxu0 0.0
    %2639 = vmatprep.subr.mxu0 0.0
    %2640 = vmatpush1.msra.mxu0 0.0
    %2641 = vmatprep.subr.mxu0 0.0
    %2642 = vmatpush1.msra.mxu0 0.0
    %2643 = vmatprep.subr.mxu0 0.0
    %2644 = vmatpush1.msra.mxu0 0.0
    %2645 = vmatprep.subr.mxu0 0.0
    %2646 = vmatpush1.msra.mxu0 0.0
    %2647 = vmatprep.subr.mxu0 0.0
    %2648 = vmatpush1.msra.mxu0 0.0
    %2649 = vmatprep.subr.mxu0 0.0
    %2650 = vmatpush1.msra.mxu0 0.0
    %2651 = vmatprep.subr.mxu0 0.0
    %2652 = vmatpush1.msra.mxu0 0.0
    %2653 = vmatprep.subr.mxu0 0.0
    %2654 = vmatpush1.msra.mxu0 0.0
    %2655 = vmatprep.subr.mxu0 0.0
    %2656 = vmatpush1.msra.mxu0 0.0
    %2657 = vmatprep.mubr.f32.mxu0 0.0
    %2658 = vmatmul.mubr.f32.gmra.mrb[0].mxu0 %v2591
    %v2659 = vpop.f32.mrb[0].mxu0
    %v2660 = vadd.f32 %v2587, %v2659
    %v2661 = vpop.f32.mrb[0].mxu0
    %2662 = vdwg.mxu0
    %v2663 = vxor.u32 %v2660, 2147483648
    %v2664 = vmul.f32 %v2663, 1.442695
    %v2665 = vpow.pop %v2664
    %v2666 = vadd.f32 %v2665, 1.0
    %v2667 = vrcp.pop %v2666
    %v2668 = vmul.f32 1.0, %v2667
    %2669 = vst [vmem:[#allocation16] sm:$0x3] %v2668
    // Predicated region
    $region86: #{tpu_custom_call.1} parent=1 // pred_check
      _
    $region87: #{tpu_custom_call.1} parent=1 // pred_check_branch
      %2671 = sbr.rel (0) target = $region89
    $region88: #{tpu_custom_call.1} parent=1 // pred_region
      %s2673 = ssub.s32 32, 32
      %2674 = vsyncadd [#allocation4], %s2673
      %s2676 = sshll.u32 [#allocation16], 4
      %s2677 = int_to_ptr.vmem [resolvable:$true] %s2676
      %2679 = dma.vmem_to_hbm [thread:$0]  %s2677, 32, %s13, [#allocation4]
    $region89: #{tpu_custom_call.1} parent=1 // pred_fallthru
      _
    // Predicated region
    $region90: #{tpu_custom_call.1} parent=1 // pred_check
      _
    $region91: #{tpu_custom_call.1} parent=1 // pred_check_branch
      %2681 = sbr.rel (0) target = $region93
    $region92: #{tpu_custom_call.1} parent=1 // pred_region
      %2682 = dma.done [#allocation4], 32
    $region93: #{tpu_custom_call.1} parent=1 // pred_fallthru
      _
    %2683 = vsyncpa [#allocation3], 1
    %2684 = vsyncpa [#allocation6], 1
    %2685 = vsyncpa [#allocation9], 1
    %2686 = vsyncpa [#allocation12], 1
    %2687 = vsyncpa [#allocation15], 1
    %2688 = vsyncpa [#allocation4], 1

</llo_original>
